<compile_context>
chip_gen: v5e
topology: v5e:2x2
jax: 0.10.0
libtpu: 0.0.40
codegen_flags: <defaults>
</compile_context>

<pallas_src>
import functools

import jax
import jax.numpy as jnp
import numpy as np
from jax.experimental import pallas as pl
from jax.experimental.pallas import tpu as pltpu


# ----------------------------------------------------------------------------
# Kernels
# ----------------------------------------------------------------------------
def _conv_relu_pool_kernel(x_ref, w_ref, b_ref, s_ref, o_ref, *scratch, wp, bt):
    """Fused 3x3 conv (pad=1) + bias + ReLU + 2x2/2 max-pool for `bt` images.

    Layout: channels on sublanes, flattened zero-padded spatial (row-major,
    padded row stride `wp`) on lanes.
      x_ref  : (bt, Cin, Hp*Wp)        padded input, flattened spatial
      w_ref  : (9, Cout, 1)  if Cin==1 (per-tap columns)
               (Cout, 9*Cin) if Cin>1  (K index = (kh*3+kw)*Cin + c)
      b_ref  : (Cout, 1)
      s_ref  : (Lsel, Lout)  bf16      0/1 stride-2 select + scatter matrix
      o_ref  : (bt, Cout, Lout)
      scratch: [slab (9*Cin, L) f32 (only Cin>1)], acc (Cout, L) f32
    """
    cin = x_ref.shape[1]
    cout = o_ref.shape[1]
    if cin == 1:
        (acc_ref,) = scratch
        slab_ref = None
    else:
        slab_ref, acc_ref = scratch
    L = acc_ref.shape[1]
    lsel = s_ref.shape[0]

    pooled = []
    for b in range(bt):
        if cin == 1:
            # conv1: 9-tap outer-product accumulation in registers (VPU),
            # accumulator written to VMEM exactly once below.
            # TODO(synk): v5e — stack the 9 shifted slabs and use the MXU here too.
            acc = None
            for kh in range(3):
                for kw in range(3):
                    off = kh * wp + kw
                    term = w_ref[kh * 3 + kw] * x_ref[b, :, off:off + L]
                    acc = term if acc is None else acc + term
        else:
            # conv2: stack the 9 shifted tap slabs along the contraction axis,
            # then ONE K=9*Cin matmul (MXU accumulates internally).
            for kh in range(3):
                for kw in range(3):
                    t = kh * 3 + kw
                    off = kh * wp + kw
                    slab_ref[t * cin:(t + 1) * cin, :] = x_ref[b, :, off:off + L]
            acc = jnp.dot(w_ref[...], slab_ref[...],
                          preferred_element_type=jnp.float32)

        # Bias + ReLU epilogue; single VMEM write, then only pooled reads.
        acc_ref[...] = jnp.maximum(acc + b_ref[...], 0.0)

        # 2x2/2 max pool = elementwise max of the four shifted corner views.
        m = jnp.maximum(
            jnp.maximum(acc_ref[:, 0:lsel], acc_ref[:, 1:1 + lsel]),
            jnp.maximum(acc_ref[:, wp:wp + lsel],
                        acc_ref[:, wp + 1:wp + 1 + lsel]))
        pooled.append(m.astype(jnp.bfloat16))

    # One bf16 selection matmul for the whole batch block: stride-2 gather +
    # scatter into the next stage's zero-padded layout (f32 accumulation).
    mm = pooled[0] if bt == 1 else jnp.concatenate(pooled, axis=0)
    out = jnp.dot(mm, s_ref[...], preferred_element_type=jnp.float32)
    for b in range(bt):
        o_ref[b] = out[b * cout:(b + 1) * cout, :].astype(o_ref.dtype)


def _fc_fused_kernel(x_ref, w1_ref, b1_ref, w2_ref, b2_ref, o_ref):
    """out = relu(x @ w1 + b1) @ w2 + b2; bf16 matmuls, f32 accumulation."""
    h = jnp.dot(x_ref[...].astype(jnp.bfloat16), w1_ref[...],
                preferred_element_type=jnp.float32)
    h = jnp.maximum(h + b1_ref[...], 0.0)
    o = jnp.dot(h.astype(jnp.bfloat16), w2_ref[...],
                preferred_element_type=jnp.float32) + b2_ref[...]
    o_ref[...] = o.astype(o_ref.dtype)


# ----------------------------------------------------------------------------
# Wrappers
# ----------------------------------------------------------------------------
def _pick_conv_bt(B):
    """Largest batch block that divides B while keeping >= 2 grid steps
    (so v7x's two TensorCores both get work); falls back to B for B == 1."""
    for bt in (32, 16, 8, 4, 2, 1):
        if B % bt == 0 and B // bt >= 2:
            return bt
    return B


def conv_relu_pool(x_flat, w, bias, sel, *, H, W, Wp, bt):
    """x_flat: (B, Cin, Hp*Wp) padded+flattened NCHW; returns (B, Cout, Lout)."""
    B, cin, Lin = x_flat.shape
    assert B % bt == 0
    cout = bias.shape[0]
    L = (H - 1) * Wp + W
    Lsel, Lout = sel.shape
    w_ndim = w.ndim

    scratch = [pltpu.VMEM((cout, L), jnp.float32)]
    if cin > 1:
        scratch.insert(0, pltpu.VMEM((9 * cin, L), jnp.float32))

    kernel = functools.partial(_conv_relu_pool_kernel, wp=Wp, bt=bt)
    return pl.pallas_call(
        kernel,
        out_shape=jax.ShapeDtypeStruct((B, cout, Lout), jnp.float32),
        grid_spec=pltpu.PrefetchScalarGridSpec(
            num_scalar_prefetch=0,
            grid=(B // bt,),
            in_specs=[
                pl.BlockSpec((bt, cin, Lin), lambda i: (i, 0, 0)),
                pl.BlockSpec(w.shape, lambda i: (0,) * w_ndim),
                pl.BlockSpec((cout, 1), lambda i: (0, 0)),
                pl.BlockSpec((Lsel, Lout), lambda i: (0, 0)),
            ],
            out_specs=pl.BlockSpec((bt, cout, Lout), lambda i: (i, 0, 0)),
            scratch_shapes=scratch,
        ),
        compiler_params=pltpu.CompilerParams(
            dimension_semantics=("parallel",)),
    )(x_flat, w, bias, sel)


def fc_fused(x, w1, b1, w2, b2):
    B, K = x.shape
    N = w2.shape[1]
    bt = min(128, B)                       # row tile; weights stay VMEM-resident
    return pl.pallas_call(
        _fc_fused_kernel,
        out_shape=jax.ShapeDtypeStruct((B, N), jnp.float32),
        grid_spec=pltpu.PrefetchScalarGridSpec(
            num_scalar_prefetch=0,
            grid=(pl.cdiv(B, bt),),
            in_specs=[
                pl.BlockSpec((bt, K), lambda i: (i, 0)),
                pl.BlockSpec(w1.shape, lambda i: (0, 0)),
                pl.BlockSpec(b1.shape, lambda i: (0, 0)),
                pl.BlockSpec(w2.shape, lambda i: (0, 0)),
                pl.BlockSpec(b2.shape, lambda i: (0, 0)),
            ],
            out_specs=pl.BlockSpec((bt, N), lambda i: (i, 0)),
        ),
        compiler_params=pltpu.CompilerParams(
            dimension_semantics=("parallel",)),
    )(x, w1, b1, w2, b2)


# ----------------------------------------------------------------------------
# One-time parameter / constant preparation (hoisted out of the forward pass)
# ----------------------------------------------------------------------------
def _pool_select_matrix(H, W, Wp, out_Hp, out_Wp, pad):
    """0/1 matrix mapping the pooled-max vector (flat index 2i*Wp + 2j) to the
    next stage's flattened (out_Hp * out_Wp) zero-padded spatial layout."""
    Ho, Wo = H // 2, W // 2
    Lsel = (H - 2) * Wp + (W - 2) + 1
    S = np.zeros((Lsel, out_Hp * out_Wp), np.float32)
    for i in range(Ho):
        for j in range(Wo):
            S[2 * i * Wp + 2 * j, (i + pad) * out_Wp + (j + pad)] = 1.0
    return jnp.asarray(S)


def prepare_params(raw):
    # conv1 (Cin=1): per-tap columns (9, 32, 1) for the outer-product path.
    conv1_w = jnp.transpose(raw["conv1_w"], (2, 3, 0, 1)).reshape(9, 32, 1)
    # conv2: K-fused matrix (64, 288), K index = (kh*3+kw)*Cin + c.
    conv2_w = jnp.transpose(raw["conv2_w"], (0, 2, 3, 1)).reshape(64, 9 * 32)
    return {
        "conv1_w": conv1_w,
        "conv1_b": raw["conv1_b"].reshape(32, 1),
        "conv2_w": conv2_w,
        "conv2_b": raw["conv2_b"].reshape(64, 1),
        "fc1_wT": jnp.transpose(raw["fc1_w"]).astype(jnp.bfloat16),  # (3136,128)
        "fc1_b": raw["fc1_b"].reshape(1, 128),
        "fc2_wT": jnp.transpose(raw["fc2_w"]).astype(jnp.bfloat16),  # (128,10)
        "fc2_b": raw["fc2_b"].reshape(1, 10),
        # pooled 14x14 -> zero-padded 16x16 (ready-made conv2 input layout)
        "sel1": _pool_select_matrix(28, 28, 30, 16, 16, pad=1).astype(jnp.bfloat16),
        # pooled 7x7 -> flat 49 (NCHW flatten order expected by fc1)
        "sel2": _pool_select_matrix(14, 14, 16, 7, 7, pad=0).astype(jnp.bfloat16),
    }


# ----------------------------------------------------------------------------
# Net forward
# ----------------------------------------------------------------------------
def net_forward(x, p):
    # x: (B, 1, 28, 28) NCHW float32
    B = x.shape[0]
    bt = _pick_conv_bt(B)
    # Zero-pad H/W by 1 and flatten spatial: the only XLA data-movement op
    # before the fc reshape, on the raw ~3 KB/image input.
    xp = jnp.pad(x, ((0, 0), (0, 0), (1, 1), (1, 1))).reshape(B, 1, 30 * 30)
    h1 = conv_relu_pool(xp, p["conv1_w"], p["conv1_b"], p["sel1"],
                        H=28, W=28, Wp=30, bt=bt)             # (B, 32, 256)
    h2 = conv_relu_pool(h1, p["conv2_w"], p["conv2_b"], p["sel2"],
                        H=14, W=14, Wp=16, bt=bt)             # (B, 64, 49)
    # ~12.5 KB/image; per review, accept this reshape rather than pad 49->128.
    feats = h2.reshape(B, 64 * 7 * 7)   # contiguous; matches torch .view order
    return fc_fused(feats, p["fc1_wT"], p["fc1_b"], p["fc2_wT"], p["fc2_b"])


# ----------------------------------------------------------------------------
# Pure-JAX reference (same math as the PyTorch module) for a numerics check
# ----------------------------------------------------------------------------
def net_forward_reference(x, raw):
    def conv(y, w, b):
        y = jax.lax.conv_general_dilated(
            y, w, window_strides=(1, 1), padding=((1, 1), (1, 1)),
            dimension_numbers=("NCHW", "OIHW", "NCHW"))
        return jax.nn.relu(y + b.reshape(1, -1, 1, 1))

    def pool(y):
        B, C, H, W = y.shape
        return y.reshape(B, C, H // 2, 2, W // 2, 2).max(axis=(3, 5))

    y = pool(conv(x, raw["conv1_w"], raw["conv1_b"]))
    y = pool(conv(y, raw["conv2_w"], raw["conv2_b"]))
    y = y.reshape(y.shape[0], -1)
    y = jax.nn.relu(y @ raw["fc1_w"].T + raw["fc1_b"])
    return y @ raw["fc2_w"].T + raw["fc2_b"]


def init_params(key):
    """Deterministic synthetic init (PyTorch-style uniform(-1/sqrt(fan_in), ...))."""
    ks = jax.random.split(key, 8)

    def u(k, shape, fan_in):
        bound = 1.0 / float(fan_in) ** 0.5
        return jax.random.uniform(k, shape, jnp.float32, -bound, bound)

    return {
        "conv1_w": u(ks[0], (32, 1, 3, 3), 1 * 9),
        "conv1_b": u(ks[1], (32,), 1 * 9),
        "conv2_w": u(ks[2], (64, 32, 3, 3), 32 * 9),
        "conv2_b": u(ks[3], (64,), 32 * 9),
        "fc1_w":   u(ks[4], (128, 64 * 7 * 7), 64 * 7 * 7),
        "fc1_b":   u(ks[5], (128,), 64 * 7 * 7),
        "fc2_w":   u(ks[6], (10, 128), 128),
        "fc2_b":   u(ks[7], (10,), 128),
    }


if __name__ == "__main__":
    key = jax.random.PRNGKey(0)
    k_param, k_x = jax.random.split(key)
    raw_params = init_params(k_param)
    params = prepare_params(raw_params)   # one-time layout prep, outside jit
    # FashionMNIST-shaped input (28x28 is forced by fc1 = 64*7*7); small batch.
    x = jax.random.normal(k_x, (2, 1, 28, 28), dtype=jnp.float32)

    out = jax.jit(net_forward)(x, params)
    out = jax.block_until_ready(out)
    assert out.shape == (2, 10), out.shape
    assert out.dtype == jnp.float32

    ref = net_forward_reference(x, raw_params)
    max_err = float(jnp.max(jnp.abs(out - ref)))
    assert max_err < 5e-2, f"mismatch vs reference: {max_err}"

    print("KERNEL_OK")
</pallas_src>

<mosaic_0001>
module attributes {stable_mosaic.version = 11 : i64} {
  func.func @_conv_relu_pool_kernel(%arg0: i32, %arg1: memref<1x1x900xf32, #tpu.memory_space<vmem>>, %arg2: memref<9x32x1xf32, #tpu.memory_space<vmem>>, %arg3: memref<32x1xf32, #tpu.memory_space<vmem>>, %arg4: memref<807x256xbf16, #tpu.memory_space<vmem>>, %arg5: memref<1x32x256xf32, #tpu.memory_space<vmem>>, %arg6: memref<32x838xf32, #tpu.memory_space<vmem>>) attributes {dimension_semantics = [#tpu.dimension_semantics<parallel>], iteration_bounds = array<i64: 2>, scalar_prefetch = 0 : i64, scratch_operands = 1 : i64, tpu.core_type = #tpu.core_type<tc>, window_params = [{transform_indices = @transform_0, window_bounds = array<i64: 1, 1, 900>}, {pipeline_mode = #tpu.pipeline_mode<synchronous>, transform_indices = @transform_1, window_bounds = array<i64: 9, 32, 1>}, {pipeline_mode = #tpu.pipeline_mode<synchronous>, transform_indices = @transform_2, window_bounds = array<i64: 32, 1>}, {pipeline_mode = #tpu.pipeline_mode<synchronous>, transform_indices = @transform_3, window_bounds = array<i64: 807, 256>}, {transform_indices = @transform_4, window_bounds = array<i64: 1, 32, 256>}]} {
    %c0 = arith.constant 0 : index
    %c0_0 = arith.constant 0 : index
    %c0_1 = arith.constant 0 : index
    %0 = vector.load %arg2[%c0, %c0_0, %c0_1] : memref<9x32x1xf32, #tpu.memory_space<vmem>>, vector<1x32x1xf32>
    %1 = vector.shape_cast %0 : vector<1x32x1xf32> to vector<32x1xf32>
    %c0_2 = arith.constant 0 : index
    %c0_3 = arith.constant 0 : index
    %c0_4 = arith.constant 0 : index
    %2 = vector.load %arg1[%c0_2, %c0_3, %c0_4] : memref<1x1x900xf32, #tpu.memory_space<vmem>>, vector<1x1x838xf32>
    %3 = vector.shape_cast %2 : vector<1x1x838xf32> to vector<1x838xf32>
    %4 = vector.broadcast %1 : vector<32x1xf32> to vector<32x838xf32>
    %5 = vector.broadcast %3 : vector<1x838xf32> to vector<32x838xf32>
    %6 = arith.mulf %4, %5 : vector<32x838xf32>
    %c1 = arith.constant 1 : index
    %c0_5 = arith.constant 0 : index
    %c0_6 = arith.constant 0 : index
    %7 = vector.load %arg2[%c1, %c0_5, %c0_6] : memref<9x32x1xf32, #tpu.memory_space<vmem>>, vector<1x32x1xf32>
    %8 = vector.shape_cast %7 : vector<1x32x1xf32> to vector<32x1xf32>
    %c0_7 = arith.constant 0 : index
    %c0_8 = arith.constant 0 : index
    %c1_9 = arith.constant 1 : index
    %9 = vector.load %arg1[%c0_7, %c0_8, %c1_9] : memref<1x1x900xf32, #tpu.memory_space<vmem>>, vector<1x1x838xf32>
    %10 = vector.shape_cast %9 : vector<1x1x838xf32> to vector<1x838xf32>
    %11 = vector.broadcast %8 : vector<32x1xf32> to vector<32x838xf32>
    %12 = vector.broadcast %10 : vector<1x838xf32> to vector<32x838xf32>
    %13 = arith.mulf %11, %12 : vector<32x838xf32>
    %14 = arith.addf %6, %13 : vector<32x838xf32>
    %c2 = arith.constant 2 : index
    %c0_10 = arith.constant 0 : index
    %c0_11 = arith.constant 0 : index
    %15 = vector.load %arg2[%c2, %c0_10, %c0_11] : memref<9x32x1xf32, #tpu.memory_space<vmem>>, vector<1x32x1xf32>
    %16 = vector.shape_cast %15 : vector<1x32x1xf32> to vector<32x1xf32>
    %c0_12 = arith.constant 0 : index
    %c0_13 = arith.constant 0 : index
    %c2_14 = arith.constant 2 : index
    %17 = vector.load %arg1[%c0_12, %c0_13, %c2_14] : memref<1x1x900xf32, #tpu.memory_space<vmem>>, vector<1x1x838xf32>
    %18 = vector.shape_cast %17 : vector<1x1x838xf32> to vector<1x838xf32>
    %19 = vector.broadcast %16 : vector<32x1xf32> to vector<32x838xf32>
    %20 = vector.broadcast %18 : vector<1x838xf32> to vector<32x838xf32>
    %21 = arith.mulf %19, %20 : vector<32x838xf32>
    %22 = arith.addf %14, %21 : vector<32x838xf32>
    %c3 = arith.constant 3 : index
    %c0_15 = arith.constant 0 : index
    %c0_16 = arith.constant 0 : index
    %23 = vector.load %arg2[%c3, %c0_15, %c0_16] : memref<9x32x1xf32, #tpu.memory_space<vmem>>, vector<1x32x1xf32>
    %24 = vector.shape_cast %23 : vector<1x32x1xf32> to vector<32x1xf32>
    %c0_17 = arith.constant 0 : index
    %c0_18 = arith.constant 0 : index
    %c30 = arith.constant 30 : index
    %25 = vector.load %arg1[%c0_17, %c0_18, %c30] : memref<1x1x900xf32, #tpu.memory_space<vmem>>, vector<1x1x838xf32>
    %26 = vector.shape_cast %25 : vector<1x1x838xf32> to vector<1x838xf32>
    %27 = vector.broadcast %24 : vector<32x1xf32> to vector<32x838xf32>
    %28 = vector.broadcast %26 : vector<1x838xf32> to vector<32x838xf32>
    %29 = arith.mulf %27, %28 : vector<32x838xf32>
    %30 = arith.addf %22, %29 : vector<32x838xf32>
    %c4 = arith.constant 4 : index
    %c0_19 = arith.constant 0 : index
    %c0_20 = arith.constant 0 : index
    %31 = vector.load %arg2[%c4, %c0_19, %c0_20] : memref<9x32x1xf32, #tpu.memory_space<vmem>>, vector<1x32x1xf32>
    %32 = vector.shape_cast %31 : vector<1x32x1xf32> to vector<32x1xf32>
    %c0_21 = arith.constant 0 : index
    %c0_22 = arith.constant 0 : index
    %c31 = arith.constant 31 : index
    %33 = vector.load %arg1[%c0_21, %c0_22, %c31] : memref<1x1x900xf32, #tpu.memory_space<vmem>>, vector<1x1x838xf32>
    %34 = vector.shape_cast %33 : vector<1x1x838xf32> to vector<1x838xf32>
    %35 = vector.broadcast %32 : vector<32x1xf32> to vector<32x838xf32>
    %36 = vector.broadcast %34 : vector<1x838xf32> to vector<32x838xf32>
    %37 = arith.mulf %35, %36 : vector<32x838xf32>
    %38 = arith.addf %30, %37 : vector<32x838xf32>
    %c5 = arith.constant 5 : index
    %c0_23 = arith.constant 0 : index
    %c0_24 = arith.constant 0 : index
    %39 = vector.load %arg2[%c5, %c0_23, %c0_24] : memref<9x32x1xf32, #tpu.memory_space<vmem>>, vector<1x32x1xf32>
    %40 = vector.shape_cast %39 : vector<1x32x1xf32> to vector<32x1xf32>
    %c0_25 = arith.constant 0 : index
    %c0_26 = arith.constant 0 : index
    %c32 = arith.constant 32 : index
    %41 = vector.load %arg1[%c0_25, %c0_26, %c32] : memref<1x1x900xf32, #tpu.memory_space<vmem>>, vector<1x1x838xf32>
    %42 = vector.shape_cast %41 : vector<1x1x838xf32> to vector<1x838xf32>
    %43 = vector.broadcast %40 : vector<32x1xf32> to vector<32x838xf32>
    %44 = vector.broadcast %42 : vector<1x838xf32> to vector<32x838xf32>
    %45 = arith.mulf %43, %44 : vector<32x838xf32>
    %46 = arith.addf %38, %45 : vector<32x838xf32>
    %c6 = arith.constant 6 : index
    %c0_27 = arith.constant 0 : index
    %c0_28 = arith.constant 0 : index
    %47 = vector.load %arg2[%c6, %c0_27, %c0_28] : memref<9x32x1xf32, #tpu.memory_space<vmem>>, vector<1x32x1xf32>
    %48 = vector.shape_cast %47 : vector<1x32x1xf32> to vector<32x1xf32>
    %c0_29 = arith.constant 0 : index
    %c0_30 = arith.constant 0 : index
    %c60 = arith.constant 60 : index
    %49 = vector.load %arg1[%c0_29, %c0_30, %c60] : memref<1x1x900xf32, #tpu.memory_space<vmem>>, vector<1x1x838xf32>
    %50 = vector.shape_cast %49 : vector<1x1x838xf32> to vector<1x838xf32>
    %51 = vector.broadcast %48 : vector<32x1xf32> to vector<32x838xf32>
    %52 = vector.broadcast %50 : vector<1x838xf32> to vector<32x838xf32>
    %53 = arith.mulf %51, %52 : vector<32x838xf32>
    %54 = arith.addf %46, %53 : vector<32x838xf32>
    %c7 = arith.constant 7 : index
    %c0_31 = arith.constant 0 : index
    %c0_32 = arith.constant 0 : index
    %55 = vector.load %arg2[%c7, %c0_31, %c0_32] : memref<9x32x1xf32, #tpu.memory_space<vmem>>, vector<1x32x1xf32>
    %56 = vector.shape_cast %55 : vector<1x32x1xf32> to vector<32x1xf32>
    %c0_33 = arith.constant 0 : index
    %c0_34 = arith.constant 0 : index
    %c61 = arith.constant 61 : index
    %57 = vector.load %arg1[%c0_33, %c0_34, %c61] : memref<1x1x900xf32, #tpu.memory_space<vmem>>, vector<1x1x838xf32>
    %58 = vector.shape_cast %57 : vector<1x1x838xf32> to vector<1x838xf32>
    %59 = vector.broadcast %56 : vector<32x1xf32> to vector<32x838xf32>
    %60 = vector.broadcast %58 : vector<1x838xf32> to vector<32x838xf32>
    %61 = arith.mulf %59, %60 : vector<32x838xf32>
    %62 = arith.addf %54, %61 : vector<32x838xf32>
    %c8 = arith.constant 8 : index
    %c0_35 = arith.constant 0 : index
    %c0_36 = arith.constant 0 : index
    %63 = vector.load %arg2[%c8, %c0_35, %c0_36] : memref<9x32x1xf32, #tpu.memory_space<vmem>>, vector<1x32x1xf32>
    %64 = vector.shape_cast %63 : vector<1x32x1xf32> to vector<32x1xf32>
    %c0_37 = arith.constant 0 : index
    %c0_38 = arith.constant 0 : index
    %c62 = arith.constant 62 : index
    %65 = vector.load %arg1[%c0_37, %c0_38, %c62] : memref<1x1x900xf32, #tpu.memory_space<vmem>>, vector<1x1x838xf32>
    %66 = vector.shape_cast %65 : vector<1x1x838xf32> to vector<1x838xf32>
    %67 = vector.broadcast %64 : vector<32x1xf32> to vector<32x838xf32>
    %68 = vector.broadcast %66 : vector<1x838xf32> to vector<32x838xf32>
    %69 = arith.mulf %67, %68 : vector<32x838xf32>
    %70 = arith.addf %62, %69 : vector<32x838xf32>
    %c0_39 = arith.constant 0 : index
    %c0_40 = arith.constant 0 : index
    %71 = vector.load %arg3[%c0_39, %c0_40] : memref<32x1xf32, #tpu.memory_space<vmem>>, vector<32x1xf32>
    %72 = vector.broadcast %71 : vector<32x1xf32> to vector<32x838xf32>
    %73 = arith.addf %70, %72 : vector<32x838xf32>
    %cst = arith.constant 0.000000e+00 : f32
    %74 = vector.broadcast %cst : f32 to vector<32x838xf32>
    %75 = arith.maximumf %73, %74 : vector<32x838xf32>
    %c0_41 = arith.constant 0 : index
    %c0_42 = arith.constant 0 : index
    %76 = vector.load %arg6[%c0_41, %c0_42] : memref<32x838xf32, #tpu.memory_space<vmem>>, vector<32x838xf32>
    tpu.vector_store %arg6[%c0_41, %c0_42], %75 {strides = array<i32>} : memref<32x838xf32, #tpu.memory_space<vmem>>, vector<32x838xf32>,
    %c0_43 = arith.constant 0 : index
    %c0_44 = arith.constant 0 : index
    %77 = vector.load %arg6[%c0_43, %c0_44] : memref<32x838xf32, #tpu.memory_space<vmem>>, vector<32x807xf32>
    %c0_45 = arith.constant 0 : index
    %c1_46 = arith.constant 1 : index
    %78 = vector.load %arg6[%c0_45, %c1_46] : memref<32x838xf32, #tpu.memory_space<vmem>>, vector<32x807xf32>
    %79 = arith.maximumf %77, %78 : vector<32x807xf32>
    %c0_47 = arith.constant 0 : index
    %c30_48 = arith.constant 30 : index
    %80 = vector.load %arg6[%c0_47, %c30_48] : memref<32x838xf32, #tpu.memory_space<vmem>>, vector<32x807xf32>
    %c0_49 = arith.constant 0 : index
    %c31_50 = arith.constant 31 : index
    %81 = vector.load %arg6[%c0_49, %c31_50] : memref<32x838xf32, #tpu.memory_space<vmem>>, vector<32x807xf32>
    %82 = arith.maximumf %80, %81 : vector<32x807xf32>
    %83 = arith.maximumf %79, %82 : vector<32x807xf32>
    %84 = arith.truncf %83 : vector<32x807xf32> to vector<32x807xbf16>
    %c0_51 = arith.constant 0 : index
    %c0_52 = arith.constant 0 : index
    %85 = vector.load %arg4[%c0_51, %c0_52] : memref<807x256xbf16, #tpu.memory_space<vmem>>, vector<807x256xbf16>
    %cst_53 = arith.constant dense<0.000000e+00> : vector<32x256xf32>
    %86 = tpu.matmul %84, %85, %cst_53 {dimension_numbers = #tpu.dot_dimension_numbers<[1], [0], [0], [1], [0, 0, 1, 1], [], []>} : vector<32x807xbf16>, vector<807x256xbf16>, vector<32x256xf32> -> vector<32x256xf32>
    %c0_54 = arith.constant 0 : index
    %c0_55 = arith.constant 0 : index
    %c0_56 = arith.constant 0 : index
    %87 = vector.load %arg5[%c0_54, %c0_55, %c0_56] : memref<1x32x256xf32, #tpu.memory_space<vmem>>, vector<1x32x256xf32>
    %88 = vector.shape_cast %87 : vector<1x32x256xf32> to vector<32x256xf32>
    %89 = vector.shape_cast %86 : vector<32x256xf32> to vector<1x32x256xf32>
    tpu.vector_store %arg5[%c0_54, %c0_55, %c0_56], %89 {strides = array<i32>} : memref<1x32x256xf32, #tpu.memory_space<vmem>>, vector<1x32x256xf32>,
    return
  }
  func.func @transform_0(%arg0: i32) -> (i32, i32, i32) {
    %c0_i32 = arith.constant 0 : i32
    %c0_i32_0 = arith.constant 0 : i32
    %c0_i32_1 = arith.constant 0 : i32
    return %arg0, %c0_i32, %c0_i32_0 : i32, i32, i32
  }
  func.func @transform_1(%arg0: i32) -> (i32, i32, i32) {
    %c0_i32 = arith.constant 0 : i32
    %c0_i32_0 = arith.constant 0 : i32
    %c0_i32_1 = arith.constant 0 : i32
    %c0_i32_2 = arith.constant 0 : i32
    return %c0_i32, %c0_i32_0, %c0_i32_1 : i32, i32, i32
  }
  func.func @transform_2(%arg0: i32) -> (i32, i32) {
    %c0_i32 = arith.constant 0 : i32
    %c0_i32_0 = arith.constant 0 : i32
    %c0_i32_1 = arith.constant 0 : i32
    return %c0_i32, %c0_i32_0 : i32, i32
  }
  func.func @transform_3(%arg0: i32) -> (i32, i32) {
    %c0_i32 = arith.constant 0 : i32
    %c0_i32_0 = arith.constant 0 : i32
    %c0_i32_1 = arith.constant 0 : i32
    return %c0_i32, %c0_i32_0 : i32, i32
  }
  func.func @transform_4(%arg0: i32) -> (i32, i32, i32) {
    %c0_i32 = arith.constant 0 : i32
    %c0_i32_0 = arith.constant 0 : i32
    %c0_i32_1 = arith.constant 0 : i32
    return %arg0, %c0_i32, %c0_i32_0 : i32, i32, i32
  }
}

module attributes {stable_mosaic.version = 11 : i64} {
  func.func @_conv_relu_pool_kernel(%arg0: i32, %arg1: memref<1x32x256xf32, #tpu.memory_space<vmem>>, %arg2: memref<64x288xf32, #tpu.memory_space<vmem>>, %arg3: memref<64x1xf32, #tpu.memory_space<vmem>>, %arg4: memref<205x49xbf16, #tpu.memory_space<vmem>>, %arg5: memref<1x64x49xf32, #tpu.memory_space<vmem>>, %arg6: memref<288x222xf32, #tpu.memory_space<vmem>>, %arg7: memref<64x222xf32, #tpu.memory_space<vmem>>) attributes {dimension_semantics = [#tpu.dimension_semantics<parallel>], iteration_bounds = array<i64: 2>, scalar_prefetch = 0 : i64, scratch_operands = 2 : i64, tpu.core_type = #tpu.core_type<tc>, window_params = [{transform_indices = @transform_0, window_bounds = array<i64: 1, 32, 256>}, {pipeline_mode = #tpu.pipeline_mode<synchronous>, transform_indices = @transform_1, window_bounds = array<i64: 64, 288>}, {pipeline_mode = #tpu.pipeline_mode<synchronous>, transform_indices = @transform_2, window_bounds = array<i64: 64, 1>}, {pipeline_mode = #tpu.pipeline_mode<synchronous>, transform_indices = @transform_3, window_bounds = array<i64: 205, 49>}, {transform_indices = @transform_4, window_bounds = array<i64: 1, 64, 49>}]} {
    %c0 = arith.constant 0 : index
    %c0_0 = arith.constant 0 : index
    %c0_1 = arith.constant 0 : index
    %0 = vector.load %arg1[%c0, %c0_0, %c0_1] : memref<1x32x256xf32, #tpu.memory_space<vmem>>, vector<1x32x222xf32>
    %1 = vector.shape_cast %0 : vector<1x32x222xf32> to vector<32x222xf32>
    %c0_2 = arith.constant 0 : index
    %c0_3 = arith.constant 0 : index
    %2 = vector.load %arg6[%c0_2, %c0_3] : memref<288x222xf32, #tpu.memory_space<vmem>>, vector<32x222xf32>
    tpu.vector_store %arg6[%c0_2, %c0_3], %1 {strides = array<i32>} : memref<288x222xf32, #tpu.memory_space<vmem>>, vector<32x222xf32>,
    %c0_4 = arith.constant 0 : index
    %c0_5 = arith.constant 0 : index
    %c1 = arith.constant 1 : index
    %3 = vector.load %arg1[%c0_4, %c0_5, %c1] : memref<1x32x256xf32, #tpu.memory_space<vmem>>, vector<1x32x222xf32>
    %4 = vector.shape_cast %3 : vector<1x32x222xf32> to vector<32x222xf32>
    %c32 = arith.constant 32 : index
    %c0_6 = arith.constant 0 : index
    %5 = vector.load %arg6[%c32, %c0_6] : memref<288x222xf32, #tpu.memory_space<vmem>>, vector<32x222xf32>
    tpu.vector_store %arg6[%c32, %c0_6], %4 {strides = array<i32>} : memref<288x222xf32, #tpu.memory_space<vmem>>, vector<32x222xf32>,
    %c0_7 = arith.constant 0 : index
    %c0_8 = arith.constant 0 : index
    %c2 = arith.constant 2 : index
    %6 = vector.load %arg1[%c0_7, %c0_8, %c2] : memref<1x32x256xf32, #tpu.memory_space<vmem>>, vector<1x32x222xf32>
    %7 = vector.shape_cast %6 : vector<1x32x222xf32> to vector<32x222xf32>
    %c64 = arith.constant 64 : index
    %c0_9 = arith.constant 0 : index
    %8 = vector.load %arg6[%c64, %c0_9] : memref<288x222xf32, #tpu.memory_space<vmem>>, vector<32x222xf32>
    tpu.vector_store %arg6[%c64, %c0_9], %7 {strides = array<i32>} : memref<288x222xf32, #tpu.memory_space<vmem>>, vector<32x222xf32>,
    %c0_10 = arith.constant 0 : index
    %c0_11 = arith.constant 0 : index
    %c16 = arith.constant 16 : index
    %9 = vector.load %arg1[%c0_10, %c0_11, %c16] : memref<1x32x256xf32, #tpu.memory_space<vmem>>, vector<1x32x222xf32>
    %10 = vector.shape_cast %9 : vector<1x32x222xf32> to vector<32x222xf32>
    %c96 = arith.constant 96 : index
    %c0_12 = arith.constant 0 : index
    %11 = vector.load %arg6[%c96, %c0_12] : memref<288x222xf32, #tpu.memory_space<vmem>>, vector<32x222xf32>
    tpu.vector_store %arg6[%c96, %c0_12], %10 {strides = array<i32>} : memref<288x222xf32, #tpu.memory_space<vmem>>, vector<32x222xf32>,
    %c0_13 = arith.constant 0 : index
    %c0_14 = arith.constant 0 : index
    %c17 = arith.constant 17 : index
    %12 = vector.load %arg1[%c0_13, %c0_14, %c17] : memref<1x32x256xf32, #tpu.memory_space<vmem>>, vector<1x32x222xf32>
    %13 = vector.shape_cast %12 : vector<1x32x222xf32> to vector<32x222xf32>
    %c128 = arith.constant 128 : index
    %c0_15 = arith.constant 0 : index
    %14 = vector.load %arg6[%c128, %c0_15] : memref<288x222xf32, #tpu.memory_space<vmem>>, vector<32x222xf32>
    tpu.vector_store %arg6[%c128, %c0_15], %13 {strides = array<i32>} : memref<288x222xf32, #tpu.memory_space<vmem>>, vector<32x222xf32>,
    %c0_16 = arith.constant 0 : index
    %c0_17 = arith.constant 0 : index
    %c18 = arith.constant 18 : index
    %15 = vector.load %arg1[%c0_16, %c0_17, %c18] : memref<1x32x256xf32, #tpu.memory_space<vmem>>, vector<1x32x222xf32>
    %16 = vector.shape_cast %15 : vector<1x32x222xf32> to vector<32x222xf32>
    %c160 = arith.constant 160 : index
    %c0_18 = arith.constant 0 : index
    %17 = vector.load %arg6[%c160, %c0_18] : memref<288x222xf32, #tpu.memory_space<vmem>>, vector<32x222xf32>
    tpu.vector_store %arg6[%c160, %c0_18], %16 {strides = array<i32>} : memref<288x222xf32, #tpu.memory_space<vmem>>, vector<32x222xf32>,
    %c0_19 = arith.constant 0 : index
    %c0_20 = arith.constant 0 : index
    %c32_21 = arith.constant 32 : index
    %18 = vector.load %arg1[%c0_19, %c0_20, %c32_21] : memref<1x32x256xf32, #tpu.memory_space<vmem>>, vector<1x32x222xf32>
    %19 = vector.shape_cast %18 : vector<1x32x222xf32> to vector<32x222xf32>
    %c192 = arith.constant 192 : index
    %c0_22 = arith.constant 0 : index
    %20 = vector.load %arg6[%c192, %c0_22] : memref<288x222xf32, #tpu.memory_space<vmem>>, vector<32x222xf32>
    tpu.vector_store %arg6[%c192, %c0_22], %19 {strides = array<i32>} : memref<288x222xf32, #tpu.memory_space<vmem>>, vector<32x222xf32>,
    %c0_23 = arith.constant 0 : index
    %c0_24 = arith.constant 0 : index
    %c33 = arith.constant 33 : index
    %21 = vector.load %arg1[%c0_23, %c0_24, %c33] : memref<1x32x256xf32, #tpu.memory_space<vmem>>, vector<1x32x222xf32>
    %22 = vector.shape_cast %21 : vector<1x32x222xf32> to vector<32x222xf32>
    %c224 = arith.constant 224 : index
    %c0_25 = arith.constant 0 : index
    %23 = vector.load %arg6[%c224, %c0_25] : memref<288x222xf32, #tpu.memory_space<vmem>>, vector<32x222xf32>
    tpu.vector_store %arg6[%c224, %c0_25], %22 {strides = array<i32>} : memref<288x222xf32, #tpu.memory_space<vmem>>, vector<32x222xf32>,
    %c0_26 = arith.constant 0 : index
    %c0_27 = arith.constant 0 : index
    %c34 = arith.constant 34 : index
    %24 = vector.load %arg1[%c0_26, %c0_27, %c34] : memref<1x32x256xf32, #tpu.memory_space<vmem>>, vector<1x32x222xf32>
    %25 = vector.shape_cast %24 : vector<1x32x222xf32> to vector<32x222xf32>
    %c256 = arith.constant 256 : index
    %c0_28 = arith.constant 0 : index
    %26 = vector.load %arg6[%c256, %c0_28] : memref<288x222xf32, #tpu.memory_space<vmem>>, vector<32x222xf32>
    tpu.vector_store %arg6[%c256, %c0_28], %25 {strides = array<i32>} : memref<288x222xf32, #tpu.memory_space<vmem>>, vector<32x222xf32>,
    %c0_29 = arith.constant 0 : index
    %c0_30 = arith.constant 0 : index
    %27 = vector.load %arg2[%c0_29, %c0_30] : memref<64x288xf32, #tpu.memory_space<vmem>>, vector<64x288xf32>
    %c0_31 = arith.constant 0 : index
    %c0_32 = arith.constant 0 : index
    %28 = vector.load %arg6[%c0_31, %c0_32] : memref<288x222xf32, #tpu.memory_space<vmem>>, vector<288x222xf32>
    %cst = arith.constant dense<0.000000e+00> : vector<64x222xf32>
    %29 = tpu.matmul %27, %28, %cst {dimension_numbers = #tpu.dot_dimension_numbers<[1], [0], [0], [1], [0, 0, 1, 1], [], []>} : vector<64x288xf32>, vector<288x222xf32>, vector<64x222xf32> -> vector<64x222xf32>
    %c0_33 = arith.constant 0 : index
    %c0_34 = arith.constant 0 : index
    %30 = vector.load %arg3[%c0_33, %c0_34] : memref<64x1xf32, #tpu.memory_space<vmem>>, vector<64x1xf32>
    %31 = vector.broadcast %30 : vector<64x1xf32> to vector<64x222xf32>
    %32 = arith.addf %29, %31 : vector<64x222xf32>
    %cst_35 = arith.constant 0.000000e+00 : f32
    %33 = vector.broadcast %cst_35 : f32 to vector<64x222xf32>
    %34 = arith.maximumf %32, %33 : vector<64x222xf32>
    %c0_36 = arith.constant 0 : index
    %c0_37 = arith.constant 0 : index
    %35 = vector.load %arg7[%c0_36, %c0_37] : memref<64x222xf32, #tpu.memory_space<vmem>>, vector<64x222xf32>
    tpu.vector_store %arg7[%c0_36, %c0_37], %34 {strides = array<i32>} : memref<64x222xf32, #tpu.memory_space<vmem>>, vector<64x222xf32>,
    %c0_38 = arith.constant 0 : index
    %c0_39 = arith.constant 0 : index
    %36 = vector.load %arg7[%c0_38, %c0_39] : memref<64x222xf32, #tpu.memory_space<vmem>>, vector<64x205xf32>
    %c0_40 = arith.constant 0 : index
    %c1_41 = arith.constant 1 : index
    %37 = vector.load %arg7[%c0_40, %c1_41] : memref<64x222xf32, #tpu.memory_space<vmem>>, vector<64x205xf32>
    %38 = arith.maximumf %36, %37 : vector<64x205xf32>
    %c0_42 = arith.constant 0 : index
    %c16_43 = arith.constant 16 : index
    %39 = vector.load %arg7[%c0_42, %c16_43] : memref<64x222xf32, #tpu.memory_space<vmem>>, vector<64x205xf32>
    %c0_44 = arith.constant 0 : index
    %c17_45 = arith.constant 17 : index
    %40 = vector.load %arg7[%c0_44, %c17_45] : memref<64x222xf32, #tpu.memory_space<vmem>>, vector<64x205xf32>
    %41 = arith.maximumf %39, %40 : vector<64x205xf32>
    %42 = arith.maximumf %38, %41 : vector<64x205xf32>
    %43 = arith.truncf %42 : vector<64x205xf32> to vector<64x205xbf16>
    %c0_46 = arith.constant 0 : index
    %c0_47 = arith.constant 0 : index
    %44 = vector.load %arg4[%c0_46, %c0_47] : memref<205x49xbf16, #tpu.memory_space<vmem>>, vector<205x49xbf16>
    %cst_48 = arith.constant dense<0.000000e+00> : vector<64x49xf32>
    %45 = tpu.matmul %43, %44, %cst_48 {dimension_numbers = #tpu.dot_dimension_numbers<[1], [0], [0], [1], [0, 0, 1, 1], [], []>} : vector<64x205xbf16>, vector<205x49xbf16>, vector<64x49xf32> -> vector<64x49xf32>
    %c0_49 = arith.constant 0 : index
    %c0_50 = arith.constant 0 : index
    %c0_51 = arith.constant 0 : index
    %46 = vector.load %arg5[%c0_49, %c0_50, %c0_51] : memref<1x64x49xf32, #tpu.memory_space<vmem>>, vector<1x64x49xf32>
    %47 = vector.shape_cast %46 : vector<1x64x49xf32> to vector<64x49xf32>
    %48 = vector.shape_cast %45 : vector<64x49xf32> to vector<1x64x49xf32>
    tpu.vector_store %arg5[%c0_49, %c0_50, %c0_51], %48 {strides = array<i32>} : memref<1x64x49xf32, #tpu.memory_space<vmem>>, vector<1x64x49xf32>,
    return
  }
  func.func @transform_0(%arg0: i32) -> (i32, i32, i32) {
    %c0_i32 = arith.constant 0 : i32
    %c0_i32_0 = arith.constant 0 : i32
    %c0_i32_1 = arith.constant 0 : i32
    return %arg0, %c0_i32, %c0_i32_0 : i32, i32, i32
  }
  func.func @transform_1(%arg0: i32) -> (i32, i32) {
    %c0_i32 = arith.constant 0 : i32
    %c0_i32_0 = arith.constant 0 : i32
    %c0_i32_1 = arith.constant 0 : i32
    return %c0_i32, %c0_i32_0 : i32, i32
  }
  func.func @transform_2(%arg0: i32) -> (i32, i32) {
    %c0_i32 = arith.constant 0 : i32
    %c0_i32_0 = arith.constant 0 : i32
    %c0_i32_1 = arith.constant 0 : i32
    return %c0_i32, %c0_i32_0 : i32, i32
  }
  func.func @transform_3(%arg0: i32) -> (i32, i32) {
    %c0_i32 = arith.constant 0 : i32
    %c0_i32_0 = arith.constant 0 : i32
    %c0_i32_1 = arith.constant 0 : i32
    return %c0_i32, %c0_i32_0 : i32, i32
  }
  func.func @transform_4(%arg0: i32) -> (i32, i32, i32) {
    %c0_i32 = arith.constant 0 : i32
    %c0_i32_0 = arith.constant 0 : i32
    %c0_i32_1 = arith.constant 0 : i32
    return %arg0, %c0_i32, %c0_i32_0 : i32, i32, i32
  }
}

module attributes {stable_mosaic.version = 11 : i64} {
  func.func @_fc_fused_kernel(%arg0: i32, %arg1: memref<2x3136xf32, #tpu.memory_space<vmem>>, %arg2: memref<3136x128xbf16, #tpu.memory_space<vmem>>, %arg3: memref<1x128xf32, #tpu.memory_space<vmem>>, %arg4: memref<128x10xbf16, #tpu.memory_space<vmem>>, %arg5: memref<1x10xf32, #tpu.memory_space<vmem>>, %arg6: memref<2x10xf32, #tpu.memory_space<vmem>>) attributes {dimension_semantics = [#tpu.dimension_semantics<parallel>], iteration_bounds = array<i64: 1>, scalar_prefetch = 0 : i64, scratch_operands = 0 : i64, tpu.core_type = #tpu.core_type<tc>, window_params = [{transform_indices = @transform_0, window_bounds = array<i64: 2, 3136>}, {pipeline_mode = #tpu.pipeline_mode<synchronous>, transform_indices = @transform_1, window_bounds = array<i64: 3136, 128>}, {pipeline_mode = #tpu.pipeline_mode<synchronous>, transform_indices = @transform_2, window_bounds = array<i64: 1, 128>}, {pipeline_mode = #tpu.pipeline_mode<synchronous>, transform_indices = @transform_3, window_bounds = array<i64: 128, 10>}, {pipeline_mode = #tpu.pipeline_mode<synchronous>, transform_indices = @transform_4, window_bounds = array<i64: 1, 10>}, {transform_indices = @transform_5, window_bounds = array<i64: 2, 10>}]} {
    %c0 = arith.constant 0 : index
    %c0_0 = arith.constant 0 : index
    %0 = vector.load %arg1[%c0, %c0_0] : memref<2x3136xf32, #tpu.memory_space<vmem>>, vector<2x3136xf32>
    %1 = arith.truncf %0 : vector<2x3136xf32> to vector<2x3136xbf16>
    %c0_1 = arith.constant 0 : index
    %c0_2 = arith.constant 0 : index
    %2 = vector.load %arg2[%c0_1, %c0_2] : memref<3136x128xbf16, #tpu.memory_space<vmem>>, vector<3136x128xbf16>
    %cst = arith.constant dense<0.000000e+00> : vector<2x128xf32>
    %3 = tpu.matmul %1, %2, %cst {dimension_numbers = #tpu.dot_dimension_numbers<[1], [0], [0], [1], [0, 0, 1, 1], [], []>} : vector<2x3136xbf16>, vector<3136x128xbf16>, vector<2x128xf32> -> vector<2x128xf32>
    %c0_3 = arith.constant 0 : index
    %c0_4 = arith.constant 0 : index
    %4 = vector.load %arg3[%c0_3, %c0_4] : memref<1x128xf32, #tpu.memory_space<vmem>>, vector<1x128xf32>
    %5 = vector.broadcast %4 : vector<1x128xf32> to vector<2x128xf32>
    %6 = arith.addf %3, %5 : vector<2x128xf32>
    %cst_5 = arith.constant 0.000000e+00 : f32
    %7 = vector.broadcast %cst_5 : f32 to vector<2x128xf32>
    %8 = arith.maximumf %6, %7 : vector<2x128xf32>
    %9 = arith.truncf %8 : vector<2x128xf32> to vector<2x128xbf16>
    %c0_6 = arith.constant 0 : index
    %c0_7 = arith.constant 0 : index
    %10 = vector.load %arg4[%c0_6, %c0_7] : memref<128x10xbf16, #tpu.memory_space<vmem>>, vector<128x10xbf16>
    %cst_8 = arith.constant dense<0.000000e+00> : vector<2x10xf32>
    %11 = tpu.matmul %9, %10, %cst_8 {dimension_numbers = #tpu.dot_dimension_numbers<[1], [0], [0], [1], [0, 0, 1, 1], [], []>} : vector<2x128xbf16>, vector<128x10xbf16>, vector<2x10xf32> -> vector<2x10xf32>
    %c0_9 = arith.constant 0 : index
    %c0_10 = arith.constant 0 : index
    %12 = vector.load %arg5[%c0_9, %c0_10] : memref<1x10xf32, #tpu.memory_space<vmem>>, vector<1x10xf32>
    %13 = vector.broadcast %12 : vector<1x10xf32> to vector<2x10xf32>
    %14 = arith.addf %11, %13 : vector<2x10xf32>
    %c0_11 = arith.constant 0 : index
    %c0_12 = arith.constant 0 : index
    %15 = vector.load %arg6[%c0_11, %c0_12] : memref<2x10xf32, #tpu.memory_space<vmem>>, vector<2x10xf32>
    tpu.vector_store %arg6[%c0_11, %c0_12], %14 {strides = array<i32>} : memref<2x10xf32, #tpu.memory_space<vmem>>, vector<2x10xf32>,
    return
  }
  func.func @transform_0(%arg0: i32) -> (i32, i32) {
    %c0_i32 = arith.constant 0 : i32
    %c0_i32_0 = arith.constant 0 : i32
    return %arg0, %c0_i32 : i32, i32
  }
  func.func @transform_1(%arg0: i32) -> (i32, i32) {
    %c0_i32 = arith.constant 0 : i32
    %c0_i32_0 = arith.constant 0 : i32
    %c0_i32_1 = arith.constant 0 : i32
    return %c0_i32, %c0_i32_0 : i32, i32
  }
  func.func @transform_2(%arg0: i32) -> (i32, i32) {
    %c0_i32 = arith.constant 0 : i32
    %c0_i32_0 = arith.constant 0 : i32
    %c0_i32_1 = arith.constant 0 : i32
    return %c0_i32, %c0_i32_0 : i32, i32
  }
  func.func @transform_3(%arg0: i32) -> (i32, i32) {
    %c0_i32 = arith.constant 0 : i32
    %c0_i32_0 = arith.constant 0 : i32
    %c0_i32_1 = arith.constant 0 : i32
    return %c0_i32, %c0_i32_0 : i32, i32
  }
  func.func @transform_4(%arg0: i32) -> (i32, i32) {
    %c0_i32 = arith.constant 0 : i32
    %c0_i32_0 = arith.constant 0 : i32
    %c0_i32_1 = arith.constant 0 : i32
    return %c0_i32, %c0_i32_0 : i32, i32
  }
  func.func @transform_5(%arg0: i32) -> (i32, i32) {
    %c0_i32 = arith.constant 0 : i32
    %c0_i32_0 = arith.constant 0 : i32
    return %arg0, %c0_i32 : i32, i32
  }
}

</mosaic_0001>

<llo_original>
// kernel: net_forward.4
$region0: #{net_forward.4}
  #allocation0 [shape = 'u32[]', space=smem, size = 0x4, offset = 0x4, fixed_abs, tag = 'smem constant byte address 0x4 - core index']
  #allocation1 [shape = 'u32[72,128]{1,0:T(1,128)}', space=vmem, size = 0x9000, scoped, tag = 'internal scratch']
  #allocation2 [shape = 'f32[288,222]{1,0:T(8,128)}', space=vmem, size = 0x48000, scoped, tag = 'scratch operand']
  #allocation3 [shape = 'f32[64,222]{1,0:T(8,128)}', space=vmem, size = 0x10000, scoped, tag = 'scratch operand']
  %s0 = inlined_call_operand.vmem [shape: f32[2,32,256], index: 0, kind: input, shape index: {}]
  %s1 = inlined_call_operand.vmem [shape: f32[64,288], index: 1, kind: input, shape index: {}]
  %s2 = inlined_call_operand.vmem [shape: f32[64,1], index: 2, kind: input, shape index: {}]
  %s3 = inlined_call_operand.vmem [shape: bf16[205,49], index: 3, kind: input, shape index: {}]
  %s4 = inlined_call_operand.vmem [shape: f32[2,64,49], index: 4, kind: output, shape index: {}]
  %s5 = sld [smem:[#allocation0]]
  $region49: #{net_forward.4} parent=0
    _
  %s7 = ssub.s32 1, %s5
  %s8 = scalar_select 0, %s7, %s5
  loop: start=0, step=1, limit=4
  $region2: #{net_forward.4} parent=0 // loop_pre_header
    _
  $region3: #{net_forward.4} parent=0 // loop_header
    %s10 = sphi 0, %s14
    %p11 = scmp.ge.s32.totalorder %s10, 4
    %s20 = sphi 0, %s22
    %s23 = sphi 0, %s20
    %s24 = sphi 0, %s23
    %s40 = sphi 0, %s24
    %s44 = sphi 0, %s44
    %s46 = sphi 0, %s44
    %s47 = sphi 0, %s46
    %s61 = sphi 0, %s47
    %s65 = sphi 0, %s65
    %s67 = sphi 0, %s65
    %s68 = sphi 0, %s67
    %s82 = sphi 0, %s68
    %s86 = sphi 0, %s86
    %s88 = sphi 0, %s86
    %s89 = sphi 0, %s88
    %s103 = sphi 0, %s89
    %s109 = sphi 0, %s111
    %s112 = sphi 0, %s109
    %s113 = sphi 0, %s112
    %s129 = sphi 0, %s113
  $region4: #{net_forward.4} parent=0 // loop_header_branch
    %13 = sbr.rel (%p11) target = $region8
  $region5: #{net_forward.4} parent=0 // loop_body
    %s15 = ssub.s32 %s10, 1
    %s16 = ssub.s32 %s10, 2
    %s17 = sadd.s32 %s10, 1
    %s18 = ssub.s32 %s10, %s17
    %p19 = scmp.eq.s32.totalorder %s18, 0
    %s21 = sadd.s32 %s20, 1
    %s22 = scalar_select %p19, %s20, %s21
    %p25 = pneg %p19
    %p26 = scmp.eq.s32.totalorder %s10, 1
    %p27 = por %p25, %p26
    %p28 = scmp.ne.s32.totalorder %s20, %s23
    %p29 = scmp.eq.s32.totalorder %s10, 0
    %p30 = por %p28, %p29
    %p31 = scmp.ne.s32.totalorder %s20, %s23
    %p32 = scmp.eq.s32.totalorder %s15, 1
    %p33 = por %p31, %p32
    %p34 = scmp.ne.s32.totalorder %s23, %s24
    %p35 = scmp.eq.s32.totalorder %s15, 0
    %p36 = por %p34, %p35
    %p37 = scmp.ne.s32.totalorder %s23, %s24
    %p38 = scmp.eq.s32.totalorder %s16, 1
    %p39 = por %p37, %p38
    %p41 = scmp.ne.s32.totalorder %s24, %s40
    %p42 = scmp.eq.s32.totalorder %s16, 0
    %p43 = por %p41, %p42
    %s45 = sadd.s32 %s44, 1
    %p48 = scmp.eq.s32.totalorder %s10, 1
    %p49 = scmp.ne.s32.totalorder %s44, %s46
    %p50 = scmp.eq.s32.totalorder %s10, 0
    %p51 = por %p49, %p50
    %p52 = scmp.ne.s32.totalorder %s44, %s46
    %p53 = scmp.eq.s32.totalorder %s15, 1
    %p54 = por %p52, %p53
    %p55 = scmp.ne.s32.totalorder %s46, %s47
    %p56 = scmp.eq.s32.totalorder %s15, 0
    %p57 = por %p55, %p56
    %p58 = scmp.ne.s32.totalorder %s46, %s47
    %p59 = scmp.eq.s32.totalorder %s16, 1
    %p60 = por %p58, %p59
    %p62 = scmp.ne.s32.totalorder %s47, %s61
    %p63 = scmp.eq.s32.totalorder %s16, 0
    %p64 = por %p62, %p63
    %s66 = sadd.s32 %s65, 1
    %p69 = scmp.eq.s32.totalorder %s10, 1
    %p70 = scmp.ne.s32.totalorder %s65, %s67
    %p71 = scmp.eq.s32.totalorder %s10, 0
    %p72 = por %p70, %p71
    %p73 = scmp.ne.s32.totalorder %s65, %s67
    %p74 = scmp.eq.s32.totalorder %s15, 1
    %p75 = por %p73, %p74
    %p76 = scmp.ne.s32.totalorder %s67, %s68
    %p77 = scmp.eq.s32.totalorder %s15, 0
    %p78 = por %p76, %p77
    %p79 = scmp.ne.s32.totalorder %s67, %s68
    %p80 = scmp.eq.s32.totalorder %s16, 1
    %p81 = por %p79, %p80
    %p83 = scmp.ne.s32.totalorder %s68, %s82
    %p84 = scmp.eq.s32.totalorder %s16, 0
    %p85 = por %p83, %p84
    %s87 = sadd.s32 %s86, 1
    %p90 = scmp.eq.s32.totalorder %s10, 1
    %p91 = scmp.ne.s32.totalorder %s86, %s88
    %p92 = scmp.eq.s32.totalorder %s10, 0
    %p93 = por %p91, %p92
    %p94 = scmp.ne.s32.totalorder %s86, %s88
    %p95 = scmp.eq.s32.totalorder %s15, 1
    %p96 = por %p94, %p95
    %p97 = scmp.ne.s32.totalorder %s88, %s89
    %p98 = scmp.eq.s32.totalorder %s15, 0
    %p99 = por %p97, %p98
    %p100 = scmp.ne.s32.totalorder %s88, %s89
    %p101 = scmp.eq.s32.totalorder %s16, 1
    %p102 = por %p100, %p101
    %p104 = scmp.ne.s32.totalorder %s89, %s103
    %p105 = scmp.eq.s32.totalorder %s16, 0
    %p106 = por %p104, %p105
    %s107 = ssub.s32 %s10, %s17
    %p108 = scmp.eq.s32.totalorder %s107, 0
    %s110 = sadd.s32 %s109, 1
    %s111 = scalar_select %p108, %s109, %s110
    %p114 = pneg %p108
    %p115 = scmp.eq.s32.totalorder %s10, 1
    %p116 = por %p114, %p115
    %p117 = scmp.ne.s32.totalorder %s109, %s112
    %p118 = scmp.eq.s32.totalorder %s10, 0
    %p119 = por %p117, %p118
    %p120 = scmp.ne.s32.totalorder %s109, %s112
    %p121 = scmp.eq.s32.totalorder %s15, 1
    %p122 = por %p120, %p121
    %p123 = scmp.ne.s32.totalorder %s112, %s113
    %p124 = scmp.eq.s32.totalorder %s15, 0
    %p125 = por %p123, %p124
    %p126 = scmp.ne.s32.totalorder %s112, %s113
    %p127 = scmp.eq.s32.totalorder %s16, 1
    %p128 = por %p126, %p127
    %p130 = scmp.ne.s32.totalorder %s113, %s129
    %p131 = scmp.eq.s32.totalorder %s16, 0
    %p132 = por %p130, %p131
    %p133 = scmp.le.s32.totalorder 1, %s10
    %p134 = scmp.lt.s32.totalorder %s10, 3
    %p135 = pnand %p133, %p134
    %p136 = pneg %p135
    // Predicated region
    $region9: #{net_forward.4} parent=5 // pred_check
      _
    $region10: #{net_forward.4} parent=5 // pred_check_branch
      %138 = sbr.rel (%p135) target = $region12
    $region11: #{net_forward.4} parent=5 // pred_region
      %s139 = ssub.s32 %s10, 1
      // Predicated region
      $region13: #{net_forward.4} parent=11 // pred_check
        %p140 = pneg %p57
      $region14: #{net_forward.4} parent=11 // pred_check_branch
        %142 = sbr.rel (%p140) target = $region16
      $region15: #{net_forward.4} parent=11 // pred_region
        _
      $region16: #{net_forward.4} parent=11 // pred_fallthru
        _
      // Predicated region
      $region17: #{net_forward.4} parent=11 // pred_check
        %p143 = pneg %p78
      $region18: #{net_forward.4} parent=11 // pred_check_branch
        %145 = sbr.rel (%p143) target = $region20
      $region19: #{net_forward.4} parent=11 // pred_region
        _
      $region20: #{net_forward.4} parent=11 // pred_fallthru
        _
      // Predicated region
      $region21: #{net_forward.4} parent=11 // pred_check
        %p146 = pneg %p99
      $region22: #{net_forward.4} parent=11 // pred_check_branch
        %148 = sbr.rel (%p146) target = $region24
      $region23: #{net_forward.4} parent=11 // pred_region
        _
      $region24: #{net_forward.4} parent=11 // pred_fallthru
        _
    $region12: #{net_forward.4} parent=5 // pred_fallthru
      _
    %p149 = scmp.lt.s32.totalorder %s10, 2
    // Predicated region
    $region25: #{net_forward.4} parent=5 // pred_check
      %p150 = pneg %p149
    $region26: #{net_forward.4} parent=5 // pred_check_branch
      %152 = sbr.rel (%p150) target = $region28
    $region27: #{net_forward.4} parent=5 // pred_region
      // Predicated region
      $region29: #{net_forward.4} parent=27 // pred_check
        %p153 = pneg %p30
      $region30: #{net_forward.4} parent=27 // pred_check_branch
        %155 = sbr.rel (%p153) target = $region32
      $region31: #{net_forward.4} parent=27 // pred_region
        %p156 = scmp.lt.s32.totalorder %s10, 1
        %s157 = scalar_select %p156, %s10, 1
        %s158 = smul.addr %s157, 8
        %s159 = smul.addr %s158, 8
        %s160 = scalar_lea.vmem %s0, %s159
      $region32: #{net_forward.4} parent=27 // pred_fallthru
        _
    $region28: #{net_forward.4} parent=5 // pred_fallthru
      _
    %p161 = scmp.le.s32.totalorder 1, %s10
    %p162 = scmp.lt.s32.totalorder %s10, 3
    %p163 = pnand %p161, %p162
    %p164 = pneg %p163
    // Predicated region
    $region33: #{net_forward.4} parent=5 // pred_check
      _
    $region34: #{net_forward.4} parent=5 // pred_check_branch
      %166 = sbr.rel (%p163) target = $region36
    $region35: #{net_forward.4} parent=5 // pred_region
      %s167 = ssub.s32 %s10, 1
      %p168 = scmp.lt.s32.totalorder %s15, 1
      %s169 = scalar_select %p168, %s15, 1
      %s170 = smul.addr %s169, 8
      %s171 = smul.addr %s170, 8
      %s172 = scalar_lea.vmem %s0, %s171
      %p173 = pneg %p36
      %p174 = pneg %p33
      %p175 = pneg %p57
      %p176 = pneg %p54
      %p177 = pneg %p78
      %p178 = pneg %p75
      %p179 = pneg %p99
      %p180 = pneg %p96
      %p181 = pneg %p125
      %p182 = pneg %p122
      %p183 = scmp.lt.s32.totalorder %s15, 1
      %s184 = scalar_select %p183, %s15, 1
      %s185 = smul.addr %s184, 8
      %s186 = smul.addr %s185, 8
      %s187 = scalar_lea.vmem %s4, %s186
      %p188 = scmp.lt.s32.totalorder %s15, 1
      %s189 = scalar_select %p188, %s15, 1
      %s190 = smul.addr %s189, 8
      %s191 = smul.addr %s190, 8
      %s192 = scalar_lea.vmem %s0, %s191
      %p193 = scmp.lt.s32.totalorder %s15, 1
      %s194 = scalar_select %p193, %s15, 1
      %s195 = smul.addr %s194, 8
      %s196 = smul.addr %s195, 8
      %s197 = scalar_lea.vmem %s4, %s196
      %v199 = vld [vmem:[%s192] sm:$0xff]
      %v200 = vld [vmem:[%s192 + $0x8] sm:$0xff]
      %v201 = vld [vmem:[%s192 + $0x10] sm:$0xff]
      %v202 = vld [vmem:[%s192 + $0x18] sm:$0xff]
      %v203 = vld [vmem:[%s192 + $0x20] sm:$0xff]
      %v204 = vld [vmem:[%s192 + $0x28] sm:$0xff]
      %v205 = vld [vmem:[%s192 + $0x30] sm:$0xff]
      %v206 = vld [vmem:[%s192 + $0x38] sm:$0xff]
      %207 = vst [vmem:[#allocation2] sm:$0xff] %v199
      %vm208 = vcmask 769024
      %209 = vst.msk [vmem:[#allocation2 + $0x8] sm:$0xff] %vm208, %v200
      %210 = vst [vmem:[#allocation2 + $0x10] sm:$0xff] %v201
      %211 = vst.msk [vmem:[#allocation2 + $0x18] sm:$0xff] %vm208, %v202
      %212 = vst [vmem:[#allocation2 + $0x20] sm:$0xff] %v203
      %213 = vst.msk [vmem:[#allocation2 + $0x28] sm:$0xff] %vm208, %v204
      %214 = vst [vmem:[#allocation2 + $0x30] sm:$0xff] %v205
      %215 = vst.msk [vmem:[#allocation2 + $0x38] sm:$0xff] %vm208, %v206
      %v216 = vld [vmem:[%s192] sm:$0xff]
      %v217 = vld [vmem:[%s192 + $0x8] sm:$0xff]
      %v218 = vld [vmem:[%s192 + $0x10] sm:$0xff]
      %v219 = vld [vmem:[%s192 + $0x18] sm:$0xff]
      %v220 = vld [vmem:[%s192 + $0x20] sm:$0xff]
      %v221 = vld [vmem:[%s192 + $0x28] sm:$0xff]
      %v222 = vld [vmem:[%s192 + $0x30] sm:$0xff]
      %v223 = vld [vmem:[%s192 + $0x38] sm:$0xff]
      %232 = vrot.lane.b32.xlu0 %v216, 127
      %v233 = vpop.permute.xlu0 %232
      %234 = vrot.lane.b32.xlu0 %v217, 127
      %v235 = vpop.permute.xlu0 %234
      %236 = vrot.lane.b32.xlu0 %v218, 127
      %v237 = vpop.permute.xlu0 %236
      %238 = vrot.lane.b32.xlu0 %v219, 127
      %v239 = vpop.permute.xlu0 %238
      %240 = vrot.lane.b32.xlu0 %v220, 127
      %v241 = vpop.permute.xlu0 %240
      %242 = vrot.lane.b32.xlu0 %v221, 127
      %v243 = vpop.permute.xlu0 %242
      %244 = vrot.lane.b32.xlu0 %v222, 127
      %v245 = vpop.permute.xlu0 %244
      %246 = vrot.lane.b32.xlu0 %v223, 127
      %v247 = vpop.permute.xlu0 %246
      %vm248 = vcmask 1039360
      %v249 = vsel %vm248, %v233, %v235
      %v250 = vsel %vm248, %v237, %v239
      %v251 = vsel %vm248, %v241, %v243
      %v252 = vsel %vm248, %v245, %v247
      %261 = vst [vmem:[#allocation2 + $0x40] sm:$0xff] %v249
      %262 = vst.msk [vmem:[#allocation2 + $0x48] sm:$0xff] %vm208, %v235
      %263 = vst [vmem:[#allocation2 + $0x50] sm:$0xff] %v250
      %264 = vst.msk [vmem:[#allocation2 + $0x58] sm:$0xff] %vm208, %v239
      %265 = vst [vmem:[#allocation2 + $0x60] sm:$0xff] %v251
      %266 = vst.msk [vmem:[#allocation2 + $0x68] sm:$0xff] %vm208, %v243
      %267 = vst [vmem:[#allocation2 + $0x70] sm:$0xff] %v252
      %268 = vst.msk [vmem:[#allocation2 + $0x78] sm:$0xff] %vm208, %v247
      %v269 = vld [vmem:[%s192] sm:$0xff]
      %v270 = vld [vmem:[%s192 + $0x8] sm:$0xff]
      %v271 = vld [vmem:[%s192 + $0x10] sm:$0xff]
      %v272 = vld [vmem:[%s192 + $0x18] sm:$0xff]
      %v273 = vld [vmem:[%s192 + $0x20] sm:$0xff]
      %v274 = vld [vmem:[%s192 + $0x28] sm:$0xff]
      %v275 = vld [vmem:[%s192 + $0x30] sm:$0xff]
      %v276 = vld [vmem:[%s192 + $0x38] sm:$0xff]
      %285 = vrot.lane.b32.xlu0 %v269, 126
      %v286 = vpop.permute.xlu0 %285
      %287 = vrot.lane.b32.xlu0 %v270, 126
      %v288 = vpop.permute.xlu0 %287
      %289 = vrot.lane.b32.xlu0 %v271, 126
      %v290 = vpop.permute.xlu0 %289
      %291 = vrot.lane.b32.xlu0 %v272, 126
      %v292 = vpop.permute.xlu0 %291
      %293 = vrot.lane.b32.xlu0 %v273, 126
      %v294 = vpop.permute.xlu0 %293
      %295 = vrot.lane.b32.xlu0 %v274, 126
      %v296 = vpop.permute.xlu0 %295
      %297 = vrot.lane.b32.xlu0 %v275, 126
      %v298 = vpop.permute.xlu0 %297
      %299 = vrot.lane.b32.xlu0 %v276, 126
      %v300 = vpop.permute.xlu0 %299
      %vm301 = vcmask 1031168
      %v302 = vsel %vm301, %v286, %v288
      %v303 = vsel %vm301, %v290, %v292
      %v304 = vsel %vm301, %v294, %v296
      %v305 = vsel %vm301, %v298, %v300
      %314 = vst [vmem:[#allocation2 + $0x80] sm:$0xff] %v302
      %315 = vst.msk [vmem:[#allocation2 + $0x88] sm:$0xff] %vm208, %v288
      %316 = vst [vmem:[#allocation2 + $0x90] sm:$0xff] %v303
      %317 = vst.msk [vmem:[#allocation2 + $0x98] sm:$0xff] %vm208, %v292
      %318 = vst [vmem:[#allocation2 + $0xa0] sm:$0xff] %v304
      %319 = vst.msk [vmem:[#allocation2 + $0xa8] sm:$0xff] %vm208, %v296
      %320 = vst [vmem:[#allocation2 + $0xb0] sm:$0xff] %v305
      %321 = vst.msk [vmem:[#allocation2 + $0xb8] sm:$0xff] %vm208, %v300
      %v322 = vld [vmem:[%s192] sm:$0xff]
      %v323 = vld [vmem:[%s192 + $0x8] sm:$0xff]
      %v324 = vld [vmem:[%s192 + $0x10] sm:$0xff]
      %v325 = vld [vmem:[%s192 + $0x18] sm:$0xff]
      %v326 = vld [vmem:[%s192 + $0x20] sm:$0xff]
      %v327 = vld [vmem:[%s192 + $0x28] sm:$0xff]
      %v328 = vld [vmem:[%s192 + $0x30] sm:$0xff]
      %v329 = vld [vmem:[%s192 + $0x38] sm:$0xff]
      %338 = vrot.lane.b32.xlu0 %v322, 112
      %v339 = vpop.permute.xlu0 %338
      %340 = vrot.lane.b32.xlu0 %v323, 112
      %v341 = vpop.permute.xlu0 %340
      %342 = vrot.lane.b32.xlu0 %v324, 112
      %v343 = vpop.permute.xlu0 %342
      %344 = vrot.lane.b32.xlu0 %v325, 112
      %v345 = vpop.permute.xlu0 %344
      %346 = vrot.lane.b32.xlu0 %v326, 112
      %v347 = vpop.permute.xlu0 %346
      %348 = vrot.lane.b32.xlu0 %v327, 112
      %v349 = vpop.permute.xlu0 %348
      %350 = vrot.lane.b32.xlu0 %v328, 112
      %v351 = vpop.permute.xlu0 %350
      %352 = vrot.lane.b32.xlu0 %v329, 112
      %v353 = vpop.permute.xlu0 %352
      %vm354 = vcmask 916480
      %v355 = vsel %vm354, %v339, %v341
      %v356 = vsel %vm354, %v343, %v345
      %v357 = vsel %vm354, %v347, %v349
      %v358 = vsel %vm354, %v351, %v353
      %367 = vst [vmem:[#allocation2 + $0xc0] sm:$0xff] %v355
      %368 = vst.msk [vmem:[#allocation2 + $0xc8] sm:$0xff] %vm208, %v341
      %369 = vst [vmem:[#allocation2 + $0xd0] sm:$0xff] %v356
      %370 = vst.msk [vmem:[#allocation2 + $0xd8] sm:$0xff] %vm208, %v345
      %371 = vst [vmem:[#allocation2 + $0xe0] sm:$0xff] %v357
      %372 = vst.msk [vmem:[#allocation2 + $0xe8] sm:$0xff] %vm208, %v349
      %373 = vst [vmem:[#allocation2 + $0xf0] sm:$0xff] %v358
      %374 = vst.msk [vmem:[#allocation2 + $0xf8] sm:$0xff] %vm208, %v353
      %v375 = vld [vmem:[%s192] sm:$0xff]
      %v376 = vld [vmem:[%s192 + $0x8] sm:$0xff]
      %v377 = vld [vmem:[%s192 + $0x10] sm:$0xff]
      %v378 = vld [vmem:[%s192 + $0x18] sm:$0xff]
      %v379 = vld [vmem:[%s192 + $0x20] sm:$0xff]
      %v380 = vld [vmem:[%s192 + $0x28] sm:$0xff]
      %v381 = vld [vmem:[%s192 + $0x30] sm:$0xff]
      %v382 = vld [vmem:[%s192 + $0x38] sm:$0xff]
      %391 = vrot.lane.b32.xlu0 %v375, 111
      %v392 = vpop.permute.xlu0 %391
      %393 = vrot.lane.b32.xlu0 %v376, 111
      %v394 = vpop.permute.xlu0 %393
      %395 = vrot.lane.b32.xlu0 %v377, 111
      %v396 = vpop.permute.xlu0 %395
      %397 = vrot.lane.b32.xlu0 %v378, 111
      %v398 = vpop.permute.xlu0 %397
      %399 = vrot.lane.b32.xlu0 %v379, 111
      %v400 = vpop.permute.xlu0 %399
      %401 = vrot.lane.b32.xlu0 %v380, 111
      %v402 = vpop.permute.xlu0 %401
      %403 = vrot.lane.b32.xlu0 %v381, 111
      %v404 = vpop.permute.xlu0 %403
      %405 = vrot.lane.b32.xlu0 %v382, 111
      %v406 = vpop.permute.xlu0 %405
      %vm407 = vcmask 908288
      %v408 = vsel %vm407, %v392, %v394
      %v409 = vsel %vm407, %v396, %v398
      %v410 = vsel %vm407, %v400, %v402
      %v411 = vsel %vm407, %v404, %v406
      %420 = vst [vmem:[#allocation2 + $0x100] sm:$0xff] %v408
      %421 = vst.msk [vmem:[#allocation2 + $0x108] sm:$0xff] %vm208, %v394
      %422 = vst [vmem:[#allocation2 + $0x110] sm:$0xff] %v409
      %423 = vst.msk [vmem:[#allocation2 + $0x118] sm:$0xff] %vm208, %v398
      %424 = vst [vmem:[#allocation2 + $0x120] sm:$0xff] %v410
      %425 = vst.msk [vmem:[#allocation2 + $0x128] sm:$0xff] %vm208, %v402
      %426 = vst [vmem:[#allocation2 + $0x130] sm:$0xff] %v411
      %427 = vst.msk [vmem:[#allocation2 + $0x138] sm:$0xff] %vm208, %v406
      %v428 = vld [vmem:[%s192] sm:$0xff]
      %v429 = vld [vmem:[%s192 + $0x8] sm:$0xff]
      %v430 = vld [vmem:[%s192 + $0x10] sm:$0xff]
      %v431 = vld [vmem:[%s192 + $0x18] sm:$0xff]
      %v432 = vld [vmem:[%s192 + $0x20] sm:$0xff]
      %v433 = vld [vmem:[%s192 + $0x28] sm:$0xff]
      %v434 = vld [vmem:[%s192 + $0x30] sm:$0xff]
      %v435 = vld [vmem:[%s192 + $0x38] sm:$0xff]
      %444 = vrot.lane.b32.xlu0 %v428, 110
      %v445 = vpop.permute.xlu0 %444
      %446 = vrot.lane.b32.xlu0 %v429, 110
      %v447 = vpop.permute.xlu0 %446
      %448 = vrot.lane.b32.xlu0 %v430, 110
      %v449 = vpop.permute.xlu0 %448
      %450 = vrot.lane.b32.xlu0 %v431, 110
      %v451 = vpop.permute.xlu0 %450
      %452 = vrot.lane.b32.xlu0 %v432, 110
      %v453 = vpop.permute.xlu0 %452
      %454 = vrot.lane.b32.xlu0 %v433, 110
      %v455 = vpop.permute.xlu0 %454
      %456 = vrot.lane.b32.xlu0 %v434, 110
      %v457 = vpop.permute.xlu0 %456
      %458 = vrot.lane.b32.xlu0 %v435, 110
      %v459 = vpop.permute.xlu0 %458
      %vm460 = vcmask 900096
      %v461 = vsel %vm460, %v445, %v447
      %v462 = vsel %vm460, %v449, %v451
      %v463 = vsel %vm460, %v453, %v455
      %v464 = vsel %vm460, %v457, %v459
      %473 = vst [vmem:[#allocation2 + $0x140] sm:$0xff] %v461
      %474 = vst.msk [vmem:[#allocation2 + $0x148] sm:$0xff] %vm208, %v447
      %475 = vst [vmem:[#allocation2 + $0x150] sm:$0xff] %v462
      %476 = vst.msk [vmem:[#allocation2 + $0x158] sm:$0xff] %vm208, %v451
      %477 = vst [vmem:[#allocation2 + $0x160] sm:$0xff] %v463
      %478 = vst.msk [vmem:[#allocation2 + $0x168] sm:$0xff] %vm208, %v455
      %479 = vst [vmem:[#allocation2 + $0x170] sm:$0xff] %v464
      %480 = vst.msk [vmem:[#allocation2 + $0x178] sm:$0xff] %vm208, %v459
      %v481 = vld [vmem:[%s192] sm:$0xff]
      %v482 = vld [vmem:[%s192 + $0x8] sm:$0xff]
      %v483 = vld [vmem:[%s192 + $0x10] sm:$0xff]
      %v484 = vld [vmem:[%s192 + $0x18] sm:$0xff]
      %v485 = vld [vmem:[%s192 + $0x20] sm:$0xff]
      %v486 = vld [vmem:[%s192 + $0x28] sm:$0xff]
      %v487 = vld [vmem:[%s192 + $0x30] sm:$0xff]
      %v488 = vld [vmem:[%s192 + $0x38] sm:$0xff]
      %497 = vrot.lane.b32.xlu0 %v481, 96
      %v498 = vpop.permute.xlu0 %497
      %499 = vrot.lane.b32.xlu0 %v482, 96
      %v500 = vpop.permute.xlu0 %499
      %501 = vrot.lane.b32.xlu0 %v483, 96
      %v502 = vpop.permute.xlu0 %501
      %503 = vrot.lane.b32.xlu0 %v484, 96
      %v504 = vpop.permute.xlu0 %503
      %505 = vrot.lane.b32.xlu0 %v485, 96
      %v506 = vpop.permute.xlu0 %505
      %507 = vrot.lane.b32.xlu0 %v486, 96
      %v508 = vpop.permute.xlu0 %507
      %509 = vrot.lane.b32.xlu0 %v487, 96
      %v510 = vpop.permute.xlu0 %509
      %511 = vrot.lane.b32.xlu0 %v488, 96
      %v512 = vpop.permute.xlu0 %511
      %vm513 = vcmask 785408
      %v514 = vsel %vm513, %v498, %v500
      %v515 = vsel %vm513, %v502, %v504
      %v516 = vsel %vm513, %v506, %v508
      %v517 = vsel %vm513, %v510, %v512
      %526 = vst [vmem:[#allocation2 + $0x180] sm:$0xff] %v514
      %527 = vst.msk [vmem:[#allocation2 + $0x188] sm:$0xff] %vm208, %v500
      %528 = vst [vmem:[#allocation2 + $0x190] sm:$0xff] %v515
      %529 = vst.msk [vmem:[#allocation2 + $0x198] sm:$0xff] %vm208, %v504
      %530 = vst [vmem:[#allocation2 + $0x1a0] sm:$0xff] %v516
      %531 = vst.msk [vmem:[#allocation2 + $0x1a8] sm:$0xff] %vm208, %v508
      %532 = vst [vmem:[#allocation2 + $0x1b0] sm:$0xff] %v517
      %533 = vst.msk [vmem:[#allocation2 + $0x1b8] sm:$0xff] %vm208, %v512
      %v534 = vld [vmem:[%s192] sm:$0xff]
      %v535 = vld [vmem:[%s192 + $0x8] sm:$0xff]
      %v536 = vld [vmem:[%s192 + $0x10] sm:$0xff]
      %v537 = vld [vmem:[%s192 + $0x18] sm:$0xff]
      %v538 = vld [vmem:[%s192 + $0x20] sm:$0xff]
      %v539 = vld [vmem:[%s192 + $0x28] sm:$0xff]
      %v540 = vld [vmem:[%s192 + $0x30] sm:$0xff]
      %v541 = vld [vmem:[%s192 + $0x38] sm:$0xff]
      %550 = vrot.lane.b32.xlu0 %v534, 95
      %v551 = vpop.permute.xlu0 %550
      %552 = vrot.lane.b32.xlu0 %v535, 95
      %v553 = vpop.permute.xlu0 %552
      %554 = vrot.lane.b32.xlu0 %v536, 95
      %v555 = vpop.permute.xlu0 %554
      %556 = vrot.lane.b32.xlu0 %v537, 95
      %v557 = vpop.permute.xlu0 %556
      %558 = vrot.lane.b32.xlu0 %v538, 95
      %v559 = vpop.permute.xlu0 %558
      %560 = vrot.lane.b32.xlu0 %v539, 95
      %v561 = vpop.permute.xlu0 %560
      %562 = vrot.lane.b32.xlu0 %v540, 95
      %v563 = vpop.permute.xlu0 %562
      %564 = vrot.lane.b32.xlu0 %v541, 95
      %v565 = vpop.permute.xlu0 %564
      %vm566 = vcmask 777216
      %v567 = vsel %vm566, %v551, %v553
      %v568 = vsel %vm566, %v555, %v557
      %v569 = vsel %vm566, %v559, %v561
      %v570 = vsel %vm566, %v563, %v565
      %579 = vst [vmem:[#allocation2 + $0x1c0] sm:$0xff] %v567
      %580 = vst.msk [vmem:[#allocation2 + $0x1c8] sm:$0xff] %vm208, %v553
      %581 = vst [vmem:[#allocation2 + $0x1d0] sm:$0xff] %v568
      %582 = vst.msk [vmem:[#allocation2 + $0x1d8] sm:$0xff] %vm208, %v557
      %583 = vst [vmem:[#allocation2 + $0x1e0] sm:$0xff] %v569
      %584 = vst.msk [vmem:[#allocation2 + $0x1e8] sm:$0xff] %vm208, %v561
      %585 = vst [vmem:[#allocation2 + $0x1f0] sm:$0xff] %v570
      %586 = vst.msk [vmem:[#allocation2 + $0x1f8] sm:$0xff] %vm208, %v565
      %v587 = vld [vmem:[%s192] sm:$0xff]
      %v588 = vld [vmem:[%s192 + $0x8] sm:$0xff]
      %v589 = vld [vmem:[%s192 + $0x10] sm:$0xff]
      %v590 = vld [vmem:[%s192 + $0x18] sm:$0xff]
      %v591 = vld [vmem:[%s192 + $0x20] sm:$0xff]
      %v592 = vld [vmem:[%s192 + $0x28] sm:$0xff]
      %v593 = vld [vmem:[%s192 + $0x30] sm:$0xff]
      %v594 = vld [vmem:[%s192 + $0x38] sm:$0xff]
      %603 = vrot.lane.b32.xlu0 %v587, 94
      %v604 = vpop.permute.xlu0 %603
      %605 = vrot.lane.b32.xlu0 %v588, 94
      %v606 = vpop.permute.xlu0 %605
      %607 = vrot.lane.b32.xlu0 %v589, 94
      %v608 = vpop.permute.xlu0 %607
      %609 = vrot.lane.b32.xlu0 %v590, 94
      %v610 = vpop.permute.xlu0 %609
      %611 = vrot.lane.b32.xlu0 %v591, 94
      %v612 = vpop.permute.xlu0 %611
      %613 = vrot.lane.b32.xlu0 %v592, 94
      %v614 = vpop.permute.xlu0 %613
      %615 = vrot.lane.b32.xlu0 %v593, 94
      %v616 = vpop.permute.xlu0 %615
      %617 = vrot.lane.b32.xlu0 %v594, 94
      %v618 = vpop.permute.xlu0 %617
      %v619 = vsel %vm208, %v604, %v606
      %v620 = vsel %vm208, %v608, %v610
      %v621 = vsel %vm208, %v612, %v614
      %v622 = vsel %vm208, %v616, %v618
      %631 = vst [vmem:[#allocation2 + $0x200] sm:$0xff] %v619
      %632 = vst.msk [vmem:[#allocation2 + $0x208] sm:$0xff] %vm208, %v606
      %633 = vst [vmem:[#allocation2 + $0x210] sm:$0xff] %v620
      %634 = vst.msk [vmem:[#allocation2 + $0x218] sm:$0xff] %vm208, %v610
      %635 = vst [vmem:[#allocation2 + $0x220] sm:$0xff] %v621
      %636 = vst.msk [vmem:[#allocation2 + $0x228] sm:$0xff] %vm208, %v614
      %637 = vst [vmem:[#allocation2 + $0x230] sm:$0xff] %v622
      %638 = vst.msk [vmem:[#allocation2 + $0x238] sm:$0xff] %vm208, %v618
      %v639 = vld [vmem:[%s1] sm:$0xff]
      %v640 = vld [vmem:[%s1 + $0x8] sm:$0xff]
      %v641 = vld [vmem:[%s1 + $0x10] sm:$0xff]
      %v642 = vld [vmem:[%s1 + $0x18] sm:$0xff]
      %v643 = vld [vmem:[%s1 + $0x20] sm:$0xff]
      %v644 = vld [vmem:[%s1 + $0x28] sm:$0xff]
      %v645 = vld [vmem:[%s1 + $0x30] sm:$0xff]
      %v646 = vld [vmem:[%s1 + $0x38] sm:$0xff]
      %v647 = vld [vmem:[%s1 + $0x40] sm:$0xff]
      %v648 = vld [vmem:[%s1 + $0x48] sm:$0xff]
      %v649 = vld [vmem:[%s1 + $0x50] sm:$0xff]
      %v650 = vld [vmem:[%s1 + $0x58] sm:$0xff]
      %v651 = vld [vmem:[%s1 + $0x60] sm:$0xff]
      %v652 = vld [vmem:[%s1 + $0x68] sm:$0xff]
      %v653 = vld [vmem:[%s1 + $0x70] sm:$0xff]
      %v654 = vld [vmem:[%s1 + $0x78] sm:$0xff]
      %v655 = vld [vmem:[%s1 + $0x80] sm:$0xff]
      %v656 = vld [vmem:[%s1 + $0x88] sm:$0xff]
      %v657 = vld [vmem:[%s1 + $0x90] sm:$0xff]
      %v658 = vld [vmem:[%s1 + $0x98] sm:$0xff]
      %v659 = vld [vmem:[%s1 + $0xa0] sm:$0xff]
      %v660 = vld [vmem:[%s1 + $0xa8] sm:$0xff]
      %v661 = vld [vmem:[%s1 + $0xb0] sm:$0xff]
      %v662 = vld [vmem:[%s1 + $0xb8] sm:$0xff]
      %v663 = vld [vmem:[#allocation2] sm:$0xff]
      %v664 = vld [vmem:[#allocation2 + $0x8] sm:$0xff]
      %v665 = vld [vmem:[#allocation2 + $0x10] sm:$0xff]
      %v666 = vld [vmem:[#allocation2 + $0x18] sm:$0xff]
      %v667 = vld [vmem:[#allocation2 + $0x20] sm:$0xff]
      %v668 = vld [vmem:[#allocation2 + $0x28] sm:$0xff]
      %v669 = vld [vmem:[#allocation2 + $0x30] sm:$0xff]
      %v670 = vld [vmem:[#allocation2 + $0x38] sm:$0xff]
      %v671 = vld [vmem:[#allocation2 + $0x40] sm:$0xff]
      %v672 = vld [vmem:[#allocation2 + $0x48] sm:$0xff]
      %v673 = vld [vmem:[#allocation2 + $0x50] sm:$0xff]
      %v674 = vld [vmem:[#allocation2 + $0x58] sm:$0xff]
      %v675 = vld [vmem:[#allocation2 + $0x60] sm:$0xff]
      %v676 = vld [vmem:[#allocation2 + $0x68] sm:$0xff]
      %v677 = vld [vmem:[#allocation2 + $0x70] sm:$0xff]
      %v678 = vld [vmem:[#allocation2 + $0x78] sm:$0xff]
      %v679 = vld [vmem:[#allocation2 + $0x80] sm:$0xff]
      %v680 = vld [vmem:[#allocation2 + $0x88] sm:$0xff]
      %v681 = vld [vmem:[#allocation2 + $0x90] sm:$0xff]
      %v682 = vld [vmem:[#allocation2 + $0x98] sm:$0xff]
      %v683 = vld [vmem:[#allocation2 + $0xa0] sm:$0xff]
      %v684 = vld [vmem:[#allocation2 + $0xa8] sm:$0xff]
      %v685 = vld [vmem:[#allocation2 + $0xb0] sm:$0xff]
      %v686 = vld [vmem:[#allocation2 + $0xb8] sm:$0xff]
      %v687 = vld [vmem:[#allocation2 + $0xc0] sm:$0xff]
      %v688 = vld [vmem:[#allocation2 + $0xc8] sm:$0xff]
      %v689 = vld [vmem:[#allocation2 + $0xd0] sm:$0xff]
      %v690 = vld [vmem:[#allocation2 + $0xd8] sm:$0xff]
      %v691 = vld [vmem:[#allocation2 + $0xe0] sm:$0xff]
      %v692 = vld [vmem:[#allocation2 + $0xe8] sm:$0xff]
      %v693 = vld [vmem:[#allocation2 + $0xf0] sm:$0xff]
      %v694 = vld [vmem:[#allocation2 + $0xf8] sm:$0xff]
      %v695 = vld [vmem:[#allocation2 + $0x100] sm:$0xff]
      %v696 = vld [vmem:[#allocation2 + $0x108] sm:$0xff]
      %v697 = vld [vmem:[#allocation2 + $0x110] sm:$0xff]
      %v698 = vld [vmem:[#allocation2 + $0x118] sm:$0xff]
      %v699 = vld [vmem:[#allocation2 + $0x120] sm:$0xff]
      %v700 = vld [vmem:[#allocation2 + $0x128] sm:$0xff]
      %v701 = vld [vmem:[#allocation2 + $0x130] sm:$0xff]
      %v702 = vld [vmem:[#allocation2 + $0x138] sm:$0xff]
      %v703 = vld [vmem:[#allocation2 + $0x140] sm:$0xff]
      %v704 = vld [vmem:[#allocation2 + $0x148] sm:$0xff]
      %v705 = vld [vmem:[#allocation2 + $0x150] sm:$0xff]
      %v706 = vld [vmem:[#allocation2 + $0x158] sm:$0xff]
      %v707 = vld [vmem:[#allocation2 + $0x160] sm:$0xff]
      %v708 = vld [vmem:[#allocation2 + $0x168] sm:$0xff]
      %v709 = vld [vmem:[#allocation2 + $0x170] sm:$0xff]
      %v710 = vld [vmem:[#allocation2 + $0x178] sm:$0xff]
      %v711 = vld [vmem:[#allocation2 + $0x180] sm:$0xff]
      %v712 = vld [vmem:[#allocation2 + $0x188] sm:$0xff]
      %v713 = vld [vmem:[#allocation2 + $0x190] sm:$0xff]
      %v714 = vld [vmem:[#allocation2 + $0x198] sm:$0xff]
      %v715 = vld [vmem:[#allocation2 + $0x1a0] sm:$0xff]
      %v716 = vld [vmem:[#allocation2 + $0x1a8] sm:$0xff]
      %v717 = vld [vmem:[#allocation2 + $0x1b0] sm:$0xff]
      %v718 = vld [vmem:[#allocation2 + $0x1b8] sm:$0xff]
      %v719 = vld [vmem:[#allocation2 + $0x1c0] sm:$0xff]
      %v720 = vld [vmem:[#allocation2 + $0x1c8] sm:$0xff]
      %v721 = vld [vmem:[#allocation2 + $0x1d0] sm:$0xff]
      %v722 = vld [vmem:[#allocation2 + $0x1d8] sm:$0xff]
      %v723 = vld [vmem:[#allocation2 + $0x1e0] sm:$0xff]
      %v724 = vld [vmem:[#allocation2 + $0x1e8] sm:$0xff]
      %v725 = vld [vmem:[#allocation2 + $0x1f0] sm:$0xff]
      %v726 = vld [vmem:[#allocation2 + $0x1f8] sm:$0xff]
      %v727 = vld [vmem:[#allocation2 + $0x200] sm:$0xff]
      %v728 = vld [vmem:[#allocation2 + $0x208] sm:$0xff]
      %v729 = vld [vmem:[#allocation2 + $0x210] sm:$0xff]
      %v730 = vld [vmem:[#allocation2 + $0x218] sm:$0xff]
      %v731 = vld [vmem:[#allocation2 + $0x220] sm:$0xff]
      %v732 = vld [vmem:[#allocation2 + $0x228] sm:$0xff]
      %v733 = vld [vmem:[#allocation2 + $0x230] sm:$0xff]
      %v734 = vld [vmem:[#allocation2 + $0x238] sm:$0xff]
      %v735 = vld [vmem:[%s2] sm:$0xff]
      %v736 = vld [vmem:[%s2 + $0x8] sm:$0xff]
      %v737 = vld [vmem:[%s2 + $0x10] sm:$0xff]
      %v738 = vld [vmem:[%s2 + $0x18] sm:$0xff]
      %v739 = vld [vmem:[%s2 + $0x20] sm:$0xff]
      %v740 = vld [vmem:[%s2 + $0x28] sm:$0xff]
      %v741 = vld [vmem:[%s2 + $0x30] sm:$0xff]
      %v742 = vld [vmem:[%s2 + $0x38] sm:$0xff]
      %744 = vset.pattern.permute.xlu0 0
      %745 = vperm.xlu0 %744, %v735
      %v746 = vpop.permute.xlu0 %745
      %749 = vset.pattern.permute.xlu0 0
      %750 = vperm.xlu0 %749, %v736
      %v751 = vpop.permute.xlu0 %750
      %754 = vset.pattern.permute.xlu0 0
      %755 = vperm.xlu0 %754, %v737
      %v756 = vpop.permute.xlu0 %755
      %759 = vset.pattern.permute.xlu0 0
      %760 = vperm.xlu0 %759, %v738
      %v761 = vpop.permute.xlu0 %760
      %764 = vset.pattern.permute.xlu0 0
      %765 = vperm.xlu0 %764, %v739
      %v766 = vpop.permute.xlu0 %765
      %769 = vset.pattern.permute.xlu0 0
      %770 = vperm.xlu0 %769, %v740
      %v771 = vpop.permute.xlu0 %770
      %774 = vset.pattern.permute.xlu0 0
      %775 = vperm.xlu0 %774, %v741
      %v776 = vpop.permute.xlu0 %775
      %779 = vset.pattern.permute.xlu0 0
      %780 = vperm.xlu0 %779, %v742
      %v781 = vpop.permute.xlu0 %780
      %vm783 = vcmask 261120
      %v785 = vsel %vm783, %v641, 0
      %v788 = vsel %vm783, %v644, 0
      %v791 = vsel %vm783, %v647, 0
      %v794 = vsel %vm783, %v650, 0
      %v797 = vsel %vm783, %v653, 0
      %v800 = vsel %vm783, %v656, 0
      %v803 = vsel %vm783, %v659, 0
      %v806 = vsel %vm783, %v662, 0
      %808 = vmatpush.msra.mxu0 %v693
      %809 = vmatpush.msra.mxu0 %v691
      %810 = vmatpush.msra.mxu0 %v689
      %811 = vmatpush.msra.mxu0 %v687
      %812 = vmatpush.msra.mxu0 %v685
      %813 = vmatpush.msra.mxu0 %v683
      %814 = vmatpush.msra.mxu0 %v681
      %815 = vmatpush.msra.mxu0 %v679
      %816 = vmatpush.msra.mxu0 %v677
      %817 = vmatpush.msra.mxu0 %v675
      %818 = vmatpush.msra.mxu0 %v673
      %819 = vmatpush.msra.mxu0 %v671
      %820 = vmatpush.msra.mxu0 %v669
      %821 = vmatpush.msra.mxu0 %v667
      %822 = vmatpush.msra.mxu0 %v665
      %823 = vmatpush.msra.mxu0 %v663
      %824 = vmatmul.f32.gmra.mxu0 %v639
      %v825 = vpop.f32.mrf.mxu0
      %v826 = vadd.f32 %v746, %v825
      %827 = vmatmul.f32.gmra.mxu0 %v642
      %v828 = vpop.f32.mrf.mxu0
      %v829 = vadd.f32 %v751, %v828
      %830 = vmatmul.f32.gmra.mxu0 %v645
      %v831 = vpop.f32.mrf.mxu0
      %v832 = vadd.f32 %v756, %v831
      %833 = vmatmul.f32.gmra.mxu0 %v648
      %v834 = vpop.f32.mrf.mxu0
      %v835 = vadd.f32 %v761, %v834
      %836 = vmatmul.f32.gmra.mxu0 %v651
      %v837 = vpop.f32.mrf.mxu0
      %v838 = vadd.f32 %v766, %v837
      %839 = vmatmul.f32.gmra.mxu0 %v654
      %v840 = vpop.f32.mrf.mxu0
      %v841 = vadd.f32 %v771, %v840
      %842 = vmatmul.f32.gmra.mxu0 %v657
      %v843 = vpop.f32.mrf.mxu0
      %v844 = vadd.f32 %v776, %v843
      %845 = vmatmul.f32.gmra.mxu0 %v660
      %v846 = vpop.f32.mrf.mxu0
      %v847 = vadd.f32 %v781, %v846
      %848 = vdwg.mxu0
      %849 = vmatpush.msra.mxu0 %v725
      %850 = vmatpush.msra.mxu0 %v723
      %851 = vmatpush.msra.mxu0 %v721
      %852 = vmatpush.msra.mxu0 %v719
      %853 = vmatpush.msra.mxu0 %v717
      %854 = vmatpush.msra.mxu0 %v715
      %855 = vmatpush.msra.mxu0 %v713
      %856 = vmatpush.msra.mxu0 %v711
      %857 = vmatpush.msra.mxu0 %v709
      %858 = vmatpush.msra.mxu0 %v707
      %859 = vmatpush.msra.mxu0 %v705
      %860 = vmatpush.msra.mxu0 %v703
      %861 = vmatpush.msra.mxu0 %v701
      %862 = vmatpush.msra.mxu0 %v699
      %863 = vmatpush.msra.mxu0 %v697
      %864 = vmatpush.msra.mxu0 %v695
      %865 = vmatmul.f32.gmra.mxu0 %v640
      %v866 = vpop.f32.mrf.mxu0
      %v867 = vadd.f32 %v826, %v866
      %868 = vmatmul.f32.gmra.mxu0 %v643
      %v869 = vpop.f32.mrf.mxu0
      %v870 = vadd.f32 %v829, %v869
      %871 = vmatmul.f32.gmra.mxu0 %v646
      %v872 = vpop.f32.mrf.mxu0
      %v873 = vadd.f32 %v832, %v872
      %874 = vmatmul.f32.gmra.mxu0 %v649
      %v875 = vpop.f32.mrf.mxu0
      %v876 = vadd.f32 %v835, %v875
      %877 = vmatmul.f32.gmra.mxu0 %v652
      %v878 = vpop.f32.mrf.mxu0
      %v879 = vadd.f32 %v838, %v878
      %880 = vmatmul.f32.gmra.mxu0 %v655
      %v881 = vpop.f32.mrf.mxu0
      %v882 = vadd.f32 %v841, %v881
      %883 = vmatmul.f32.gmra.mxu0 %v658
      %v884 = vpop.f32.mrf.mxu0
      %v885 = vadd.f32 %v844, %v884
      %886 = vmatmul.f32.gmra.mxu0 %v661
      %v887 = vpop.f32.mrf.mxu0
      %v888 = vadd.f32 %v847, %v887
      %889 = vdwg.mxu0
      %890 = vmatpush.msra.mxu0 0.0
      %891 = vmatpush.msra.mxu0 0.0
      %892 = vmatpush.msra.mxu0 0.0
      %893 = vmatpush.msra.mxu0 0.0
      %894 = vmatpush.msra.mxu0 0.0
      %895 = vmatpush.msra.mxu0 0.0
      %896 = vmatpush.msra.mxu0 0.0
      %897 = vmatpush.msra.mxu0 0.0
      %898 = vmatpush.msra.mxu0 0.0
      %899 = vmatpush.msra.mxu0 0.0
      %900 = vmatpush.msra.mxu0 0.0
      %901 = vmatpush.msra.mxu0 0.0
      %902 = vmatpush.msra.mxu0 %v733
      %903 = vmatpush.msra.mxu0 %v731
      %904 = vmatpush.msra.mxu0 %v729
      %905 = vmatpush.msra.mxu0 %v727
      %906 = vmatmul.f32.gmra.mxu0 %v785
      %v907 = vpop.f32.mrf.mxu0
      %v908 = vadd.f32 %v867, %v907
      %909 = vmatmul.f32.gmra.mxu0 %v788
      %v910 = vpop.f32.mrf.mxu0
      %v911 = vadd.f32 %v870, %v910
      %912 = vmatmul.f32.gmra.mxu0 %v791
      %v913 = vpop.f32.mrf.mxu0
      %v914 = vadd.f32 %v873, %v913
      %915 = vmatmul.f32.gmra.mxu0 %v794
      %v916 = vpop.f32.mrf.mxu0
      %v917 = vadd.f32 %v876, %v916
      %918 = vmatmul.f32.gmra.mxu0 %v797
      %v919 = vpop.f32.mrf.mxu0
      %v920 = vadd.f32 %v879, %v919
      %921 = vmatmul.f32.gmra.mxu0 %v800
      %v922 = vpop.f32.mrf.mxu0
      %v923 = vadd.f32 %v882, %v922
      %924 = vmatmul.f32.gmra.mxu0 %v803
      %v925 = vpop.f32.mrf.mxu0
      %v926 = vadd.f32 %v885, %v925
      %927 = vmatmul.f32.gmra.mxu0 %v806
      %v928 = vpop.f32.mrf.mxu0
      %v929 = vadd.f32 %v888, %v928
      %930 = vdwg.mxu0
      %931 = vmatpush.msra.mxu0 %v694
      %932 = vmatpush.msra.mxu0 %v692
      %933 = vmatpush.msra.mxu0 %v690
      %934 = vmatpush.msra.mxu0 %v688
      %935 = vmatpush.msra.mxu0 %v686
      %936 = vmatpush.msra.mxu0 %v684
      %937 = vmatpush.msra.mxu0 %v682
      %938 = vmatpush.msra.mxu0 %v680
      %939 = vmatpush.msra.mxu0 %v678
      %940 = vmatpush.msra.mxu0 %v676
      %941 = vmatpush.msra.mxu0 %v674
      %942 = vmatpush.msra.mxu0 %v672
      %943 = vmatpush.msra.mxu0 %v670
      %944 = vmatpush.msra.mxu0 %v668
      %945 = vmatpush.msra.mxu0 %v666
      %946 = vmatpush.msra.mxu0 %v664
      %947 = vmatmul.f32.gmra.mxu0 %v639
      %v948 = vpop.f32.mrf.mxu0
      %v949 = vadd.f32 %v746, %v948
      %950 = vmatmul.f32.gmra.mxu0 %v642
      %v951 = vpop.f32.mrf.mxu0
      %v952 = vadd.f32 %v751, %v951
      %953 = vmatmul.f32.gmra.mxu0 %v645
      %v954 = vpop.f32.mrf.mxu0
      %v955 = vadd.f32 %v756, %v954
      %956 = vmatmul.f32.gmra.mxu0 %v648
      %v957 = vpop.f32.mrf.mxu0
      %v958 = vadd.f32 %v761, %v957
      %959 = vmatmul.f32.gmra.mxu0 %v651
      %v960 = vpop.f32.mrf.mxu0
      %v961 = vadd.f32 %v766, %v960
      %962 = vmatmul.f32.gmra.mxu0 %v654
      %v963 = vpop.f32.mrf.mxu0
      %v964 = vadd.f32 %v771, %v963
      %965 = vmatmul.f32.gmra.mxu0 %v657
      %v966 = vpop.f32.mrf.mxu0
      %v967 = vadd.f32 %v776, %v966
      %968 = vmatmul.f32.gmra.mxu0 %v660
      %v969 = vpop.f32.mrf.mxu0
      %v970 = vadd.f32 %v781, %v969
      %971 = vdwg.mxu0
      %972 = vmatpush.msra.mxu0 %v726
      %973 = vmatpush.msra.mxu0 %v724
      %974 = vmatpush.msra.mxu0 %v722
      %975 = vmatpush.msra.mxu0 %v720
      %976 = vmatpush.msra.mxu0 %v718
      %977 = vmatpush.msra.mxu0 %v716
      %978 = vmatpush.msra.mxu0 %v714
      %979 = vmatpush.msra.mxu0 %v712
      %980 = vmatpush.msra.mxu0 %v710
      %981 = vmatpush.msra.mxu0 %v708
      %982 = vmatpush.msra.mxu0 %v706
      %983 = vmatpush.msra.mxu0 %v704
      %984 = vmatpush.msra.mxu0 %v702
      %985 = vmatpush.msra.mxu0 %v700
      %986 = vmatpush.msra.mxu0 %v698
      %987 = vmatpush.msra.mxu0 %v696
      %988 = vmatmul.f32.gmra.mxu0 %v640
      %v989 = vpop.f32.mrf.mxu0
      %v990 = vadd.f32 %v949, %v989
      %991 = vmatmul.f32.gmra.mxu0 %v643
      %v992 = vpop.f32.mrf.mxu0
      %v993 = vadd.f32 %v952, %v992
      %994 = vmatmul.f32.gmra.mxu0 %v646
      %v995 = vpop.f32.mrf.mxu0
      %v996 = vadd.f32 %v955, %v995
      %997 = vmatmul.f32.gmra.mxu0 %v649
      %v998 = vpop.f32.mrf.mxu0
      %v999 = vadd.f32 %v958, %v998
      %1000 = vmatmul.f32.gmra.mxu0 %v652
      %v1001 = vpop.f32.mrf.mxu0
      %v1002 = vadd.f32 %v961, %v1001
      %1003 = vmatmul.f32.gmra.mxu0 %v655
      %v1004 = vpop.f32.mrf.mxu0
      %v1005 = vadd.f32 %v964, %v1004
      %1006 = vmatmul.f32.gmra.mxu0 %v658
      %v1007 = vpop.f32.mrf.mxu0
      %v1008 = vadd.f32 %v967, %v1007
      %1009 = vmatmul.f32.gmra.mxu0 %v661
      %v1010 = vpop.f32.mrf.mxu0
      %v1011 = vadd.f32 %v970, %v1010
      %1012 = vdwg.mxu0
      %1013 = vmatpush.msra.mxu0 0.0
      %1014 = vmatpush.msra.mxu0 0.0
      %1015 = vmatpush.msra.mxu0 0.0
      %1016 = vmatpush.msra.mxu0 0.0
      %1017 = vmatpush.msra.mxu0 0.0
      %1018 = vmatpush.msra.mxu0 0.0
      %1019 = vmatpush.msra.mxu0 0.0
      %1020 = vmatpush.msra.mxu0 0.0
      %1021 = vmatpush.msra.mxu0 0.0
      %1022 = vmatpush.msra.mxu0 0.0
      %1023 = vmatpush.msra.mxu0 0.0
      %1024 = vmatpush.msra.mxu0 0.0
      %1025 = vmatpush.msra.mxu0 %v734
      %1026 = vmatpush.msra.mxu0 %v732
      %1027 = vmatpush.msra.mxu0 %v730
      %1028 = vmatpush.msra.mxu0 %v728
      %1029 = vmatmul.f32.gmra.mxu0 %v785
      %v1030 = vpop.f32.mrf.mxu0
      %v1031 = vadd.f32 %v990, %v1030
      %1032 = vmatmul.f32.gmra.mxu0 %v788
      %v1033 = vpop.f32.mrf.mxu0
      %v1034 = vadd.f32 %v993, %v1033
      %1035 = vmatmul.f32.gmra.mxu0 %v791
      %v1036 = vpop.f32.mrf.mxu0
      %v1037 = vadd.f32 %v996, %v1036
      %1038 = vmatmul.f32.gmra.mxu0 %v794
      %v1039 = vpop.f32.mrf.mxu0
      %v1040 = vadd.f32 %v999, %v1039
      %1041 = vmatmul.f32.gmra.mxu0 %v797
      %v1042 = vpop.f32.mrf.mxu0
      %v1043 = vadd.f32 %v1002, %v1042
      %1044 = vmatmul.f32.gmra.mxu0 %v800
      %v1045 = vpop.f32.mrf.mxu0
      %v1046 = vadd.f32 %v1005, %v1045
      %1047 = vmatmul.f32.gmra.mxu0 %v803
      %v1048 = vpop.f32.mrf.mxu0
      %v1049 = vadd.f32 %v1008, %v1048
      %1050 = vmatmul.f32.gmra.mxu0 %v806
      %v1051 = vpop.f32.mrf.mxu0
      %v1052 = vadd.f32 %v1011, %v1051
      %1053 = vdwg.mxu0
      %v1054 = vmax.f32 %v908, 0.0
      %v1055 = vmax.f32 %v1031, 0.0
      %v1056 = vmax.f32 %v911, 0.0
      %v1057 = vmax.f32 %v1034, 0.0
      %v1058 = vmax.f32 %v914, 0.0
      %v1059 = vmax.f32 %v1037, 0.0
      %v1060 = vmax.f32 %v917, 0.0
      %v1061 = vmax.f32 %v1040, 0.0
      %v1062 = vmax.f32 %v920, 0.0
      %v1063 = vmax.f32 %v1043, 0.0
      %v1064 = vmax.f32 %v923, 0.0
      %v1065 = vmax.f32 %v1046, 0.0
      %v1066 = vmax.f32 %v926, 0.0
      %v1067 = vmax.f32 %v1049, 0.0
      %v1068 = vmax.f32 %v929, 0.0
      %v1069 = vmax.f32 %v1052, 0.0
      %1070 = vst [vmem:[#allocation3] sm:$0xff] %v1054
      %1071 = vst.msk [vmem:[#allocation3 + $0x8] sm:$0xff] %vm208, %v1055
      %1072 = vst [vmem:[#allocation3 + $0x10] sm:$0xff] %v1056
      %1073 = vst.msk [vmem:[#allocation3 + $0x18] sm:$0xff] %vm208, %v1057
      %1074 = vst [vmem:[#allocation3 + $0x20] sm:$0xff] %v1058
      %1075 = vst.msk [vmem:[#allocation3 + $0x28] sm:$0xff] %vm208, %v1059
      %1076 = vst [vmem:[#allocation3 + $0x30] sm:$0xff] %v1060
      %1077 = vst.msk [vmem:[#allocation3 + $0x38] sm:$0xff] %vm208, %v1061
      %1078 = vst [vmem:[#allocation3 + $0x40] sm:$0xff] %v1062
      %1079 = vst.msk [vmem:[#allocation3 + $0x48] sm:$0xff] %vm208, %v1063
      %1080 = vst [vmem:[#allocation3 + $0x50] sm:$0xff] %v1064
      %1081 = vst.msk [vmem:[#allocation3 + $0x58] sm:$0xff] %vm208, %v1065
      %1082 = vst [vmem:[#allocation3 + $0x60] sm:$0xff] %v1066
      %1083 = vst.msk [vmem:[#allocation3 + $0x68] sm:$0xff] %vm208, %v1067
      %1084 = vst [vmem:[#allocation3 + $0x70] sm:$0xff] %v1068
      %1085 = vst.msk [vmem:[#allocation3 + $0x78] sm:$0xff] %vm208, %v1069
      %v1086 = vld [vmem:[#allocation3] sm:$0xff]
      %v1087 = vld [vmem:[#allocation3 + $0x8] sm:$0xff]
      %v1088 = vld [vmem:[#allocation3 + $0x10] sm:$0xff]
      %v1089 = vld [vmem:[#allocation3 + $0x18] sm:$0xff]
      %v1090 = vld [vmem:[#allocation3 + $0x20] sm:$0xff]
      %v1091 = vld [vmem:[#allocation3 + $0x28] sm:$0xff]
      %v1092 = vld [vmem:[#allocation3 + $0x30] sm:$0xff]
      %v1093 = vld [vmem:[#allocation3 + $0x38] sm:$0xff]
      %v1094 = vld [vmem:[#allocation3 + $0x40] sm:$0xff]
      %v1095 = vld [vmem:[#allocation3 + $0x48] sm:$0xff]
      %v1096 = vld [vmem:[#allocation3 + $0x50] sm:$0xff]
      %v1097 = vld [vmem:[#allocation3 + $0x58] sm:$0xff]
      %v1098 = vld [vmem:[#allocation3 + $0x60] sm:$0xff]
      %v1099 = vld [vmem:[#allocation3 + $0x68] sm:$0xff]
      %v1100 = vld [vmem:[#allocation3 + $0x70] sm:$0xff]
      %v1101 = vld [vmem:[#allocation3 + $0x78] sm:$0xff]
      %1118 = vrot.lane.b32.xlu0 %v1086, 127
      %v1119 = vpop.permute.xlu0 %1118
      %1120 = vrot.lane.b32.xlu0 %v1087, 127
      %v1121 = vpop.permute.xlu0 %1120
      %1122 = vrot.lane.b32.xlu0 %v1088, 127
      %v1123 = vpop.permute.xlu0 %1122
      %1124 = vrot.lane.b32.xlu0 %v1089, 127
      %v1125 = vpop.permute.xlu0 %1124
      %1126 = vrot.lane.b32.xlu0 %v1090, 127
      %v1127 = vpop.permute.xlu0 %1126
      %1128 = vrot.lane.b32.xlu0 %v1091, 127
      %v1129 = vpop.permute.xlu0 %1128
      %1130 = vrot.lane.b32.xlu0 %v1092, 127
      %v1131 = vpop.permute.xlu0 %1130
      %1132 = vrot.lane.b32.xlu0 %v1093, 127
      %v1133 = vpop.permute.xlu0 %1132
      %1134 = vrot.lane.b32.xlu0 %v1094, 127
      %v1135 = vpop.permute.xlu0 %1134
      %1136 = vrot.lane.b32.xlu0 %v1095, 127
      %v1137 = vpop.permute.xlu0 %1136
      %1138 = vrot.lane.b32.xlu0 %v1096, 127
      %v1139 = vpop.permute.xlu0 %1138
      %1140 = vrot.lane.b32.xlu0 %v1097, 127
      %v1141 = vpop.permute.xlu0 %1140
      %1142 = vrot.lane.b32.xlu0 %v1098, 127
      %v1143 = vpop.permute.xlu0 %1142
      %1144 = vrot.lane.b32.xlu0 %v1099, 127
      %v1145 = vpop.permute.xlu0 %1144
      %1146 = vrot.lane.b32.xlu0 %v1100, 127
      %v1147 = vpop.permute.xlu0 %1146
      %1148 = vrot.lane.b32.xlu0 %v1101, 127
      %v1149 = vpop.permute.xlu0 %1148
      %v1150 = vsel %vm248, %v1119, %v1121
      %v1151 = vsel %vm248, %v1123, %v1125
      %v1152 = vsel %vm248, %v1127, %v1129
      %v1153 = vsel %vm248, %v1131, %v1133
      %v1154 = vsel %vm248, %v1135, %v1137
      %v1155 = vsel %vm248, %v1139, %v1141
      %v1156 = vsel %vm248, %v1143, %v1145
      %v1157 = vsel %vm248, %v1147, %v1149
      %v1174 = vmax.f32 %v1086, %v1150
      %v1175 = vmax.f32 %v1087, %v1121
      %v1176 = vmax.f32 %v1088, %v1151
      %v1177 = vmax.f32 %v1089, %v1125
      %v1178 = vmax.f32 %v1090, %v1152
      %v1179 = vmax.f32 %v1091, %v1129
      %v1180 = vmax.f32 %v1092, %v1153
      %v1181 = vmax.f32 %v1093, %v1133
      %v1182 = vmax.f32 %v1094, %v1154
      %v1183 = vmax.f32 %v1095, %v1137
      %v1184 = vmax.f32 %v1096, %v1155
      %v1185 = vmax.f32 %v1097, %v1141
      %v1186 = vmax.f32 %v1098, %v1156
      %v1187 = vmax.f32 %v1099, %v1145
      %v1188 = vmax.f32 %v1100, %v1157
      %v1189 = vmax.f32 %v1101, %v1149
      %1206 = vrot.lane.b32.xlu0 %v1174, 112
      %v1207 = vpop.permute.xlu0 %1206
      %1208 = vrot.lane.b32.xlu0 %v1175, 112
      %v1209 = vpop.permute.xlu0 %1208
      %1210 = vrot.lane.b32.xlu0 %v1176, 112
      %v1211 = vpop.permute.xlu0 %1210
      %1212 = vrot.lane.b32.xlu0 %v1177, 112
      %v1213 = vpop.permute.xlu0 %1212
      %1214 = vrot.lane.b32.xlu0 %v1178, 112
      %v1215 = vpop.permute.xlu0 %1214
      %1216 = vrot.lane.b32.xlu0 %v1179, 112
      %v1217 = vpop.permute.xlu0 %1216
      %1218 = vrot.lane.b32.xlu0 %v1180, 112
      %v1219 = vpop.permute.xlu0 %1218
      %1220 = vrot.lane.b32.xlu0 %v1181, 112
      %v1221 = vpop.permute.xlu0 %1220
      %1222 = vrot.lane.b32.xlu0 %v1182, 112
      %v1223 = vpop.permute.xlu0 %1222
      %1224 = vrot.lane.b32.xlu0 %v1183, 112
      %v1225 = vpop.permute.xlu0 %1224
      %1226 = vrot.lane.b32.xlu0 %v1184, 112
      %v1227 = vpop.permute.xlu0 %1226
      %1228 = vrot.lane.b32.xlu0 %v1185, 112
      %v1229 = vpop.permute.xlu0 %1228
      %1230 = vrot.lane.b32.xlu0 %v1186, 112
      %v1231 = vpop.permute.xlu0 %1230
      %1232 = vrot.lane.b32.xlu0 %v1187, 112
      %v1233 = vpop.permute.xlu0 %1232
      %1234 = vrot.lane.b32.xlu0 %v1188, 112
      %v1235 = vpop.permute.xlu0 %1234
      %1236 = vrot.lane.b32.xlu0 %v1189, 112
      %v1237 = vpop.permute.xlu0 %1236
      %v1238 = vsel %vm354, %v1207, %v1209
      %v1239 = vsel %vm354, %v1211, %v1213
      %v1240 = vsel %vm354, %v1215, %v1217
      %v1241 = vsel %vm354, %v1219, %v1221
      %v1242 = vsel %vm354, %v1223, %v1225
      %v1243 = vsel %vm354, %v1227, %v1229
      %v1244 = vsel %vm354, %v1231, %v1233
      %v1245 = vsel %vm354, %v1235, %v1237
      %v1262 = vmax.f32 %v1174, %v1238
      %v1263 = vmax.f32 %v1175, %v1209
      %v1264 = vmax.f32 %v1176, %v1239
      %v1265 = vmax.f32 %v1177, %v1213
      %v1266 = vmax.f32 %v1178, %v1240
      %v1267 = vmax.f32 %v1179, %v1217
      %v1268 = vmax.f32 %v1180, %v1241
      %v1269 = vmax.f32 %v1181, %v1221
      %v1270 = vmax.f32 %v1182, %v1242
      %v1271 = vmax.f32 %v1183, %v1225
      %v1272 = vmax.f32 %v1184, %v1243
      %v1273 = vmax.f32 %v1185, %v1229
      %v1274 = vmax.f32 %v1186, %v1244
      %v1275 = vmax.f32 %v1187, %v1233
      %v1276 = vmax.f32 %v1188, %v1245
      %v1277 = vmax.f32 %v1189, %v1237
      %v1278 = vpack.c.bf16 %v1264, %v1262
      %v1279 = vpack.c.bf16 %v1265, %v1263
      %v1280 = vpack.c.bf16 %v1268, %v1266
      %v1281 = vpack.c.bf16 %v1269, %v1267
      %v1282 = vpack.c.bf16 %v1272, %v1270
      %v1283 = vpack.c.bf16 %v1273, %v1271
      %v1284 = vpack.c.bf16 %v1276, %v1274
      %v1285 = vpack.c.bf16 %v1277, %v1275
      %v1286 = vld [vmem:[%s3] sm:$0xf]
      %v1287 = vld [vmem:[%s3 + $0x4] sm:$0xf]
      %v1288 = vld [vmem:[%s3 + $0x8] sm:$0xf]
      %v1289 = vld [vmem:[%s3 + $0xc] sm:$0xf]
      %v1290 = vld [vmem:[%s3 + $0x10] sm:$0xf]
      %v1291 = vld [vmem:[%s3 + $0x14] sm:$0xf]
      %v1292 = vld [vmem:[%s3 + $0x18] sm:$0xf]
      %v1293 = vld [vmem:[%s3 + $0x1c] sm:$0xf]
      %v1294 = vld [vmem:[%s3 + $0x20] sm:$0xf]
      %v1295 = vld [vmem:[%s3 + $0x24] sm:$0xf]
      %v1296 = vld [vmem:[%s3 + $0x28] sm:$0xf]
      %v1297 = vld [vmem:[%s3 + $0x2c] sm:$0xf]
      %v1298 = vld [vmem:[%s3 + $0x30] sm:$0xf]
      %v1299 = vld [vmem:[%s3 + $0x34] sm:$0xf]
      %v1300 = vld [vmem:[%s3 + $0x38] sm:$0xf]
      %v1301 = vld [vmem:[%s3 + $0x3c] sm:$0xf]
      %v1302 = vld [vmem:[%s3 + $0x40] sm:$0xf]
      %v1303 = vld [vmem:[%s3 + $0x44] sm:$0xf]
      %v1304 = vld [vmem:[%s3 + $0x48] sm:$0xf]
      %v1305 = vld [vmem:[%s3 + $0x4c] sm:$0xf]
      %v1306 = vld [vmem:[%s3 + $0x50] sm:$0xf]
      %v1307 = vld [vmem:[%s3 + $0x54] sm:$0xf]
      %v1308 = vld [vmem:[%s3 + $0x58] sm:$0xf]
      %v1309 = vld [vmem:[%s3 + $0x5c] sm:$0xf]
      %v1310 = vld [vmem:[%s3 + $0x60] sm:$0xf]
      %v1311 = vld [vmem:[%s3 + $0x64] sm:$0x7]
      %v1338 = vunpack.c.l.b16 %v1286
      %v1339 = vunpack.c.l.b16 %v1287
      %v1340 = vunpack.c.l.b16 %v1288
      %v1341 = vunpack.c.l.b16 %v1289
      %v1342 = vunpack.c.l.b16 %v1290
      %v1343 = vunpack.c.l.b16 %v1291
      %v1344 = vunpack.c.l.b16 %v1292
      %v1345 = vunpack.c.l.b16 %v1293
      %v1346 = vunpack.c.l.b16 %v1294
      %v1347 = vunpack.c.l.b16 %v1295
      %v1348 = vunpack.c.l.b16 %v1296
      %v1349 = vunpack.c.l.b16 %v1297
      %v1350 = vunpack.c.l.b16 %v1298
      %v1351 = vunpack.c.l.b16 %v1299
      %v1352 = vunpack.c.l.b16 %v1300
      %v1353 = vunpack.c.l.b16 %v1301
      %v1354 = vunpack.c.l.b16 %v1302
      %v1355 = vunpack.c.l.b16 %v1303
      %v1356 = vunpack.c.l.b16 %v1304
      %v1357 = vunpack.c.l.b16 %v1305
      %v1358 = vunpack.c.l.b16 %v1306
      %v1359 = vunpack.c.l.b16 %v1307
      %v1360 = vunpack.c.l.b16 %v1308
      %v1361 = vunpack.c.l.b16 %v1309
      %v1362 = vunpack.c.l.b16 %v1310
      %v1363 = vunpack.c.l.b16 %v1311
      %v1364 = vpack.c.b16 %v1339, %v1338
      %v1365 = vpack.c.b16 %v1341, %v1340
      %v1366 = vpack.c.b16 %v1343, %v1342
      %v1367 = vpack.c.b16 %v1345, %v1344
      %v1368 = vpack.c.b16 %v1347, %v1346
      %v1369 = vpack.c.b16 %v1349, %v1348
      %v1370 = vpack.c.b16 %v1351, %v1350
      %v1371 = vpack.c.b16 %v1353, %v1352
      %v1372 = vpack.c.b16 %v1355, %v1354
      %v1373 = vpack.c.b16 %v1357, %v1356
      %v1374 = vpack.c.b16 %v1359, %v1358
      %v1375 = vpack.c.b16 %v1361, %v1360
      %v1376 = vpack.c.b16 %v1363, %v1362
      %vm1389 = vcmask 629760
      %v1391 = vsel %vm1389, %v1279, 0
      %v1394 = vsel %vm1389, %v1281, 0
      %v1397 = vsel %vm1389, %v1283, 0
      %v1400 = vsel %vm1389, %v1285, 0
      %vm1402 = vcmask 1045504
      %vm1403 = vcmask 1046528
      %v1404 = vsel %vm1402, 4294967295, 65535
      %v1405 = vsel %vm1403, %v1404, 0
      %v1407 = vand.u32 %v1376, %v1405
      %1409 = vmatpush.bf16.msra.mxu0 %v1371
      %1410 = vmatpush.bf16.msra.mxu0 %v1370
      %1411 = vmatpush.bf16.msra.mxu0 %v1369
      %1412 = vmatpush.bf16.msra.mxu0 %v1368
      %1413 = vmatpush.bf16.msra.mxu0 %v1367
      %1414 = vmatpush.bf16.msra.mxu0 %v1366
      %1415 = vmatpush.bf16.msra.mxu0 %v1365
      %1416 = vmatpush.bf16.msra.mxu0 %v1364
      %1417 = vmatmul.bf16.gmra.mxu0 %v1278
      %v1418 = vpop.f32.mrf.mxu0
      %v1419 = vadd.f32 0.0, %v1418
      %v1420 = vpop.f32.mrf.mxu0
      %v1421 = vadd.f32 0.0, %v1420
      %1422 = vmatmul.bf16.gmra.mxu0 %v1280
      %v1423 = vpop.f32.mrf.mxu0
      %v1424 = vadd.f32 0.0, %v1423
      %v1425 = vpop.f32.mrf.mxu0
      %v1426 = vadd.f32 0.0, %v1425
      %1427 = vmatmul.bf16.gmra.mxu0 %v1282
      %v1428 = vpop.f32.mrf.mxu0
      %v1429 = vadd.f32 0.0, %v1428
      %v1430 = vpop.f32.mrf.mxu0
      %v1431 = vadd.f32 0.0, %v1430
      %1432 = vmatmul.bf16.gmra.mxu0 %v1284
      %v1433 = vpop.f32.mrf.mxu0
      %v1434 = vadd.f32 0.0, %v1433
      %v1435 = vpop.f32.mrf.mxu0
      %v1436 = vadd.f32 0.0, %v1435
      %1437 = vdwg.mxu0
      %1438 = vmatpush.bf16.msra.mxu0 0
      %1439 = vmatpush.bf16.msra.mxu0 0
      %1440 = vmatpush.bf16.msra.mxu0 0
      %1441 = vmatpush.bf16.msra.mxu0 %v1407
      %1442 = vmatpush.bf16.msra.mxu0 %v1375
      %1443 = vmatpush.bf16.msra.mxu0 %v1374
      %1444 = vmatpush.bf16.msra.mxu0 %v1373
      %1445 = vmatpush.bf16.msra.mxu0 %v1372
      %1446 = vmatmul.bf16.gmra.mxu0 %v1391
      %v1447 = vpop.f32.mrf.mxu0
      %v1448 = vadd.f32 %v1419, %v1447
      %v1449 = vpop.f32.mrf.mxu0
      %v1450 = vadd.f32 %v1421, %v1449
      %1451 = vmatmul.bf16.gmra.mxu0 %v1394
      %v1452 = vpop.f32.mrf.mxu0
      %v1453 = vadd.f32 %v1424, %v1452
      %v1454 = vpop.f32.mrf.mxu0
      %v1455 = vadd.f32 %v1426, %v1454
      %1456 = vmatmul.bf16.gmra.mxu0 %v1397
      %v1457 = vpop.f32.mrf.mxu0
      %v1458 = vadd.f32 %v1429, %v1457
      %v1459 = vpop.f32.mrf.mxu0
      %v1460 = vadd.f32 %v1431, %v1459
      %1461 = vmatmul.bf16.gmra.mxu0 %v1400
      %v1462 = vpop.f32.mrf.mxu0
      %v1463 = vadd.f32 %v1434, %v1462
      %v1464 = vpop.f32.mrf.mxu0
      %v1465 = vadd.f32 %v1436, %v1464
      %1466 = vdwg.mxu0
      %vm1467 = vcmask 400384
      %1468 = vst.msk [vmem:[%s197] sm:$0xff] %vm1467, %v1448
      %1469 = vst.msk [vmem:[%s197 + $0x8] sm:$0xff] %vm1467, %v1450
      %1470 = vst.msk [vmem:[%s197 + $0x10] sm:$0xff] %vm1467, %v1453
      %1471 = vst.msk [vmem:[%s197 + $0x18] sm:$0xff] %vm1467, %v1455
      %1472 = vst.msk [vmem:[%s197 + $0x20] sm:$0xff] %vm1467, %v1458
      %1473 = vst.msk [vmem:[%s197 + $0x28] sm:$0xff] %vm1467, %v1460
      %1474 = vst.msk [vmem:[%s197 + $0x30] sm:$0xff] %vm1467, %v1463
      %1475 = vst.msk [vmem:[%s197 + $0x38] sm:$0xff] %vm1467, %v1465
      %p1476 = scmp.lt.s32.totalorder %s15, 1
      %s1477 = scalar_select %p1476, %s15, 1
      %s1478 = smul.addr %s1477, 8
      %s1479 = smul.addr %s1478, 8
      %s1480 = scalar_lea.vmem %s4, %s1479
      // Predicated region
      $region37: #{net_forward.4} parent=35 // pred_check
        %p1481 = pneg %p122
      $region38: #{net_forward.4} parent=35 // pred_check_branch
        %1483 = sbr.rel (%p1481) target = $region40
      $region39: #{net_forward.4} parent=35 // pred_region
        _
      $region40: #{net_forward.4} parent=35 // pred_fallthru
        _
    $region36: #{net_forward.4} parent=5 // pred_fallthru
      _
    %p1484 = scmp.le.s32.totalorder 2, %s10
    // Predicated region
    $region41: #{net_forward.4} parent=5 // pred_check
      %p1485 = pneg %p1484
    $region42: #{net_forward.4} parent=5 // pred_check_branch
      %1487 = sbr.rel (%p1485) target = $region44
    $region43: #{net_forward.4} parent=5 // pred_region
      %s1488 = ssub.s32 %s10, 2
      // Predicated region
      $region45: #{net_forward.4} parent=43 // pred_check
        %p1489 = pneg %p128
      $region46: #{net_forward.4} parent=43 // pred_check_branch
        %1491 = sbr.rel (%p1489) target = $region48
      $region47: #{net_forward.4} parent=43 // pred_region
        %p1492 = scmp.lt.s32.totalorder %s16, 1
        %s1493 = scalar_select %p1492, %s16, 1
        %s1494 = smul.addr %s1493, 8
        %s1495 = smul.addr %s1494, 8
        %s1496 = scalar_lea.vmem %s4, %s1495
      $region48: #{net_forward.4} parent=43 // pred_fallthru
        _
    $region44: #{net_forward.4} parent=5 // pred_fallthru
      _
  $region6: #{net_forward.4} parent=0 // loop_footer
    %s14 = sadd.s32 1, %s10
  $region7: #{net_forward.4} parent=0 // loop_footer_branch
    %9 = sbr.rel target = $region3
  $region8: #{net_forward.4} parent=0 // loop_exit
    _

// kernel: net_forward.3
$region0: #{net_forward.3}
  #allocation0 [shape = 'u32[]', space=smem, size = 0x4, offset = 0x4, fixed_abs, tag = 'smem constant byte address 0x4 - core index']
  #allocation1 [shape = 'u32[72,128]{1,0:T(1,128)}', space=vmem, size = 0x9000, scoped, tag = 'internal scratch']
  #allocation2 [shape = 'f32[32,838]{1,0:T(8,128)}', space=vmem, size = 0x1c000, scoped, tag = 'scratch operand']
  %s0 = inlined_call_operand.vmem [shape: f32[2,1,900], index: 0, kind: input, shape index: {}]
  %s1 = inlined_call_operand.vmem [shape: f32[9,32,1], index: 1, kind: input, shape index: {}]
  %s2 = inlined_call_operand.vmem [shape: f32[32,1], index: 2, kind: input, shape index: {}]
  %s3 = inlined_call_operand.hbm [shape: bf16[807,256], index: 3, kind: input, shape index: {}]
  %s4 = inlined_call_operand.vmem [shape: f32[2,32,256], index: 4, kind: output, shape index: {}]
  %s5 = sld [smem:[#allocation0]]
  $region53: #{net_forward.3} parent=0
    _
  %s7 = ssub.s32 1, %s5
  %s8 = scalar_select 0, %s7, %s5
  $region1: #{net_forward.3} parent=0
    #allocation3 [shape = 'u8[413696]{0}', space=vmem, size = 0x65000, scoped, tag = 'input window, operand 3, single buffered']
    #allocation4 [shape = 's32[2]{0}', space=sflag, size = 0x8, scoped, tag = 'scoped memory for net_forward.3']
    %9 = vsyncpa [#allocation4], 0
    loop: start=0, step=1, limit=4
    $region2: #{net_forward.3} parent=1 // loop_pre_header
      _
    $region3: #{net_forward.3} parent=1 // loop_header
      %s11 = sphi 0, %s15
      %p12 = scmp.ge.s32.totalorder %s11, 4
      %s21 = sphi 0, %s23
      %s24 = sphi 0, %s21
      %s25 = sphi 0, %s24
      %s41 = sphi 0, %s25
      %s45 = sphi 0, %s45
      %s47 = sphi 0, %s45
      %s48 = sphi 0, %s47
      %s62 = sphi 0, %s48
      %s66 = sphi 0, %s66
      %s68 = sphi 0, %s66
      %s69 = sphi 0, %s68
      %s83 = sphi 0, %s69
      %s87 = sphi 0, %s87
      %s89 = sphi 0, %s87
      %s90 = sphi 0, %s89
      %s104 = sphi 0, %s90
      %s110 = sphi 0, %s112
      %s113 = sphi 0, %s110
      %s114 = sphi 0, %s113
      %s130 = sphi 0, %s114
    $region4: #{net_forward.3} parent=1 // loop_header_branch
      %14 = sbr.rel (%p12) target = $region8
    $region5: #{net_forward.3} parent=1 // loop_body
      %s16 = ssub.s32 %s11, 1
      %s17 = ssub.s32 %s11, 2
      %s18 = sadd.s32 %s11, 1
      %s19 = ssub.s32 %s11, %s18
      %p20 = scmp.eq.s32.totalorder %s19, 0
      %s22 = sadd.s32 %s21, 1
      %s23 = scalar_select %p20, %s21, %s22
      %p26 = pneg %p20
      %p27 = scmp.eq.s32.totalorder %s11, 1
      %p28 = por %p26, %p27
      %p29 = scmp.ne.s32.totalorder %s21, %s24
      %p30 = scmp.eq.s32.totalorder %s11, 0
      %p31 = por %p29, %p30
      %p32 = scmp.ne.s32.totalorder %s21, %s24
      %p33 = scmp.eq.s32.totalorder %s16, 1
      %p34 = por %p32, %p33
      %p35 = scmp.ne.s32.totalorder %s24, %s25
      %p36 = scmp.eq.s32.totalorder %s16, 0
      %p37 = por %p35, %p36
      %p38 = scmp.ne.s32.totalorder %s24, %s25
      %p39 = scmp.eq.s32.totalorder %s17, 1
      %p40 = por %p38, %p39
      %p42 = scmp.ne.s32.totalorder %s25, %s41
      %p43 = scmp.eq.s32.totalorder %s17, 0
      %p44 = por %p42, %p43
      %s46 = sadd.s32 %s45, 1
      %p49 = scmp.eq.s32.totalorder %s11, 1
      %p50 = scmp.ne.s32.totalorder %s45, %s47
      %p51 = scmp.eq.s32.totalorder %s11, 0
      %p52 = por %p50, %p51
      %p53 = scmp.ne.s32.totalorder %s45, %s47
      %p54 = scmp.eq.s32.totalorder %s16, 1
      %p55 = por %p53, %p54
      %p56 = scmp.ne.s32.totalorder %s47, %s48
      %p57 = scmp.eq.s32.totalorder %s16, 0
      %p58 = por %p56, %p57
      %p59 = scmp.ne.s32.totalorder %s47, %s48
      %p60 = scmp.eq.s32.totalorder %s17, 1
      %p61 = por %p59, %p60
      %p63 = scmp.ne.s32.totalorder %s48, %s62
      %p64 = scmp.eq.s32.totalorder %s17, 0
      %p65 = por %p63, %p64
      %s67 = sadd.s32 %s66, 1
      %p70 = scmp.eq.s32.totalorder %s11, 1
      %p71 = scmp.ne.s32.totalorder %s66, %s68
      %p72 = scmp.eq.s32.totalorder %s11, 0
      %p73 = por %p71, %p72
      %p74 = scmp.ne.s32.totalorder %s66, %s68
      %p75 = scmp.eq.s32.totalorder %s16, 1
      %p76 = por %p74, %p75
      %p77 = scmp.ne.s32.totalorder %s68, %s69
      %p78 = scmp.eq.s32.totalorder %s16, 0
      %p79 = por %p77, %p78
      %p80 = scmp.ne.s32.totalorder %s68, %s69
      %p81 = scmp.eq.s32.totalorder %s17, 1
      %p82 = por %p80, %p81
      %p84 = scmp.ne.s32.totalorder %s69, %s83
      %p85 = scmp.eq.s32.totalorder %s17, 0
      %p86 = por %p84, %p85
      %s88 = sadd.s32 %s87, 1
      %p91 = scmp.eq.s32.totalorder %s11, 1
      %p92 = scmp.ne.s32.totalorder %s87, %s89
      %p93 = scmp.eq.s32.totalorder %s11, 0
      %p94 = por %p92, %p93
      %p95 = scmp.ne.s32.totalorder %s87, %s89
      %p96 = scmp.eq.s32.totalorder %s16, 1
      %p97 = por %p95, %p96
      %p98 = scmp.ne.s32.totalorder %s89, %s90
      %p99 = scmp.eq.s32.totalorder %s16, 0
      %p100 = por %p98, %p99
      %p101 = scmp.ne.s32.totalorder %s89, %s90
      %p102 = scmp.eq.s32.totalorder %s17, 1
      %p103 = por %p101, %p102
      %p105 = scmp.ne.s32.totalorder %s90, %s104
      %p106 = scmp.eq.s32.totalorder %s17, 0
      %p107 = por %p105, %p106
      %s108 = ssub.s32 %s11, %s18
      %p109 = scmp.eq.s32.totalorder %s108, 0
      %s111 = sadd.s32 %s110, 1
      %s112 = scalar_select %p109, %s110, %s111
      %p115 = pneg %p109
      %p116 = scmp.eq.s32.totalorder %s11, 1
      %p117 = por %p115, %p116
      %p118 = scmp.ne.s32.totalorder %s110, %s113
      %p119 = scmp.eq.s32.totalorder %s11, 0
      %p120 = por %p118, %p119
      %p121 = scmp.ne.s32.totalorder %s110, %s113
      %p122 = scmp.eq.s32.totalorder %s16, 1
      %p123 = por %p121, %p122
      %p124 = scmp.ne.s32.totalorder %s113, %s114
      %p125 = scmp.eq.s32.totalorder %s16, 0
      %p126 = por %p124, %p125
      %p127 = scmp.ne.s32.totalorder %s113, %s114
      %p128 = scmp.eq.s32.totalorder %s17, 1
      %p129 = por %p127, %p128
      %p131 = scmp.ne.s32.totalorder %s114, %s130
      %p132 = scmp.eq.s32.totalorder %s17, 0
      %p133 = por %p131, %p132
      %p134 = scmp.le.s32.totalorder 1, %s11
      %p135 = scmp.lt.s32.totalorder %s11, 3
      %p136 = pnand %p134, %p135
      %p137 = pneg %p136
      // Predicated region
      $region9: #{net_forward.3} parent=5 // pred_check
        _
      $region10: #{net_forward.3} parent=5 // pred_check_branch
        %139 = sbr.rel (%p136) target = $region12
      $region11: #{net_forward.3} parent=5 // pred_region
        %s140 = ssub.s32 %s11, 1
        // Predicated region
        $region13: #{net_forward.3} parent=11 // pred_check
          %p141 = pneg %p58
        $region14: #{net_forward.3} parent=11 // pred_check_branch
          %143 = sbr.rel (%p141) target = $region16
        $region15: #{net_forward.3} parent=11 // pred_region
          _
        $region16: #{net_forward.3} parent=11 // pred_fallthru
          _
        // Predicated region
        $region17: #{net_forward.3} parent=11 // pred_check
          %p144 = pneg %p79
        $region18: #{net_forward.3} parent=11 // pred_check_branch
          %146 = sbr.rel (%p144) target = $region20
        $region19: #{net_forward.3} parent=11 // pred_region
          _
        $region20: #{net_forward.3} parent=11 // pred_fallthru
          _
        // Predicated region
        $region21: #{net_forward.3} parent=11 // pred_check
          %p147 = pneg %p100
        $region22: #{net_forward.3} parent=11 // pred_check_branch
          %149 = sbr.rel (%p147) target = $region24
        $region23: #{net_forward.3} parent=11 // pred_region
          %151 = vsyncadd [#allocation4], 0
          %s152 = sshll.u32 %s3, 4
          %s153 = int_to_ptr.hbm [resolvable:$true] %s152
          %s154 = sshll.u32 [#allocation3], 4
          %s155 = int_to_ptr.vmem [resolvable:$true] %s154
          %160 = dma.hbm_to_vmem [thread:$0]  %s153, 12928, %s155, [#allocation4], 128, 128, 8
        $region24: #{net_forward.3} parent=11 // pred_fallthru
          _
      $region12: #{net_forward.3} parent=5 // pred_fallthru
        _
      %p161 = scmp.lt.s32.totalorder %s11, 2
      // Predicated region
      $region25: #{net_forward.3} parent=5 // pred_check
        %p162 = pneg %p161
      $region26: #{net_forward.3} parent=5 // pred_check_branch
        %164 = sbr.rel (%p162) target = $region28
      $region27: #{net_forward.3} parent=5 // pred_region
        // Predicated region
        $region29: #{net_forward.3} parent=27 // pred_check
          %p165 = pneg %p31
        $region30: #{net_forward.3} parent=27 // pred_check_branch
          %167 = sbr.rel (%p165) target = $region32
        $region31: #{net_forward.3} parent=27 // pred_region
          %p168 = scmp.lt.s32.totalorder %s11, 1
          %s169 = scalar_select %p168, %s11, 1
          %s170 = smul.addr %s169, 8
          %s171 = scalar_lea.vmem %s0, %s170
        $region32: #{net_forward.3} parent=27 // pred_fallthru
          _
      $region28: #{net_forward.3} parent=5 // pred_fallthru
        _
      %p172 = scmp.le.s32.totalorder 1, %s11
      %p173 = scmp.lt.s32.totalorder %s11, 3
      %p174 = pnand %p172, %p173
      %p175 = pneg %p174
      // Predicated region
      $region33: #{net_forward.3} parent=5 // pred_check
        _
      $region34: #{net_forward.3} parent=5 // pred_check_branch
        %177 = sbr.rel (%p174) target = $region36
      $region35: #{net_forward.3} parent=5 // pred_region
        %s178 = ssub.s32 %s11, 1
        // Predicated region
        $region37: #{net_forward.3} parent=35 // pred_check
          %p179 = pneg %p100
        $region38: #{net_forward.3} parent=35 // pred_check_branch
          %181 = sbr.rel (%p179) target = $region40
        $region39: #{net_forward.3} parent=35 // pred_region
          %183 = dma.done [#allocation4], 12928
        $region40: #{net_forward.3} parent=35 // pred_fallthru
          _
        %p184 = scmp.lt.s32.totalorder %s16, 1
        %s185 = scalar_select %p184, %s16, 1
        %s186 = smul.addr %s185, 8
        %s187 = scalar_lea.vmem %s0, %s186
        %p188 = pneg %p37
        %p189 = pneg %p34
        %p190 = pneg %p58
        %p191 = pneg %p55
        %p192 = pneg %p79
        %p193 = pneg %p76
        %p194 = pneg %p100
        %p195 = pneg %p97
        %p196 = pneg %p126
        %p197 = pneg %p123
        %p198 = scmp.lt.s32.totalorder %s16, 1
        %s199 = scalar_select %p198, %s16, 1
        %s200 = smul.addr %s199, 8
        %s201 = smul.addr %s200, 8
        %s202 = scalar_lea.vmem %s4, %s201
        %p203 = scmp.lt.s32.totalorder %s16, 1
        %s204 = scalar_select %p203, %s16, 1
        %s205 = smul.addr %s204, 8
        %s206 = scalar_lea.vmem %s0, %s205
        %p207 = scmp.lt.s32.totalorder %s16, 1
        %s208 = scalar_select %p207, %s16, 1
        %s209 = smul.addr %s208, 8
        %s210 = smul.addr %s209, 8
        %s211 = scalar_lea.vmem %s4, %s210
        %v213 = vld [vmem:[%s1] sm:$0xff]
        %v214 = vld [vmem:[%s1 + $0x8] sm:$0xff]
        %v215 = vld [vmem:[%s1 + $0x10] sm:$0xff]
        %v216 = vld [vmem:[%s1 + $0x18] sm:$0xff]
        %v217 = vld [vmem:[%s206] sm:$0x7f]
        %219 = vset.pattern.permute.xlu0 0
        %220 = vperm.xlu0 %219, %v213
        %v221 = vpop.permute.xlu0 %220
        %224 = vset.pattern.permute.xlu0 0
        %225 = vperm.xlu0 %224, %v214
        %v226 = vpop.permute.xlu0 %225
        %229 = vset.pattern.permute.xlu0 0
        %230 = vperm.xlu0 %229, %v215
        %v231 = vpop.permute.xlu0 %230
        %234 = vset.pattern.permute.xlu0 0
        %235 = vperm.xlu0 %234, %v216
        %v236 = vpop.permute.xlu0 %235
        %v239 = vperm.slane %v217, 0
        %v240 = vperm.slane %v217, 1
        %v241 = vperm.slane %v217, 2
        %v242 = vperm.slane %v217, 3
        %v243 = vperm.slane %v217, 4
        %v244 = vperm.slane %v217, 5
        %v245 = vperm.slane %v217, 6
        %v253 = vmul.f32 %v221, %v239
        %v254 = vmul.f32 %v221, %v240
        %v255 = vmul.f32 %v221, %v241
        %v256 = vmul.f32 %v221, %v242
        %v257 = vmul.f32 %v221, %v243
        %v258 = vmul.f32 %v221, %v244
        %v259 = vmul.f32 %v221, %v245
        %v260 = vmul.f32 %v226, %v239
        %v261 = vmul.f32 %v226, %v240
        %v262 = vmul.f32 %v226, %v241
        %v263 = vmul.f32 %v226, %v242
        %v264 = vmul.f32 %v226, %v243
        %v265 = vmul.f32 %v226, %v244
        %v266 = vmul.f32 %v226, %v245
        %v267 = vmul.f32 %v231, %v239
        %v268 = vmul.f32 %v231, %v240
        %v269 = vmul.f32 %v231, %v241
        %v270 = vmul.f32 %v231, %v242
        %v271 = vmul.f32 %v231, %v243
        %v272 = vmul.f32 %v231, %v244
        %v273 = vmul.f32 %v231, %v245
        %v274 = vmul.f32 %v236, %v239
        %v275 = vmul.f32 %v236, %v240
        %v276 = vmul.f32 %v236, %v241
        %v277 = vmul.f32 %v236, %v242
        %v278 = vmul.f32 %v236, %v243
        %v279 = vmul.f32 %v236, %v244
        %v280 = vmul.f32 %v236, %v245
        %s281 = scalar_lea.vmem %s1, 32
        %v282 = vld [vmem:[%s281] sm:$0xff]
        %v283 = vld [vmem:[%s281 + $0x8] sm:$0xff]
        %v284 = vld [vmem:[%s281 + $0x10] sm:$0xff]
        %v285 = vld [vmem:[%s281 + $0x18] sm:$0xff]
        %287 = vset.pattern.permute.xlu0 0
        %288 = vperm.xlu0 %287, %v282
        %v289 = vpop.permute.xlu0 %288
        %292 = vset.pattern.permute.xlu0 0
        %293 = vperm.xlu0 %292, %v283
        %v294 = vpop.permute.xlu0 %293
        %297 = vset.pattern.permute.xlu0 0
        %298 = vperm.xlu0 %297, %v284
        %v299 = vpop.permute.xlu0 %298
        %302 = vset.pattern.permute.xlu0 0
        %303 = vperm.xlu0 %302, %v285
        %v304 = vpop.permute.xlu0 %303
        %v306 = vmul.f32 %v289, %v239
        %v307 = vmul.f32 %v289, %v240
        %v308 = vmul.f32 %v289, %v241
        %v309 = vmul.f32 %v289, %v242
        %v310 = vmul.f32 %v289, %v243
        %v311 = vmul.f32 %v289, %v244
        %v312 = vmul.f32 %v289, %v245
        %v313 = vmul.f32 %v294, %v239
        %v314 = vmul.f32 %v294, %v240
        %v315 = vmul.f32 %v294, %v241
        %v316 = vmul.f32 %v294, %v242
        %v317 = vmul.f32 %v294, %v243
        %v318 = vmul.f32 %v294, %v244
        %v319 = vmul.f32 %v294, %v245
        %v320 = vmul.f32 %v299, %v239
        %v321 = vmul.f32 %v299, %v240
        %v322 = vmul.f32 %v299, %v241
        %v323 = vmul.f32 %v299, %v242
        %v324 = vmul.f32 %v299, %v243
        %v325 = vmul.f32 %v299, %v244
        %v326 = vmul.f32 %v299, %v245
        %v327 = vmul.f32 %v304, %v239
        %v328 = vmul.f32 %v304, %v240
        %v329 = vmul.f32 %v304, %v241
        %v330 = vmul.f32 %v304, %v242
        %v331 = vmul.f32 %v304, %v243
        %v332 = vmul.f32 %v304, %v244
        %v333 = vmul.f32 %v304, %v245
        %362 = vrot.lane.b32.xlu0 %v306, 127
        %v363 = vpop.permute.xlu0 %362
        %364 = vrot.lane.b32.xlu0 %v307, 127
        %v365 = vpop.permute.xlu0 %364
        %366 = vrot.lane.b32.xlu0 %v308, 127
        %v367 = vpop.permute.xlu0 %366
        %368 = vrot.lane.b32.xlu0 %v309, 127
        %v369 = vpop.permute.xlu0 %368
        %370 = vrot.lane.b32.xlu0 %v310, 127
        %v371 = vpop.permute.xlu0 %370
        %372 = vrot.lane.b32.xlu0 %v311, 127
        %v373 = vpop.permute.xlu0 %372
        %374 = vrot.lane.b32.xlu0 %v312, 127
        %v375 = vpop.permute.xlu0 %374
        %376 = vrot.lane.b32.xlu0 %v313, 127
        %v377 = vpop.permute.xlu0 %376
        %378 = vrot.lane.b32.xlu0 %v314, 127
        %v379 = vpop.permute.xlu0 %378
        %380 = vrot.lane.b32.xlu0 %v315, 127
        %v381 = vpop.permute.xlu0 %380
        %382 = vrot.lane.b32.xlu0 %v316, 127
        %v383 = vpop.permute.xlu0 %382
        %384 = vrot.lane.b32.xlu0 %v317, 127
        %v385 = vpop.permute.xlu0 %384
        %386 = vrot.lane.b32.xlu0 %v318, 127
        %v387 = vpop.permute.xlu0 %386
        %388 = vrot.lane.b32.xlu0 %v319, 127
        %v389 = vpop.permute.xlu0 %388
        %390 = vrot.lane.b32.xlu0 %v320, 127
        %v391 = vpop.permute.xlu0 %390
        %392 = vrot.lane.b32.xlu0 %v321, 127
        %v393 = vpop.permute.xlu0 %392
        %394 = vrot.lane.b32.xlu0 %v322, 127
        %v395 = vpop.permute.xlu0 %394
        %396 = vrot.lane.b32.xlu0 %v323, 127
        %v397 = vpop.permute.xlu0 %396
        %398 = vrot.lane.b32.xlu0 %v324, 127
        %v399 = vpop.permute.xlu0 %398
        %400 = vrot.lane.b32.xlu0 %v325, 127
        %v401 = vpop.permute.xlu0 %400
        %402 = vrot.lane.b32.xlu0 %v326, 127
        %v403 = vpop.permute.xlu0 %402
        %404 = vrot.lane.b32.xlu0 %v327, 127
        %v405 = vpop.permute.xlu0 %404
        %406 = vrot.lane.b32.xlu0 %v328, 127
        %v407 = vpop.permute.xlu0 %406
        %408 = vrot.lane.b32.xlu0 %v329, 127
        %v409 = vpop.permute.xlu0 %408
        %410 = vrot.lane.b32.xlu0 %v330, 127
        %v411 = vpop.permute.xlu0 %410
        %412 = vrot.lane.b32.xlu0 %v331, 127
        %v413 = vpop.permute.xlu0 %412
        %414 = vrot.lane.b32.xlu0 %v332, 127
        %v415 = vpop.permute.xlu0 %414
        %416 = vrot.lane.b32.xlu0 %v333, 127
        %v417 = vpop.permute.xlu0 %416
        %vm418 = vcmask 1039360
        %v419 = vsel %vm418, %v363, %v365
        %v420 = vsel %vm418, %v365, %v367
        %v421 = vsel %vm418, %v367, %v369
        %v422 = vsel %vm418, %v369, %v371
        %v423 = vsel %vm418, %v371, %v373
        %v424 = vsel %vm418, %v373, %v375
        %v425 = vsel %vm418, %v377, %v379
        %v426 = vsel %vm418, %v379, %v381
        %v427 = vsel %vm418, %v381, %v383
        %v428 = vsel %vm418, %v383, %v385
        %v429 = vsel %vm418, %v385, %v387
        %v430 = vsel %vm418, %v387, %v389
        %v431 = vsel %vm418, %v391, %v393
        %v432 = vsel %vm418, %v393, %v395
        %v433 = vsel %vm418, %v395, %v397
        %v434 = vsel %vm418, %v397, %v399
        %v435 = vsel %vm418, %v399, %v401
        %v436 = vsel %vm418, %v401, %v403
        %v437 = vsel %vm418, %v405, %v407
        %v438 = vsel %vm418, %v407, %v409
        %v439 = vsel %vm418, %v409, %v411
        %v440 = vsel %vm418, %v411, %v413
        %v441 = vsel %vm418, %v413, %v415
        %v442 = vsel %vm418, %v415, %v417
        %v471 = vadd.f32 %v253, %v419
        %v472 = vadd.f32 %v254, %v420
        %v473 = vadd.f32 %v255, %v421
        %v474 = vadd.f32 %v256, %v422
        %v475 = vadd.f32 %v257, %v423
        %v476 = vadd.f32 %v258, %v424
        %v477 = vadd.f32 %v259, %v375
        %v478 = vadd.f32 %v260, %v425
        %v479 = vadd.f32 %v261, %v426
        %v480 = vadd.f32 %v262, %v427
        %v481 = vadd.f32 %v263, %v428
        %v482 = vadd.f32 %v264, %v429
        %v483 = vadd.f32 %v265, %v430
        %v484 = vadd.f32 %v266, %v389
        %v485 = vadd.f32 %v267, %v431
        %v486 = vadd.f32 %v268, %v432
        %v487 = vadd.f32 %v269, %v433
        %v488 = vadd.f32 %v270, %v434
        %v489 = vadd.f32 %v271, %v435
        %v490 = vadd.f32 %v272, %v436
        %v491 = vadd.f32 %v273, %v403
        %v492 = vadd.f32 %v274, %v437
        %v493 = vadd.f32 %v275, %v438
        %v494 = vadd.f32 %v276, %v439
        %v495 = vadd.f32 %v277, %v440
        %v496 = vadd.f32 %v278, %v441
        %v497 = vadd.f32 %v279, %v442
        %v498 = vadd.f32 %v280, %v417
        %s499 = scalar_lea.vmem %s1, 64
        %v500 = vld [vmem:[%s499] sm:$0xff]
        %v501 = vld [vmem:[%s499 + $0x8] sm:$0xff]
        %v502 = vld [vmem:[%s499 + $0x10] sm:$0xff]
        %v503 = vld [vmem:[%s499 + $0x18] sm:$0xff]
        %505 = vset.pattern.permute.xlu0 0
        %506 = vperm.xlu0 %505, %v500
        %v507 = vpop.permute.xlu0 %506
        %510 = vset.pattern.permute.xlu0 0
        %511 = vperm.xlu0 %510, %v501
        %v512 = vpop.permute.xlu0 %511
        %515 = vset.pattern.permute.xlu0 0
        %516 = vperm.xlu0 %515, %v502
        %v517 = vpop.permute.xlu0 %516
        %520 = vset.pattern.permute.xlu0 0
        %521 = vperm.xlu0 %520, %v503
        %v522 = vpop.permute.xlu0 %521
        %v524 = vmul.f32 %v507, %v239
        %v525 = vmul.f32 %v507, %v240
        %v526 = vmul.f32 %v507, %v241
        %v527 = vmul.f32 %v507, %v242
        %v528 = vmul.f32 %v507, %v243
        %v529 = vmul.f32 %v507, %v244
        %v530 = vmul.f32 %v507, %v245
        %v531 = vmul.f32 %v512, %v239
        %v532 = vmul.f32 %v512, %v240
        %v533 = vmul.f32 %v512, %v241
        %v534 = vmul.f32 %v512, %v242
        %v535 = vmul.f32 %v512, %v243
        %v536 = vmul.f32 %v512, %v244
        %v537 = vmul.f32 %v512, %v245
        %v538 = vmul.f32 %v517, %v239
        %v539 = vmul.f32 %v517, %v240
        %v540 = vmul.f32 %v517, %v241
        %v541 = vmul.f32 %v517, %v242
        %v542 = vmul.f32 %v517, %v243
        %v543 = vmul.f32 %v517, %v244
        %v544 = vmul.f32 %v517, %v245
        %v545 = vmul.f32 %v522, %v239
        %v546 = vmul.f32 %v522, %v240
        %v547 = vmul.f32 %v522, %v241
        %v548 = vmul.f32 %v522, %v242
        %v549 = vmul.f32 %v522, %v243
        %v550 = vmul.f32 %v522, %v244
        %v551 = vmul.f32 %v522, %v245
        %580 = vrot.lane.b32.xlu0 %v524, 126
        %v581 = vpop.permute.xlu0 %580
        %582 = vrot.lane.b32.xlu0 %v525, 126
        %v583 = vpop.permute.xlu0 %582
        %584 = vrot.lane.b32.xlu0 %v526, 126
        %v585 = vpop.permute.xlu0 %584
        %586 = vrot.lane.b32.xlu0 %v527, 126
        %v587 = vpop.permute.xlu0 %586
        %588 = vrot.lane.b32.xlu0 %v528, 126
        %v589 = vpop.permute.xlu0 %588
        %590 = vrot.lane.b32.xlu0 %v529, 126
        %v591 = vpop.permute.xlu0 %590
        %592 = vrot.lane.b32.xlu0 %v530, 126
        %v593 = vpop.permute.xlu0 %592
        %594 = vrot.lane.b32.xlu0 %v531, 126
        %v595 = vpop.permute.xlu0 %594
        %596 = vrot.lane.b32.xlu0 %v532, 126
        %v597 = vpop.permute.xlu0 %596
        %598 = vrot.lane.b32.xlu0 %v533, 126
        %v599 = vpop.permute.xlu0 %598
        %600 = vrot.lane.b32.xlu0 %v534, 126
        %v601 = vpop.permute.xlu0 %600
        %602 = vrot.lane.b32.xlu0 %v535, 126
        %v603 = vpop.permute.xlu0 %602
        %604 = vrot.lane.b32.xlu0 %v536, 126
        %v605 = vpop.permute.xlu0 %604
        %606 = vrot.lane.b32.xlu0 %v537, 126
        %v607 = vpop.permute.xlu0 %606
        %608 = vrot.lane.b32.xlu0 %v538, 126
        %v609 = vpop.permute.xlu0 %608
        %610 = vrot.lane.b32.xlu0 %v539, 126
        %v611 = vpop.permute.xlu0 %610
        %612 = vrot.lane.b32.xlu0 %v540, 126
        %v613 = vpop.permute.xlu0 %612
        %614 = vrot.lane.b32.xlu0 %v541, 126
        %v615 = vpop.permute.xlu0 %614
        %616 = vrot.lane.b32.xlu0 %v542, 126
        %v617 = vpop.permute.xlu0 %616
        %618 = vrot.lane.b32.xlu0 %v543, 126
        %v619 = vpop.permute.xlu0 %618
        %620 = vrot.lane.b32.xlu0 %v544, 126
        %v621 = vpop.permute.xlu0 %620
        %622 = vrot.lane.b32.xlu0 %v545, 126
        %v623 = vpop.permute.xlu0 %622
        %624 = vrot.lane.b32.xlu0 %v546, 126
        %v625 = vpop.permute.xlu0 %624
        %626 = vrot.lane.b32.xlu0 %v547, 126
        %v627 = vpop.permute.xlu0 %626
        %628 = vrot.lane.b32.xlu0 %v548, 126
        %v629 = vpop.permute.xlu0 %628
        %630 = vrot.lane.b32.xlu0 %v549, 126
        %v631 = vpop.permute.xlu0 %630
        %632 = vrot.lane.b32.xlu0 %v550, 126
        %v633 = vpop.permute.xlu0 %632
        %634 = vrot.lane.b32.xlu0 %v551, 126
        %v635 = vpop.permute.xlu0 %634
        %vm636 = vcmask 1031168
        %v637 = vsel %vm636, %v581, %v583
        %v638 = vsel %vm636, %v583, %v585
        %v639 = vsel %vm636, %v585, %v587
        %v640 = vsel %vm636, %v587, %v589
        %v641 = vsel %vm636, %v589, %v591
        %v642 = vsel %vm636, %v591, %v593
        %v643 = vsel %vm636, %v595, %v597
        %v644 = vsel %vm636, %v597, %v599
        %v645 = vsel %vm636, %v599, %v601
        %v646 = vsel %vm636, %v601, %v603
        %v647 = vsel %vm636, %v603, %v605
        %v648 = vsel %vm636, %v605, %v607
        %v649 = vsel %vm636, %v609, %v611
        %v650 = vsel %vm636, %v611, %v613
        %v651 = vsel %vm636, %v613, %v615
        %v652 = vsel %vm636, %v615, %v617
        %v653 = vsel %vm636, %v617, %v619
        %v654 = vsel %vm636, %v619, %v621
        %v655 = vsel %vm636, %v623, %v625
        %v656 = vsel %vm636, %v625, %v627
        %v657 = vsel %vm636, %v627, %v629
        %v658 = vsel %vm636, %v629, %v631
        %v659 = vsel %vm636, %v631, %v633
        %v660 = vsel %vm636, %v633, %v635
        %v689 = vadd.f32 %v471, %v637
        %v690 = vadd.f32 %v472, %v638
        %v691 = vadd.f32 %v473, %v639
        %v692 = vadd.f32 %v474, %v640
        %v693 = vadd.f32 %v475, %v641
        %v694 = vadd.f32 %v476, %v642
        %v695 = vadd.f32 %v477, %v593
        %v696 = vadd.f32 %v478, %v643
        %v697 = vadd.f32 %v479, %v644
        %v698 = vadd.f32 %v480, %v645
        %v699 = vadd.f32 %v481, %v646
        %v700 = vadd.f32 %v482, %v647
        %v701 = vadd.f32 %v483, %v648
        %v702 = vadd.f32 %v484, %v607
        %v703 = vadd.f32 %v485, %v649
        %v704 = vadd.f32 %v486, %v650
        %v705 = vadd.f32 %v487, %v651
        %v706 = vadd.f32 %v488, %v652
        %v707 = vadd.f32 %v489, %v653
        %v708 = vadd.f32 %v490, %v654
        %v709 = vadd.f32 %v491, %v621
        %v710 = vadd.f32 %v492, %v655
        %v711 = vadd.f32 %v493, %v656
        %v712 = vadd.f32 %v494, %v657
        %v713 = vadd.f32 %v495, %v658
        %v714 = vadd.f32 %v496, %v659
        %v715 = vadd.f32 %v497, %v660
        %v716 = vadd.f32 %v498, %v635
        %s717 = scalar_lea.vmem %s1, 96
        %v718 = vld [vmem:[%s717] sm:$0xff]
        %v719 = vld [vmem:[%s717 + $0x8] sm:$0xff]
        %v720 = vld [vmem:[%s717 + $0x10] sm:$0xff]
        %v721 = vld [vmem:[%s717 + $0x18] sm:$0xff]
        %723 = vset.pattern.permute.xlu0 0
        %724 = vperm.xlu0 %723, %v718
        %v725 = vpop.permute.xlu0 %724
        %728 = vset.pattern.permute.xlu0 0
        %729 = vperm.xlu0 %728, %v719
        %v730 = vpop.permute.xlu0 %729
        %733 = vset.pattern.permute.xlu0 0
        %734 = vperm.xlu0 %733, %v720
        %v735 = vpop.permute.xlu0 %734
        %738 = vset.pattern.permute.xlu0 0
        %739 = vperm.xlu0 %738, %v721
        %v740 = vpop.permute.xlu0 %739
        %v742 = vmul.f32 %v725, %v239
        %v743 = vmul.f32 %v725, %v240
        %v744 = vmul.f32 %v725, %v241
        %v745 = vmul.f32 %v725, %v242
        %v746 = vmul.f32 %v725, %v243
        %v747 = vmul.f32 %v725, %v244
        %v748 = vmul.f32 %v725, %v245
        %v749 = vmul.f32 %v730, %v239
        %v750 = vmul.f32 %v730, %v240
        %v751 = vmul.f32 %v730, %v241
        %v752 = vmul.f32 %v730, %v242
        %v753 = vmul.f32 %v730, %v243
        %v754 = vmul.f32 %v730, %v244
        %v755 = vmul.f32 %v730, %v245
        %v756 = vmul.f32 %v735, %v239
        %v757 = vmul.f32 %v735, %v240
        %v758 = vmul.f32 %v735, %v241
        %v759 = vmul.f32 %v735, %v242
        %v760 = vmul.f32 %v735, %v243
        %v761 = vmul.f32 %v735, %v244
        %v762 = vmul.f32 %v735, %v245
        %v763 = vmul.f32 %v740, %v239
        %v764 = vmul.f32 %v740, %v240
        %v765 = vmul.f32 %v740, %v241
        %v766 = vmul.f32 %v740, %v242
        %v767 = vmul.f32 %v740, %v243
        %v768 = vmul.f32 %v740, %v244
        %v769 = vmul.f32 %v740, %v245
        %798 = vrot.lane.b32.xlu0 %v742, 98
        %v799 = vpop.permute.xlu0 %798
        %800 = vrot.lane.b32.xlu0 %v743, 98
        %v801 = vpop.permute.xlu0 %800
        %802 = vrot.lane.b32.xlu0 %v744, 98
        %v803 = vpop.permute.xlu0 %802
        %804 = vrot.lane.b32.xlu0 %v745, 98
        %v805 = vpop.permute.xlu0 %804
        %806 = vrot.lane.b32.xlu0 %v746, 98
        %v807 = vpop.permute.xlu0 %806
        %808 = vrot.lane.b32.xlu0 %v747, 98
        %v809 = vpop.permute.xlu0 %808
        %810 = vrot.lane.b32.xlu0 %v748, 98
        %v811 = vpop.permute.xlu0 %810
        %812 = vrot.lane.b32.xlu0 %v749, 98
        %v813 = vpop.permute.xlu0 %812
        %814 = vrot.lane.b32.xlu0 %v750, 98
        %v815 = vpop.permute.xlu0 %814
        %816 = vrot.lane.b32.xlu0 %v751, 98
        %v817 = vpop.permute.xlu0 %816
        %818 = vrot.lane.b32.xlu0 %v752, 98
        %v819 = vpop.permute.xlu0 %818
        %820 = vrot.lane.b32.xlu0 %v753, 98
        %v821 = vpop.permute.xlu0 %820
        %822 = vrot.lane.b32.xlu0 %v754, 98
        %v823 = vpop.permute.xlu0 %822
        %824 = vrot.lane.b32.xlu0 %v755, 98
        %v825 = vpop.permute.xlu0 %824
        %826 = vrot.lane.b32.xlu0 %v756, 98
        %v827 = vpop.permute.xlu0 %826
        %828 = vrot.lane.b32.xlu0 %v757, 98
        %v829 = vpop.permute.xlu0 %828
        %830 = vrot.lane.b32.xlu0 %v758, 98
        %v831 = vpop.permute.xlu0 %830
        %832 = vrot.lane.b32.xlu0 %v759, 98
        %v833 = vpop.permute.xlu0 %832
        %834 = vrot.lane.b32.xlu0 %v760, 98
        %v835 = vpop.permute.xlu0 %834
        %836 = vrot.lane.b32.xlu0 %v761, 98
        %v837 = vpop.permute.xlu0 %836
        %838 = vrot.lane.b32.xlu0 %v762, 98
        %v839 = vpop.permute.xlu0 %838
        %840 = vrot.lane.b32.xlu0 %v763, 98
        %v841 = vpop.permute.xlu0 %840
        %842 = vrot.lane.b32.xlu0 %v764, 98
        %v843 = vpop.permute.xlu0 %842
        %844 = vrot.lane.b32.xlu0 %v765, 98
        %v845 = vpop.permute.xlu0 %844
        %846 = vrot.lane.b32.xlu0 %v766, 98
        %v847 = vpop.permute.xlu0 %846
        %848 = vrot.lane.b32.xlu0 %v767, 98
        %v849 = vpop.permute.xlu0 %848
        %850 = vrot.lane.b32.xlu0 %v768, 98
        %v851 = vpop.permute.xlu0 %850
        %852 = vrot.lane.b32.xlu0 %v769, 98
        %v853 = vpop.permute.xlu0 %852
        %vm854 = vcmask 801792
        %v855 = vsel %vm854, %v799, %v801
        %v856 = vsel %vm854, %v801, %v803
        %v857 = vsel %vm854, %v803, %v805
        %v858 = vsel %vm854, %v805, %v807
        %v859 = vsel %vm854, %v807, %v809
        %v860 = vsel %vm854, %v809, %v811
        %v861 = vsel %vm854, %v813, %v815
        %v862 = vsel %vm854, %v815, %v817
        %v863 = vsel %vm854, %v817, %v819
        %v864 = vsel %vm854, %v819, %v821
        %v865 = vsel %vm854, %v821, %v823
        %v866 = vsel %vm854, %v823, %v825
        %v867 = vsel %vm854, %v827, %v829
        %v868 = vsel %vm854, %v829, %v831
        %v869 = vsel %vm854, %v831, %v833
        %v870 = vsel %vm854, %v833, %v835
        %v871 = vsel %vm854, %v835, %v837
        %v872 = vsel %vm854, %v837, %v839
        %v873 = vsel %vm854, %v841, %v843
        %v874 = vsel %vm854, %v843, %v845
        %v875 = vsel %vm854, %v845, %v847
        %v876 = vsel %vm854, %v847, %v849
        %v877 = vsel %vm854, %v849, %v851
        %v878 = vsel %vm854, %v851, %v853
        %v907 = vadd.f32 %v689, %v855
        %v908 = vadd.f32 %v690, %v856
        %v909 = vadd.f32 %v691, %v857
        %v910 = vadd.f32 %v692, %v858
        %v911 = vadd.f32 %v693, %v859
        %v912 = vadd.f32 %v694, %v860
        %v913 = vadd.f32 %v695, %v811
        %v914 = vadd.f32 %v696, %v861
        %v915 = vadd.f32 %v697, %v862
        %v916 = vadd.f32 %v698, %v863
        %v917 = vadd.f32 %v699, %v864
        %v918 = vadd.f32 %v700, %v865
        %v919 = vadd.f32 %v701, %v866
        %v920 = vadd.f32 %v702, %v825
        %v921 = vadd.f32 %v703, %v867
        %v922 = vadd.f32 %v704, %v868
        %v923 = vadd.f32 %v705, %v869
        %v924 = vadd.f32 %v706, %v870
        %v925 = vadd.f32 %v707, %v871
        %v926 = vadd.f32 %v708, %v872
        %v927 = vadd.f32 %v709, %v839
        %v928 = vadd.f32 %v710, %v873
        %v929 = vadd.f32 %v711, %v874
        %v930 = vadd.f32 %v712, %v875
        %v931 = vadd.f32 %v713, %v876
        %v932 = vadd.f32 %v714, %v877
        %v933 = vadd.f32 %v715, %v878
        %v934 = vadd.f32 %v716, %v853
        %s935 = scalar_lea.vmem %s1, 128
        %v936 = vld [vmem:[%s935] sm:$0xff]
        %v937 = vld [vmem:[%s935 + $0x8] sm:$0xff]
        %v938 = vld [vmem:[%s935 + $0x10] sm:$0xff]
        %v939 = vld [vmem:[%s935 + $0x18] sm:$0xff]
        %941 = vset.pattern.permute.xlu0 0
        %942 = vperm.xlu0 %941, %v936
        %v943 = vpop.permute.xlu0 %942
        %946 = vset.pattern.permute.xlu0 0
        %947 = vperm.xlu0 %946, %v937
        %v948 = vpop.permute.xlu0 %947
        %951 = vset.pattern.permute.xlu0 0
        %952 = vperm.xlu0 %951, %v938
        %v953 = vpop.permute.xlu0 %952
        %956 = vset.pattern.permute.xlu0 0
        %957 = vperm.xlu0 %956, %v939
        %v958 = vpop.permute.xlu0 %957
        %v960 = vmul.f32 %v943, %v239
        %v961 = vmul.f32 %v943, %v240
        %v962 = vmul.f32 %v943, %v241
        %v963 = vmul.f32 %v943, %v242
        %v964 = vmul.f32 %v943, %v243
        %v965 = vmul.f32 %v943, %v244
        %v966 = vmul.f32 %v943, %v245
        %v967 = vmul.f32 %v948, %v239
        %v968 = vmul.f32 %v948, %v240
        %v969 = vmul.f32 %v948, %v241
        %v970 = vmul.f32 %v948, %v242
        %v971 = vmul.f32 %v948, %v243
        %v972 = vmul.f32 %v948, %v244
        %v973 = vmul.f32 %v948, %v245
        %v974 = vmul.f32 %v953, %v239
        %v975 = vmul.f32 %v953, %v240
        %v976 = vmul.f32 %v953, %v241
        %v977 = vmul.f32 %v953, %v242
        %v978 = vmul.f32 %v953, %v243
        %v979 = vmul.f32 %v953, %v244
        %v980 = vmul.f32 %v953, %v245
        %v981 = vmul.f32 %v958, %v239
        %v982 = vmul.f32 %v958, %v240
        %v983 = vmul.f32 %v958, %v241
        %v984 = vmul.f32 %v958, %v242
        %v985 = vmul.f32 %v958, %v243
        %v986 = vmul.f32 %v958, %v244
        %v987 = vmul.f32 %v958, %v245
        %1016 = vrot.lane.b32.xlu0 %v960, 97
        %v1017 = vpop.permute.xlu0 %1016
        %1018 = vrot.lane.b32.xlu0 %v961, 97
        %v1019 = vpop.permute.xlu0 %1018
        %1020 = vrot.lane.b32.xlu0 %v962, 97
        %v1021 = vpop.permute.xlu0 %1020
        %1022 = vrot.lane.b32.xlu0 %v963, 97
        %v1023 = vpop.permute.xlu0 %1022
        %1024 = vrot.lane.b32.xlu0 %v964, 97
        %v1025 = vpop.permute.xlu0 %1024
        %1026 = vrot.lane.b32.xlu0 %v965, 97
        %v1027 = vpop.permute.xlu0 %1026
        %1028 = vrot.lane.b32.xlu0 %v966, 97
        %v1029 = vpop.permute.xlu0 %1028
        %1030 = vrot.lane.b32.xlu0 %v967, 97
        %v1031 = vpop.permute.xlu0 %1030
        %1032 = vrot.lane.b32.xlu0 %v968, 97
        %v1033 = vpop.permute.xlu0 %1032
        %1034 = vrot.lane.b32.xlu0 %v969, 97
        %v1035 = vpop.permute.xlu0 %1034
        %1036 = vrot.lane.b32.xlu0 %v970, 97
        %v1037 = vpop.permute.xlu0 %1036
        %1038 = vrot.lane.b32.xlu0 %v971, 97
        %v1039 = vpop.permute.xlu0 %1038
        %1040 = vrot.lane.b32.xlu0 %v972, 97
        %v1041 = vpop.permute.xlu0 %1040
        %1042 = vrot.lane.b32.xlu0 %v973, 97
        %v1043 = vpop.permute.xlu0 %1042
        %1044 = vrot.lane.b32.xlu0 %v974, 97
        %v1045 = vpop.permute.xlu0 %1044
        %1046 = vrot.lane.b32.xlu0 %v975, 97
        %v1047 = vpop.permute.xlu0 %1046
        %1048 = vrot.lane.b32.xlu0 %v976, 97
        %v1049 = vpop.permute.xlu0 %1048
        %1050 = vrot.lane.b32.xlu0 %v977, 97
        %v1051 = vpop.permute.xlu0 %1050
        %1052 = vrot.lane.b32.xlu0 %v978, 97
        %v1053 = vpop.permute.xlu0 %1052
        %1054 = vrot.lane.b32.xlu0 %v979, 97
        %v1055 = vpop.permute.xlu0 %1054
        %1056 = vrot.lane.b32.xlu0 %v980, 97
        %v1057 = vpop.permute.xlu0 %1056
        %1058 = vrot.lane.b32.xlu0 %v981, 97
        %v1059 = vpop.permute.xlu0 %1058
        %1060 = vrot.lane.b32.xlu0 %v982, 97
        %v1061 = vpop.permute.xlu0 %1060
        %1062 = vrot.lane.b32.xlu0 %v983, 97
        %v1063 = vpop.permute.xlu0 %1062
        %1064 = vrot.lane.b32.xlu0 %v984, 97
        %v1065 = vpop.permute.xlu0 %1064
        %1066 = vrot.lane.b32.xlu0 %v985, 97
        %v1067 = vpop.permute.xlu0 %1066
        %1068 = vrot.lane.b32.xlu0 %v986, 97
        %v1069 = vpop.permute.xlu0 %1068
        %1070 = vrot.lane.b32.xlu0 %v987, 97
        %v1071 = vpop.permute.xlu0 %1070
        %vm1072 = vcmask 793600
        %v1073 = vsel %vm1072, %v1017, %v1019
        %v1074 = vsel %vm1072, %v1019, %v1021
        %v1075 = vsel %vm1072, %v1021, %v1023
        %v1076 = vsel %vm1072, %v1023, %v1025
        %v1077 = vsel %vm1072, %v1025, %v1027
        %v1078 = vsel %vm1072, %v1027, %v1029
        %v1079 = vsel %vm1072, %v1031, %v1033
        %v1080 = vsel %vm1072, %v1033, %v1035
        %v1081 = vsel %vm1072, %v1035, %v1037
        %v1082 = vsel %vm1072, %v1037, %v1039
        %v1083 = vsel %vm1072, %v1039, %v1041
        %v1084 = vsel %vm1072, %v1041, %v1043
        %v1085 = vsel %vm1072, %v1045, %v1047
        %v1086 = vsel %vm1072, %v1047, %v1049
        %v1087 = vsel %vm1072, %v1049, %v1051
        %v1088 = vsel %vm1072, %v1051, %v1053
        %v1089 = vsel %vm1072, %v1053, %v1055
        %v1090 = vsel %vm1072, %v1055, %v1057
        %v1091 = vsel %vm1072, %v1059, %v1061
        %v1092 = vsel %vm1072, %v1061, %v1063
        %v1093 = vsel %vm1072, %v1063, %v1065
        %v1094 = vsel %vm1072, %v1065, %v1067
        %v1095 = vsel %vm1072, %v1067, %v1069
        %v1096 = vsel %vm1072, %v1069, %v1071
        %v1125 = vadd.f32 %v907, %v1073
        %v1126 = vadd.f32 %v908, %v1074
        %v1127 = vadd.f32 %v909, %v1075
        %v1128 = vadd.f32 %v910, %v1076
        %v1129 = vadd.f32 %v911, %v1077
        %v1130 = vadd.f32 %v912, %v1078
        %v1131 = vadd.f32 %v913, %v1029
        %v1132 = vadd.f32 %v914, %v1079
        %v1133 = vadd.f32 %v915, %v1080
        %v1134 = vadd.f32 %v916, %v1081
        %v1135 = vadd.f32 %v917, %v1082
        %v1136 = vadd.f32 %v918, %v1083
        %v1137 = vadd.f32 %v919, %v1084
        %v1138 = vadd.f32 %v920, %v1043
        %v1139 = vadd.f32 %v921, %v1085
        %v1140 = vadd.f32 %v922, %v1086
        %v1141 = vadd.f32 %v923, %v1087
        %v1142 = vadd.f32 %v924, %v1088
        %v1143 = vadd.f32 %v925, %v1089
        %v1144 = vadd.f32 %v926, %v1090
        %v1145 = vadd.f32 %v927, %v1057
        %v1146 = vadd.f32 %v928, %v1091
        %v1147 = vadd.f32 %v929, %v1092
        %v1148 = vadd.f32 %v930, %v1093
        %v1149 = vadd.f32 %v931, %v1094
        %v1150 = vadd.f32 %v932, %v1095
        %v1151 = vadd.f32 %v933, %v1096
        %v1152 = vadd.f32 %v934, %v1071
        %s1153 = scalar_lea.vmem %s1, 160
        %v1154 = vld [vmem:[%s1153] sm:$0xff]
        %v1155 = vld [vmem:[%s1153 + $0x8] sm:$0xff]
        %v1156 = vld [vmem:[%s1153 + $0x10] sm:$0xff]
        %v1157 = vld [vmem:[%s1153 + $0x18] sm:$0xff]
        %1159 = vset.pattern.permute.xlu0 0
        %1160 = vperm.xlu0 %1159, %v1154
        %v1161 = vpop.permute.xlu0 %1160
        %1164 = vset.pattern.permute.xlu0 0
        %1165 = vperm.xlu0 %1164, %v1155
        %v1166 = vpop.permute.xlu0 %1165
        %1169 = vset.pattern.permute.xlu0 0
        %1170 = vperm.xlu0 %1169, %v1156
        %v1171 = vpop.permute.xlu0 %1170
        %1174 = vset.pattern.permute.xlu0 0
        %1175 = vperm.xlu0 %1174, %v1157
        %v1176 = vpop.permute.xlu0 %1175
        %v1178 = vmul.f32 %v1161, %v239
        %v1179 = vmul.f32 %v1161, %v240
        %v1180 = vmul.f32 %v1161, %v241
        %v1181 = vmul.f32 %v1161, %v242
        %v1182 = vmul.f32 %v1161, %v243
        %v1183 = vmul.f32 %v1161, %v244
        %v1184 = vmul.f32 %v1161, %v245
        %v1185 = vmul.f32 %v1166, %v239
        %v1186 = vmul.f32 %v1166, %v240
        %v1187 = vmul.f32 %v1166, %v241
        %v1188 = vmul.f32 %v1166, %v242
        %v1189 = vmul.f32 %v1166, %v243
        %v1190 = vmul.f32 %v1166, %v244
        %v1191 = vmul.f32 %v1166, %v245
        %v1192 = vmul.f32 %v1171, %v239
        %v1193 = vmul.f32 %v1171, %v240
        %v1194 = vmul.f32 %v1171, %v241
        %v1195 = vmul.f32 %v1171, %v242
        %v1196 = vmul.f32 %v1171, %v243
        %v1197 = vmul.f32 %v1171, %v244
        %v1198 = vmul.f32 %v1171, %v245
        %v1199 = vmul.f32 %v1176, %v239
        %v1200 = vmul.f32 %v1176, %v240
        %v1201 = vmul.f32 %v1176, %v241
        %v1202 = vmul.f32 %v1176, %v242
        %v1203 = vmul.f32 %v1176, %v243
        %v1204 = vmul.f32 %v1176, %v244
        %v1205 = vmul.f32 %v1176, %v245
        %1234 = vrot.lane.b32.xlu0 %v1178, 96
        %v1235 = vpop.permute.xlu0 %1234
        %1236 = vrot.lane.b32.xlu0 %v1179, 96
        %v1237 = vpop.permute.xlu0 %1236
        %1238 = vrot.lane.b32.xlu0 %v1180, 96
        %v1239 = vpop.permute.xlu0 %1238
        %1240 = vrot.lane.b32.xlu0 %v1181, 96
        %v1241 = vpop.permute.xlu0 %1240
        %1242 = vrot.lane.b32.xlu0 %v1182, 96
        %v1243 = vpop.permute.xlu0 %1242
        %1244 = vrot.lane.b32.xlu0 %v1183, 96
        %v1245 = vpop.permute.xlu0 %1244
        %1246 = vrot.lane.b32.xlu0 %v1184, 96
        %v1247 = vpop.permute.xlu0 %1246
        %1248 = vrot.lane.b32.xlu0 %v1185, 96
        %v1249 = vpop.permute.xlu0 %1248
        %1250 = vrot.lane.b32.xlu0 %v1186, 96
        %v1251 = vpop.permute.xlu0 %1250
        %1252 = vrot.lane.b32.xlu0 %v1187, 96
        %v1253 = vpop.permute.xlu0 %1252
        %1254 = vrot.lane.b32.xlu0 %v1188, 96
        %v1255 = vpop.permute.xlu0 %1254
        %1256 = vrot.lane.b32.xlu0 %v1189, 96
        %v1257 = vpop.permute.xlu0 %1256
        %1258 = vrot.lane.b32.xlu0 %v1190, 96
        %v1259 = vpop.permute.xlu0 %1258
        %1260 = vrot.lane.b32.xlu0 %v1191, 96
        %v1261 = vpop.permute.xlu0 %1260
        %1262 = vrot.lane.b32.xlu0 %v1192, 96
        %v1263 = vpop.permute.xlu0 %1262
        %1264 = vrot.lane.b32.xlu0 %v1193, 96
        %v1265 = vpop.permute.xlu0 %1264
        %1266 = vrot.lane.b32.xlu0 %v1194, 96
        %v1267 = vpop.permute.xlu0 %1266
        %1268 = vrot.lane.b32.xlu0 %v1195, 96
        %v1269 = vpop.permute.xlu0 %1268
        %1270 = vrot.lane.b32.xlu0 %v1196, 96
        %v1271 = vpop.permute.xlu0 %1270
        %1272 = vrot.lane.b32.xlu0 %v1197, 96
        %v1273 = vpop.permute.xlu0 %1272
        %1274 = vrot.lane.b32.xlu0 %v1198, 96
        %v1275 = vpop.permute.xlu0 %1274
        %1276 = vrot.lane.b32.xlu0 %v1199, 96
        %v1277 = vpop.permute.xlu0 %1276
        %1278 = vrot.lane.b32.xlu0 %v1200, 96
        %v1279 = vpop.permute.xlu0 %1278
        %1280 = vrot.lane.b32.xlu0 %v1201, 96
        %v1281 = vpop.permute.xlu0 %1280
        %1282 = vrot.lane.b32.xlu0 %v1202, 96
        %v1283 = vpop.permute.xlu0 %1282
        %1284 = vrot.lane.b32.xlu0 %v1203, 96
        %v1285 = vpop.permute.xlu0 %1284
        %1286 = vrot.lane.b32.xlu0 %v1204, 96
        %v1287 = vpop.permute.xlu0 %1286
        %1288 = vrot.lane.b32.xlu0 %v1205, 96
        %v1289 = vpop.permute.xlu0 %1288
        %vm1290 = vcmask 785408
        %v1291 = vsel %vm1290, %v1235, %v1237
        %v1292 = vsel %vm1290, %v1237, %v1239
        %v1293 = vsel %vm1290, %v1239, %v1241
        %v1294 = vsel %vm1290, %v1241, %v1243
        %v1295 = vsel %vm1290, %v1243, %v1245
        %v1296 = vsel %vm1290, %v1245, %v1247
        %v1297 = vsel %vm1290, %v1249, %v1251
        %v1298 = vsel %vm1290, %v1251, %v1253
        %v1299 = vsel %vm1290, %v1253, %v1255
        %v1300 = vsel %vm1290, %v1255, %v1257
        %v1301 = vsel %vm1290, %v1257, %v1259
        %v1302 = vsel %vm1290, %v1259, %v1261
        %v1303 = vsel %vm1290, %v1263, %v1265
        %v1304 = vsel %vm1290, %v1265, %v1267
        %v1305 = vsel %vm1290, %v1267, %v1269
        %v1306 = vsel %vm1290, %v1269, %v1271
        %v1307 = vsel %vm1290, %v1271, %v1273
        %v1308 = vsel %vm1290, %v1273, %v1275
        %v1309 = vsel %vm1290, %v1277, %v1279
        %v1310 = vsel %vm1290, %v1279, %v1281
        %v1311 = vsel %vm1290, %v1281, %v1283
        %v1312 = vsel %vm1290, %v1283, %v1285
        %v1313 = vsel %vm1290, %v1285, %v1287
        %v1314 = vsel %vm1290, %v1287, %v1289
        %v1343 = vadd.f32 %v1125, %v1291
        %v1344 = vadd.f32 %v1126, %v1292
        %v1345 = vadd.f32 %v1127, %v1293
        %v1346 = vadd.f32 %v1128, %v1294
        %v1347 = vadd.f32 %v1129, %v1295
        %v1348 = vadd.f32 %v1130, %v1296
        %v1349 = vadd.f32 %v1131, %v1247
        %v1350 = vadd.f32 %v1132, %v1297
        %v1351 = vadd.f32 %v1133, %v1298
        %v1352 = vadd.f32 %v1134, %v1299
        %v1353 = vadd.f32 %v1135, %v1300
        %v1354 = vadd.f32 %v1136, %v1301
        %v1355 = vadd.f32 %v1137, %v1302
        %v1356 = vadd.f32 %v1138, %v1261
        %v1357 = vadd.f32 %v1139, %v1303
        %v1358 = vadd.f32 %v1140, %v1304
        %v1359 = vadd.f32 %v1141, %v1305
        %v1360 = vadd.f32 %v1142, %v1306
        %v1361 = vadd.f32 %v1143, %v1307
        %v1362 = vadd.f32 %v1144, %v1308
        %v1363 = vadd.f32 %v1145, %v1275
        %v1364 = vadd.f32 %v1146, %v1309
        %v1365 = vadd.f32 %v1147, %v1310
        %v1366 = vadd.f32 %v1148, %v1311
        %v1367 = vadd.f32 %v1149, %v1312
        %v1368 = vadd.f32 %v1150, %v1313
        %v1369 = vadd.f32 %v1151, %v1314
        %v1370 = vadd.f32 %v1152, %v1289
        %s1371 = scalar_lea.vmem %s1, 192
        %v1372 = vld [vmem:[%s1371] sm:$0xff]
        %v1373 = vld [vmem:[%s1371 + $0x8] sm:$0xff]
        %v1374 = vld [vmem:[%s1371 + $0x10] sm:$0xff]
        %v1375 = vld [vmem:[%s1371 + $0x18] sm:$0xff]
        %v1376 = vld [vmem:[%s206] sm:$0xff]
        %1378 = vset.pattern.permute.xlu0 0
        %1379 = vperm.xlu0 %1378, %v1372
        %v1380 = vpop.permute.xlu0 %1379
        %1383 = vset.pattern.permute.xlu0 0
        %1384 = vperm.xlu0 %1383, %v1373
        %v1385 = vpop.permute.xlu0 %1384
        %1388 = vset.pattern.permute.xlu0 0
        %1389 = vperm.xlu0 %1388, %v1374
        %v1390 = vpop.permute.xlu0 %1389
        %1393 = vset.pattern.permute.xlu0 0
        %1394 = vperm.xlu0 %1393, %v1375
        %v1395 = vpop.permute.xlu0 %1394
        %v1398 = vperm.slane %v1376, 0
        %v1399 = vperm.slane %v1376, 1
        %v1400 = vperm.slane %v1376, 2
        %v1401 = vperm.slane %v1376, 3
        %v1402 = vperm.slane %v1376, 4
        %v1403 = vperm.slane %v1376, 5
        %v1404 = vperm.slane %v1376, 6
        %v1405 = vperm.slane %v1376, 7
        %v1414 = vmul.f32 %v1380, %v1398
        %v1415 = vmul.f32 %v1380, %v1399
        %v1416 = vmul.f32 %v1380, %v1400
        %v1417 = vmul.f32 %v1380, %v1401
        %v1418 = vmul.f32 %v1380, %v1402
        %v1419 = vmul.f32 %v1380, %v1403
        %v1420 = vmul.f32 %v1380, %v1404
        %v1421 = vmul.f32 %v1380, %v1405
        %v1422 = vmul.f32 %v1385, %v1398
        %v1423 = vmul.f32 %v1385, %v1399
        %v1424 = vmul.f32 %v1385, %v1400
        %v1425 = vmul.f32 %v1385, %v1401
        %v1426 = vmul.f32 %v1385, %v1402
        %v1427 = vmul.f32 %v1385, %v1403
        %v1428 = vmul.f32 %v1385, %v1404
        %v1429 = vmul.f32 %v1385, %v1405
        %v1430 = vmul.f32 %v1390, %v1398
        %v1431 = vmul.f32 %v1390, %v1399
        %v1432 = vmul.f32 %v1390, %v1400
        %v1433 = vmul.f32 %v1390, %v1401
        %v1434 = vmul.f32 %v1390, %v1402
        %v1435 = vmul.f32 %v1390, %v1403
        %v1436 = vmul.f32 %v1390, %v1404
        %v1437 = vmul.f32 %v1390, %v1405
        %v1438 = vmul.f32 %v1395, %v1398
        %v1439 = vmul.f32 %v1395, %v1399
        %v1440 = vmul.f32 %v1395, %v1400
        %v1441 = vmul.f32 %v1395, %v1401
        %v1442 = vmul.f32 %v1395, %v1402
        %v1443 = vmul.f32 %v1395, %v1403
        %v1444 = vmul.f32 %v1395, %v1404
        %v1445 = vmul.f32 %v1395, %v1405
        %1478 = vrot.lane.b32.xlu0 %v1414, 68
        %v1479 = vpop.permute.xlu0 %1478
        %1480 = vrot.lane.b32.xlu0 %v1415, 68
        %v1481 = vpop.permute.xlu0 %1480
        %1482 = vrot.lane.b32.xlu0 %v1416, 68
        %v1483 = vpop.permute.xlu0 %1482
        %1484 = vrot.lane.b32.xlu0 %v1417, 68
        %v1485 = vpop.permute.xlu0 %1484
        %1486 = vrot.lane.b32.xlu0 %v1418, 68
        %v1487 = vpop.permute.xlu0 %1486
        %1488 = vrot.lane.b32.xlu0 %v1419, 68
        %v1489 = vpop.permute.xlu0 %1488
        %1490 = vrot.lane.b32.xlu0 %v1420, 68
        %v1491 = vpop.permute.xlu0 %1490
        %1492 = vrot.lane.b32.xlu0 %v1421, 68
        %v1493 = vpop.permute.xlu0 %1492
        %1494 = vrot.lane.b32.xlu0 %v1422, 68
        %v1495 = vpop.permute.xlu0 %1494
        %1496 = vrot.lane.b32.xlu0 %v1423, 68
        %v1497 = vpop.permute.xlu0 %1496
        %1498 = vrot.lane.b32.xlu0 %v1424, 68
        %v1499 = vpop.permute.xlu0 %1498
        %1500 = vrot.lane.b32.xlu0 %v1425, 68
        %v1501 = vpop.permute.xlu0 %1500
        %1502 = vrot.lane.b32.xlu0 %v1426, 68
        %v1503 = vpop.permute.xlu0 %1502
        %1504 = vrot.lane.b32.xlu0 %v1427, 68
        %v1505 = vpop.permute.xlu0 %1504
        %1506 = vrot.lane.b32.xlu0 %v1428, 68
        %v1507 = vpop.permute.xlu0 %1506
        %1508 = vrot.lane.b32.xlu0 %v1429, 68
        %v1509 = vpop.permute.xlu0 %1508
        %1510 = vrot.lane.b32.xlu0 %v1430, 68
        %v1511 = vpop.permute.xlu0 %1510
        %1512 = vrot.lane.b32.xlu0 %v1431, 68
        %v1513 = vpop.permute.xlu0 %1512
        %1514 = vrot.lane.b32.xlu0 %v1432, 68
        %v1515 = vpop.permute.xlu0 %1514
        %1516 = vrot.lane.b32.xlu0 %v1433, 68
        %v1517 = vpop.permute.xlu0 %1516
        %1518 = vrot.lane.b32.xlu0 %v1434, 68
        %v1519 = vpop.permute.xlu0 %1518
        %1520 = vrot.lane.b32.xlu0 %v1435, 68
        %v1521 = vpop.permute.xlu0 %1520
        %1522 = vrot.lane.b32.xlu0 %v1436, 68
        %v1523 = vpop.permute.xlu0 %1522
        %1524 = vrot.lane.b32.xlu0 %v1437, 68
        %v1525 = vpop.permute.xlu0 %1524
        %1526 = vrot.lane.b32.xlu0 %v1438, 68
        %v1527 = vpop.permute.xlu0 %1526
        %1528 = vrot.lane.b32.xlu0 %v1439, 68
        %v1529 = vpop.permute.xlu0 %1528
        %1530 = vrot.lane.b32.xlu0 %v1440, 68
        %v1531 = vpop.permute.xlu0 %1530
        %1532 = vrot.lane.b32.xlu0 %v1441, 68
        %v1533 = vpop.permute.xlu0 %1532
        %1534 = vrot.lane.b32.xlu0 %v1442, 68
        %v1535 = vpop.permute.xlu0 %1534
        %1536 = vrot.lane.b32.xlu0 %v1443, 68
        %v1537 = vpop.permute.xlu0 %1536
        %1538 = vrot.lane.b32.xlu0 %v1444, 68
        %v1539 = vpop.permute.xlu0 %1538
        %1540 = vrot.lane.b32.xlu0 %v1445, 68
        %v1541 = vpop.permute.xlu0 %1540
        %vm1542 = vcmask 556032
        %v1543 = vsel %vm1542, %v1479, %v1481
        %v1544 = vsel %vm1542, %v1481, %v1483
        %v1545 = vsel %vm1542, %v1483, %v1485
        %v1546 = vsel %vm1542, %v1485, %v1487
        %v1547 = vsel %vm1542, %v1487, %v1489
        %v1548 = vsel %vm1542, %v1489, %v1491
        %v1549 = vsel %vm1542, %v1491, %v1493
        %v1550 = vsel %vm1542, %v1495, %v1497
        %v1551 = vsel %vm1542, %v1497, %v1499
        %v1552 = vsel %vm1542, %v1499, %v1501
        %v1553 = vsel %vm1542, %v1501, %v1503
        %v1554 = vsel %vm1542, %v1503, %v1505
        %v1555 = vsel %vm1542, %v1505, %v1507
        %v1556 = vsel %vm1542, %v1507, %v1509
        %v1557 = vsel %vm1542, %v1511, %v1513
        %v1558 = vsel %vm1542, %v1513, %v1515
        %v1559 = vsel %vm1542, %v1515, %v1517
        %v1560 = vsel %vm1542, %v1517, %v1519
        %v1561 = vsel %vm1542, %v1519, %v1521
        %v1562 = vsel %vm1542, %v1521, %v1523
        %v1563 = vsel %vm1542, %v1523, %v1525
        %v1564 = vsel %vm1542, %v1527, %v1529
        %v1565 = vsel %vm1542, %v1529, %v1531
        %v1566 = vsel %vm1542, %v1531, %v1533
        %v1567 = vsel %vm1542, %v1533, %v1535
        %v1568 = vsel %vm1542, %v1535, %v1537
        %v1569 = vsel %vm1542, %v1537, %v1539
        %v1570 = vsel %vm1542, %v1539, %v1541
        %v1599 = vadd.f32 %v1343, %v1543
        %v1600 = vadd.f32 %v1344, %v1544
        %v1601 = vadd.f32 %v1345, %v1545
        %v1602 = vadd.f32 %v1346, %v1546
        %v1603 = vadd.f32 %v1347, %v1547
        %v1604 = vadd.f32 %v1348, %v1548
        %v1605 = vadd.f32 %v1349, %v1549
        %v1606 = vadd.f32 %v1350, %v1550
        %v1607 = vadd.f32 %v1351, %v1551
        %v1608 = vadd.f32 %v1352, %v1552
        %v1609 = vadd.f32 %v1353, %v1553
        %v1610 = vadd.f32 %v1354, %v1554
        %v1611 = vadd.f32 %v1355, %v1555
        %v1612 = vadd.f32 %v1356, %v1556
        %v1613 = vadd.f32 %v1357, %v1557
        %v1614 = vadd.f32 %v1358, %v1558
        %v1615 = vadd.f32 %v1359, %v1559
        %v1616 = vadd.f32 %v1360, %v1560
        %v1617 = vadd.f32 %v1361, %v1561
        %v1618 = vadd.f32 %v1362, %v1562
        %v1619 = vadd.f32 %v1363, %v1563
        %v1620 = vadd.f32 %v1364, %v1564
        %v1621 = vadd.f32 %v1365, %v1565
        %v1622 = vadd.f32 %v1366, %v1566
        %v1623 = vadd.f32 %v1367, %v1567
        %v1624 = vadd.f32 %v1368, %v1568
        %v1625 = vadd.f32 %v1369, %v1569
        %v1626 = vadd.f32 %v1370, %v1570
        %s1627 = scalar_lea.vmem %s1, 224
        %v1628 = vld [vmem:[%s1627] sm:$0xff]
        %v1629 = vld [vmem:[%s1627 + $0x8] sm:$0xff]
        %v1630 = vld [vmem:[%s1627 + $0x10] sm:$0xff]
        %v1631 = vld [vmem:[%s1627 + $0x18] sm:$0xff]
        %1633 = vset.pattern.permute.xlu0 0
        %1634 = vperm.xlu0 %1633, %v1628
        %v1635 = vpop.permute.xlu0 %1634
        %1638 = vset.pattern.permute.xlu0 0
        %1639 = vperm.xlu0 %1638, %v1629
        %v1640 = vpop.permute.xlu0 %1639
        %1643 = vset.pattern.permute.xlu0 0
        %1644 = vperm.xlu0 %1643, %v1630
        %v1645 = vpop.permute.xlu0 %1644
        %1648 = vset.pattern.permute.xlu0 0
        %1649 = vperm.xlu0 %1648, %v1631
        %v1650 = vpop.permute.xlu0 %1649
        %v1652 = vmul.f32 %v1635, %v1398
        %v1653 = vmul.f32 %v1635, %v1399
        %v1654 = vmul.f32 %v1635, %v1400
        %v1655 = vmul.f32 %v1635, %v1401
        %v1656 = vmul.f32 %v1635, %v1402
        %v1657 = vmul.f32 %v1635, %v1403
        %v1658 = vmul.f32 %v1635, %v1404
        %v1659 = vmul.f32 %v1635, %v1405
        %v1660 = vmul.f32 %v1640, %v1398
        %v1661 = vmul.f32 %v1640, %v1399
        %v1662 = vmul.f32 %v1640, %v1400
        %v1663 = vmul.f32 %v1640, %v1401
        %v1664 = vmul.f32 %v1640, %v1402
        %v1665 = vmul.f32 %v1640, %v1403
        %v1666 = vmul.f32 %v1640, %v1404
        %v1667 = vmul.f32 %v1640, %v1405
        %v1668 = vmul.f32 %v1645, %v1398
        %v1669 = vmul.f32 %v1645, %v1399
        %v1670 = vmul.f32 %v1645, %v1400
        %v1671 = vmul.f32 %v1645, %v1401
        %v1672 = vmul.f32 %v1645, %v1402
        %v1673 = vmul.f32 %v1645, %v1403
        %v1674 = vmul.f32 %v1645, %v1404
        %v1675 = vmul.f32 %v1645, %v1405
        %v1676 = vmul.f32 %v1650, %v1398
        %v1677 = vmul.f32 %v1650, %v1399
        %v1678 = vmul.f32 %v1650, %v1400
        %v1679 = vmul.f32 %v1650, %v1401
        %v1680 = vmul.f32 %v1650, %v1402
        %v1681 = vmul.f32 %v1650, %v1403
        %v1682 = vmul.f32 %v1650, %v1404
        %v1683 = vmul.f32 %v1650, %v1405
        %1716 = vrot.lane.b32.xlu0 %v1652, 67
        %v1717 = vpop.permute.xlu0 %1716
        %1718 = vrot.lane.b32.xlu0 %v1653, 67
        %v1719 = vpop.permute.xlu0 %1718
        %1720 = vrot.lane.b32.xlu0 %v1654, 67
        %v1721 = vpop.permute.xlu0 %1720
        %1722 = vrot.lane.b32.xlu0 %v1655, 67
        %v1723 = vpop.permute.xlu0 %1722
        %1724 = vrot.lane.b32.xlu0 %v1656, 67
        %v1725 = vpop.permute.xlu0 %1724
        %1726 = vrot.lane.b32.xlu0 %v1657, 67
        %v1727 = vpop.permute.xlu0 %1726
        %1728 = vrot.lane.b32.xlu0 %v1658, 67
        %v1729 = vpop.permute.xlu0 %1728
        %1730 = vrot.lane.b32.xlu0 %v1659, 67
        %v1731 = vpop.permute.xlu0 %1730
        %1732 = vrot.lane.b32.xlu0 %v1660, 67
        %v1733 = vpop.permute.xlu0 %1732
        %1734 = vrot.lane.b32.xlu0 %v1661, 67
        %v1735 = vpop.permute.xlu0 %1734
        %1736 = vrot.lane.b32.xlu0 %v1662, 67
        %v1737 = vpop.permute.xlu0 %1736
        %1738 = vrot.lane.b32.xlu0 %v1663, 67
        %v1739 = vpop.permute.xlu0 %1738
        %1740 = vrot.lane.b32.xlu0 %v1664, 67
        %v1741 = vpop.permute.xlu0 %1740
        %1742 = vrot.lane.b32.xlu0 %v1665, 67
        %v1743 = vpop.permute.xlu0 %1742
        %1744 = vrot.lane.b32.xlu0 %v1666, 67
        %v1745 = vpop.permute.xlu0 %1744
        %1746 = vrot.lane.b32.xlu0 %v1667, 67
        %v1747 = vpop.permute.xlu0 %1746
        %1748 = vrot.lane.b32.xlu0 %v1668, 67
        %v1749 = vpop.permute.xlu0 %1748
        %1750 = vrot.lane.b32.xlu0 %v1669, 67
        %v1751 = vpop.permute.xlu0 %1750
        %1752 = vrot.lane.b32.xlu0 %v1670, 67
        %v1753 = vpop.permute.xlu0 %1752
        %1754 = vrot.lane.b32.xlu0 %v1671, 67
        %v1755 = vpop.permute.xlu0 %1754
        %1756 = vrot.lane.b32.xlu0 %v1672, 67
        %v1757 = vpop.permute.xlu0 %1756
        %1758 = vrot.lane.b32.xlu0 %v1673, 67
        %v1759 = vpop.permute.xlu0 %1758
        %1760 = vrot.lane.b32.xlu0 %v1674, 67
        %v1761 = vpop.permute.xlu0 %1760
        %1762 = vrot.lane.b32.xlu0 %v1675, 67
        %v1763 = vpop.permute.xlu0 %1762
        %1764 = vrot.lane.b32.xlu0 %v1676, 67
        %v1765 = vpop.permute.xlu0 %1764
        %1766 = vrot.lane.b32.xlu0 %v1677, 67
        %v1767 = vpop.permute.xlu0 %1766
        %1768 = vrot.lane.b32.xlu0 %v1678, 67
        %v1769 = vpop.permute.xlu0 %1768
        %1770 = vrot.lane.b32.xlu0 %v1679, 67
        %v1771 = vpop.permute.xlu0 %1770
        %1772 = vrot.lane.b32.xlu0 %v1680, 67
        %v1773 = vpop.permute.xlu0 %1772
        %1774 = vrot.lane.b32.xlu0 %v1681, 67
        %v1775 = vpop.permute.xlu0 %1774
        %1776 = vrot.lane.b32.xlu0 %v1682, 67
        %v1777 = vpop.permute.xlu0 %1776
        %1778 = vrot.lane.b32.xlu0 %v1683, 67
        %v1779 = vpop.permute.xlu0 %1778
        %vm1780 = vcmask 547840
        %v1781 = vsel %vm1780, %v1717, %v1719
        %v1782 = vsel %vm1780, %v1719, %v1721
        %v1783 = vsel %vm1780, %v1721, %v1723
        %v1784 = vsel %vm1780, %v1723, %v1725
        %v1785 = vsel %vm1780, %v1725, %v1727
        %v1786 = vsel %vm1780, %v1727, %v1729
        %v1787 = vsel %vm1780, %v1729, %v1731
        %v1788 = vsel %vm1780, %v1733, %v1735
        %v1789 = vsel %vm1780, %v1735, %v1737
        %v1790 = vsel %vm1780, %v1737, %v1739
        %v1791 = vsel %vm1780, %v1739, %v1741
        %v1792 = vsel %vm1780, %v1741, %v1743
        %v1793 = vsel %vm1780, %v1743, %v1745
        %v1794 = vsel %vm1780, %v1745, %v1747
        %v1795 = vsel %vm1780, %v1749, %v1751
        %v1796 = vsel %vm1780, %v1751, %v1753
        %v1797 = vsel %vm1780, %v1753, %v1755
        %v1798 = vsel %vm1780, %v1755, %v1757
        %v1799 = vsel %vm1780, %v1757, %v1759
        %v1800 = vsel %vm1780, %v1759, %v1761
        %v1801 = vsel %vm1780, %v1761, %v1763
        %v1802 = vsel %vm1780, %v1765, %v1767
        %v1803 = vsel %vm1780, %v1767, %v1769
        %v1804 = vsel %vm1780, %v1769, %v1771
        %v1805 = vsel %vm1780, %v1771, %v1773
        %v1806 = vsel %vm1780, %v1773, %v1775
        %v1807 = vsel %vm1780, %v1775, %v1777
        %v1808 = vsel %vm1780, %v1777, %v1779
        %v1837 = vadd.f32 %v1599, %v1781
        %v1838 = vadd.f32 %v1600, %v1782
        %v1839 = vadd.f32 %v1601, %v1783
        %v1840 = vadd.f32 %v1602, %v1784
        %v1841 = vadd.f32 %v1603, %v1785
        %v1842 = vadd.f32 %v1604, %v1786
        %v1843 = vadd.f32 %v1605, %v1787
        %v1844 = vadd.f32 %v1606, %v1788
        %v1845 = vadd.f32 %v1607, %v1789
        %v1846 = vadd.f32 %v1608, %v1790
        %v1847 = vadd.f32 %v1609, %v1791
        %v1848 = vadd.f32 %v1610, %v1792
        %v1849 = vadd.f32 %v1611, %v1793
        %v1850 = vadd.f32 %v1612, %v1794
        %v1851 = vadd.f32 %v1613, %v1795
        %v1852 = vadd.f32 %v1614, %v1796
        %v1853 = vadd.f32 %v1615, %v1797
        %v1854 = vadd.f32 %v1616, %v1798
        %v1855 = vadd.f32 %v1617, %v1799
        %v1856 = vadd.f32 %v1618, %v1800
        %v1857 = vadd.f32 %v1619, %v1801
        %v1858 = vadd.f32 %v1620, %v1802
        %v1859 = vadd.f32 %v1621, %v1803
        %v1860 = vadd.f32 %v1622, %v1804
        %v1861 = vadd.f32 %v1623, %v1805
        %v1862 = vadd.f32 %v1624, %v1806
        %v1863 = vadd.f32 %v1625, %v1807
        %v1864 = vadd.f32 %v1626, %v1808
        %s1865 = scalar_lea.vmem %s1, 256
        %v1866 = vld [vmem:[%s1865] sm:$0xff]
        %v1867 = vld [vmem:[%s1865 + $0x8] sm:$0xff]
        %v1868 = vld [vmem:[%s1865 + $0x10] sm:$0xff]
        %v1869 = vld [vmem:[%s1865 + $0x18] sm:$0xff]
        %1871 = vset.pattern.permute.xlu0 0
        %1872 = vperm.xlu0 %1871, %v1866
        %v1873 = vpop.permute.xlu0 %1872
        %1876 = vset.pattern.permute.xlu0 0
        %1877 = vperm.xlu0 %1876, %v1867
        %v1878 = vpop.permute.xlu0 %1877
        %1881 = vset.pattern.permute.xlu0 0
        %1882 = vperm.xlu0 %1881, %v1868
        %v1883 = vpop.permute.xlu0 %1882
        %1886 = vset.pattern.permute.xlu0 0
        %1887 = vperm.xlu0 %1886, %v1869
        %v1888 = vpop.permute.xlu0 %1887
        %v1890 = vmul.f32 %v1873, %v1398
        %v1891 = vmul.f32 %v1873, %v1399
        %v1892 = vmul.f32 %v1873, %v1400
        %v1893 = vmul.f32 %v1873, %v1401
        %v1894 = vmul.f32 %v1873, %v1402
        %v1895 = vmul.f32 %v1873, %v1403
        %v1896 = vmul.f32 %v1873, %v1404
        %v1897 = vmul.f32 %v1873, %v1405
        %v1898 = vmul.f32 %v1878, %v1398
        %v1899 = vmul.f32 %v1878, %v1399
        %v1900 = vmul.f32 %v1878, %v1400
        %v1901 = vmul.f32 %v1878, %v1401
        %v1902 = vmul.f32 %v1878, %v1402
        %v1903 = vmul.f32 %v1878, %v1403
        %v1904 = vmul.f32 %v1878, %v1404
        %v1905 = vmul.f32 %v1878, %v1405
        %v1906 = vmul.f32 %v1883, %v1398
        %v1907 = vmul.f32 %v1883, %v1399
        %v1908 = vmul.f32 %v1883, %v1400
        %v1909 = vmul.f32 %v1883, %v1401
        %v1910 = vmul.f32 %v1883, %v1402
        %v1911 = vmul.f32 %v1883, %v1403
        %v1912 = vmul.f32 %v1883, %v1404
        %v1913 = vmul.f32 %v1883, %v1405
        %v1914 = vmul.f32 %v1888, %v1398
        %v1915 = vmul.f32 %v1888, %v1399
        %v1916 = vmul.f32 %v1888, %v1400
        %v1917 = vmul.f32 %v1888, %v1401
        %v1918 = vmul.f32 %v1888, %v1402
        %v1919 = vmul.f32 %v1888, %v1403
        %v1920 = vmul.f32 %v1888, %v1404
        %v1921 = vmul.f32 %v1888, %v1405
        %1954 = vrot.lane.b32.xlu0 %v1890, 66
        %v1955 = vpop.permute.xlu0 %1954
        %1956 = vrot.lane.b32.xlu0 %v1891, 66
        %v1957 = vpop.permute.xlu0 %1956
        %1958 = vrot.lane.b32.xlu0 %v1892, 66
        %v1959 = vpop.permute.xlu0 %1958
        %1960 = vrot.lane.b32.xlu0 %v1893, 66
        %v1961 = vpop.permute.xlu0 %1960
        %1962 = vrot.lane.b32.xlu0 %v1894, 66
        %v1963 = vpop.permute.xlu0 %1962
        %1964 = vrot.lane.b32.xlu0 %v1895, 66
        %v1965 = vpop.permute.xlu0 %1964
        %1966 = vrot.lane.b32.xlu0 %v1896, 66
        %v1967 = vpop.permute.xlu0 %1966
        %1968 = vrot.lane.b32.xlu0 %v1897, 66
        %v1969 = vpop.permute.xlu0 %1968
        %1970 = vrot.lane.b32.xlu0 %v1898, 66
        %v1971 = vpop.permute.xlu0 %1970
        %1972 = vrot.lane.b32.xlu0 %v1899, 66
        %v1973 = vpop.permute.xlu0 %1972
        %1974 = vrot.lane.b32.xlu0 %v1900, 66
        %v1975 = vpop.permute.xlu0 %1974
        %1976 = vrot.lane.b32.xlu0 %v1901, 66
        %v1977 = vpop.permute.xlu0 %1976
        %1978 = vrot.lane.b32.xlu0 %v1902, 66
        %v1979 = vpop.permute.xlu0 %1978
        %1980 = vrot.lane.b32.xlu0 %v1903, 66
        %v1981 = vpop.permute.xlu0 %1980
        %1982 = vrot.lane.b32.xlu0 %v1904, 66
        %v1983 = vpop.permute.xlu0 %1982
        %1984 = vrot.lane.b32.xlu0 %v1905, 66
        %v1985 = vpop.permute.xlu0 %1984
        %1986 = vrot.lane.b32.xlu0 %v1906, 66
        %v1987 = vpop.permute.xlu0 %1986
        %1988 = vrot.lane.b32.xlu0 %v1907, 66
        %v1989 = vpop.permute.xlu0 %1988
        %1990 = vrot.lane.b32.xlu0 %v1908, 66
        %v1991 = vpop.permute.xlu0 %1990
        %1992 = vrot.lane.b32.xlu0 %v1909, 66
        %v1993 = vpop.permute.xlu0 %1992
        %1994 = vrot.lane.b32.xlu0 %v1910, 66
        %v1995 = vpop.permute.xlu0 %1994
        %1996 = vrot.lane.b32.xlu0 %v1911, 66
        %v1997 = vpop.permute.xlu0 %1996
        %1998 = vrot.lane.b32.xlu0 %v1912, 66
        %v1999 = vpop.permute.xlu0 %1998
        %2000 = vrot.lane.b32.xlu0 %v1913, 66
        %v2001 = vpop.permute.xlu0 %2000
        %2002 = vrot.lane.b32.xlu0 %v1914, 66
        %v2003 = vpop.permute.xlu0 %2002
        %2004 = vrot.lane.b32.xlu0 %v1915, 66
        %v2005 = vpop.permute.xlu0 %2004
        %2006 = vrot.lane.b32.xlu0 %v1916, 66
        %v2007 = vpop.permute.xlu0 %2006
        %2008 = vrot.lane.b32.xlu0 %v1917, 66
        %v2009 = vpop.permute.xlu0 %2008
        %2010 = vrot.lane.b32.xlu0 %v1918, 66
        %v2011 = vpop.permute.xlu0 %2010
        %2012 = vrot.lane.b32.xlu0 %v1919, 66
        %v2013 = vpop.permute.xlu0 %2012
        %2014 = vrot.lane.b32.xlu0 %v1920, 66
        %v2015 = vpop.permute.xlu0 %2014
        %2016 = vrot.lane.b32.xlu0 %v1921, 66
        %v2017 = vpop.permute.xlu0 %2016
        %vm2018 = vcmask 539648
        %v2019 = vsel %vm2018, %v1955, %v1957
        %v2020 = vsel %vm2018, %v1957, %v1959
        %v2021 = vsel %vm2018, %v1959, %v1961
        %v2022 = vsel %vm2018, %v1961, %v1963
        %v2023 = vsel %vm2018, %v1963, %v1965
        %v2024 = vsel %vm2018, %v1965, %v1967
        %v2025 = vsel %vm2018, %v1967, %v1969
        %v2026 = vsel %vm2018, %v1971, %v1973
        %v2027 = vsel %vm2018, %v1973, %v1975
        %v2028 = vsel %vm2018, %v1975, %v1977
        %v2029 = vsel %vm2018, %v1977, %v1979
        %v2030 = vsel %vm2018, %v1979, %v1981
        %v2031 = vsel %vm2018, %v1981, %v1983
        %v2032 = vsel %vm2018, %v1983, %v1985
        %v2033 = vsel %vm2018, %v1987, %v1989
        %v2034 = vsel %vm2018, %v1989, %v1991
        %v2035 = vsel %vm2018, %v1991, %v1993
        %v2036 = vsel %vm2018, %v1993, %v1995
        %v2037 = vsel %vm2018, %v1995, %v1997
        %v2038 = vsel %vm2018, %v1997, %v1999
        %v2039 = vsel %vm2018, %v1999, %v2001
        %v2040 = vsel %vm2018, %v2003, %v2005
        %v2041 = vsel %vm2018, %v2005, %v2007
        %v2042 = vsel %vm2018, %v2007, %v2009
        %v2043 = vsel %vm2018, %v2009, %v2011
        %v2044 = vsel %vm2018, %v2011, %v2013
        %v2045 = vsel %vm2018, %v2013, %v2015
        %v2046 = vsel %vm2018, %v2015, %v2017
        %v2075 = vadd.f32 %v1837, %v2019
        %v2076 = vadd.f32 %v1838, %v2020
        %v2077 = vadd.f32 %v1839, %v2021
        %v2078 = vadd.f32 %v1840, %v2022
        %v2079 = vadd.f32 %v1841, %v2023
        %v2080 = vadd.f32 %v1842, %v2024
        %v2081 = vadd.f32 %v1843, %v2025
        %v2082 = vadd.f32 %v1844, %v2026
        %v2083 = vadd.f32 %v1845, %v2027
        %v2084 = vadd.f32 %v1846, %v2028
        %v2085 = vadd.f32 %v1847, %v2029
        %v2086 = vadd.f32 %v1848, %v2030
        %v2087 = vadd.f32 %v1849, %v2031
        %v2088 = vadd.f32 %v1850, %v2032
        %v2089 = vadd.f32 %v1851, %v2033
        %v2090 = vadd.f32 %v1852, %v2034
        %v2091 = vadd.f32 %v1853, %v2035
        %v2092 = vadd.f32 %v1854, %v2036
        %v2093 = vadd.f32 %v1855, %v2037
        %v2094 = vadd.f32 %v1856, %v2038
        %v2095 = vadd.f32 %v1857, %v2039
        %v2096 = vadd.f32 %v1858, %v2040
        %v2097 = vadd.f32 %v1859, %v2041
        %v2098 = vadd.f32 %v1860, %v2042
        %v2099 = vadd.f32 %v1861, %v2043
        %v2100 = vadd.f32 %v1862, %v2044
        %v2101 = vadd.f32 %v1863, %v2045
        %v2102 = vadd.f32 %v1864, %v2046
        %v2103 = vld [vmem:[%s2] sm:$0xff]
        %v2104 = vld [vmem:[%s2 + $0x8] sm:$0xff]
        %v2105 = vld [vmem:[%s2 + $0x10] sm:$0xff]
        %v2106 = vld [vmem:[%s2 + $0x18] sm:$0xff]
        %2108 = vset.pattern.permute.xlu0 0
        %2109 = vperm.xlu0 %2108, %v2103
        %v2110 = vpop.permute.xlu0 %2109
        %2113 = vset.pattern.permute.xlu0 0
        %2114 = vperm.xlu0 %2113, %v2104
        %v2115 = vpop.permute.xlu0 %2114
        %2118 = vset.pattern.permute.xlu0 0
        %2119 = vperm.xlu0 %2118, %v2105
        %v2120 = vpop.permute.xlu0 %2119
        %2123 = vset.pattern.permute.xlu0 0
        %2124 = vperm.xlu0 %2123, %v2106
        %v2125 = vpop.permute.xlu0 %2124
        %v2127 = vadd.f32 %v2075, %v2110
        %v2128 = vadd.f32 %v2076, %v2110
        %v2129 = vadd.f32 %v2077, %v2110
        %v2130 = vadd.f32 %v2078, %v2110
        %v2131 = vadd.f32 %v2079, %v2110
        %v2132 = vadd.f32 %v2080, %v2110
        %v2133 = vadd.f32 %v2081, %v2110
        %v2134 = vadd.f32 %v2082, %v2115
        %v2135 = vadd.f32 %v2083, %v2115
        %v2136 = vadd.f32 %v2084, %v2115
        %v2137 = vadd.f32 %v2085, %v2115
        %v2138 = vadd.f32 %v2086, %v2115
        %v2139 = vadd.f32 %v2087, %v2115
        %v2140 = vadd.f32 %v2088, %v2115
        %v2141 = vadd.f32 %v2089, %v2120
        %v2142 = vadd.f32 %v2090, %v2120
        %v2143 = vadd.f32 %v2091, %v2120
        %v2144 = vadd.f32 %v2092, %v2120
        %v2145 = vadd.f32 %v2093, %v2120
        %v2146 = vadd.f32 %v2094, %v2120
        %v2147 = vadd.f32 %v2095, %v2120
        %v2148 = vadd.f32 %v2096, %v2125
        %v2149 = vadd.f32 %v2097, %v2125
        %v2150 = vadd.f32 %v2098, %v2125
        %v2151 = vadd.f32 %v2099, %v2125
        %v2152 = vadd.f32 %v2100, %v2125
        %v2153 = vadd.f32 %v2101, %v2125
        %v2154 = vadd.f32 %v2102, %v2125
        %v2155 = vmax.f32 %v2127, 0.0
        %v2156 = vmax.f32 %v2128, 0.0
        %v2157 = vmax.f32 %v2129, 0.0
        %v2158 = vmax.f32 %v2130, 0.0
        %v2159 = vmax.f32 %v2131, 0.0
        %v2160 = vmax.f32 %v2132, 0.0
        %v2161 = vmax.f32 %v2133, 0.0
        %v2162 = vmax.f32 %v2134, 0.0
        %v2163 = vmax.f32 %v2135, 0.0
        %v2164 = vmax.f32 %v2136, 0.0
        %v2165 = vmax.f32 %v2137, 0.0
        %v2166 = vmax.f32 %v2138, 0.0
        %v2167 = vmax.f32 %v2139, 0.0
        %v2168 = vmax.f32 %v2140, 0.0
        %v2169 = vmax.f32 %v2141, 0.0
        %v2170 = vmax.f32 %v2142, 0.0
        %v2171 = vmax.f32 %v2143, 0.0
        %v2172 = vmax.f32 %v2144, 0.0
        %v2173 = vmax.f32 %v2145, 0.0
        %v2174 = vmax.f32 %v2146, 0.0
        %v2175 = vmax.f32 %v2147, 0.0
        %v2176 = vmax.f32 %v2148, 0.0
        %v2177 = vmax.f32 %v2149, 0.0
        %v2178 = vmax.f32 %v2150, 0.0
        %v2179 = vmax.f32 %v2151, 0.0
        %v2180 = vmax.f32 %v2152, 0.0
        %v2181 = vmax.f32 %v2153, 0.0
        %v2182 = vmax.f32 %v2154, 0.0
        %2183 = vst [vmem:[#allocation2] sm:$0xff] %v2155
        %2184 = vst [vmem:[#allocation2 + $0x8] sm:$0xff] %v2156
        %2185 = vst [vmem:[#allocation2 + $0x10] sm:$0xff] %v2157
        %2186 = vst [vmem:[#allocation2 + $0x18] sm:$0xff] %v2158
        %2187 = vst [vmem:[#allocation2 + $0x20] sm:$0xff] %v2159
        %2188 = vst [vmem:[#allocation2 + $0x28] sm:$0xff] %v2160
        %vm2189 = vcmask 572416
        %2190 = vst.msk [vmem:[#allocation2 + $0x30] sm:$0xff] %vm2189, %v2161
        %2191 = vst [vmem:[#allocation2 + $0x38] sm:$0xff] %v2162
        %2192 = vst [vmem:[#allocation2 + $0x40] sm:$0xff] %v2163
        %2193 = vst [vmem:[#allocation2 + $0x48] sm:$0xff] %v2164
        %2194 = vst [vmem:[#allocation2 + $0x50] sm:$0xff] %v2165
        %2195 = vst [vmem:[#allocation2 + $0x58] sm:$0xff] %v2166
        %2196 = vst [vmem:[#allocation2 + $0x60] sm:$0xff] %v2167
        %2197 = vst.msk [vmem:[#allocation2 + $0x68] sm:$0xff] %vm2189, %v2168
        %2198 = vst [vmem:[#allocation2 + $0x70] sm:$0xff] %v2169
        %2199 = vst [vmem:[#allocation2 + $0x78] sm:$0xff] %v2170
        %2200 = vst [vmem:[#allocation2 + $0x80] sm:$0xff] %v2171
        %2201 = vst [vmem:[#allocation2 + $0x88] sm:$0xff] %v2172
        %2202 = vst [vmem:[#allocation2 + $0x90] sm:$0xff] %v2173
        %2203 = vst [vmem:[#allocation2 + $0x98] sm:$0xff] %v2174
        %2204 = vst.msk [vmem:[#allocation2 + $0xa0] sm:$0xff] %vm2189, %v2175
        %2205 = vst [vmem:[#allocation2 + $0xa8] sm:$0xff] %v2176
        %2206 = vst [vmem:[#allocation2 + $0xb0] sm:$0xff] %v2177
        %2207 = vst [vmem:[#allocation2 + $0xb8] sm:$0xff] %v2178
        %2208 = vst [vmem:[#allocation2 + $0xc0] sm:$0xff] %v2179
        %2209 = vst [vmem:[#allocation2 + $0xc8] sm:$0xff] %v2180
        %2210 = vst [vmem:[#allocation2 + $0xd0] sm:$0xff] %v2181
        %2211 = vst.msk [vmem:[#allocation2 + $0xd8] sm:$0xff] %vm2189, %v2182
        %v2212 = vld [vmem:[#allocation2] sm:$0xff]
        %v2213 = vld [vmem:[#allocation2 + $0x8] sm:$0xff]
        %v2214 = vld [vmem:[#allocation2 + $0x10] sm:$0xff]
        %v2215 = vld [vmem:[#allocation2 + $0x18] sm:$0xff]
        %v2216 = vld [vmem:[#allocation2 + $0x20] sm:$0xff]
        %v2217 = vld [vmem:[#allocation2 + $0x28] sm:$0xff]
        %v2218 = vld [vmem:[#allocation2 + $0x30] sm:$0xff]
        %v2219 = vld [vmem:[#allocation2 + $0x38] sm:$0xff]
        %v2220 = vld [vmem:[#allocation2 + $0x40] sm:$0xff]
        %v2221 = vld [vmem:[#allocation2 + $0x48] sm:$0xff]
        %v2222 = vld [vmem:[#allocation2 + $0x50] sm:$0xff]
        %v2223 = vld [vmem:[#allocation2 + $0x58] sm:$0xff]
        %v2224 = vld [vmem:[#allocation2 + $0x60] sm:$0xff]
        %v2225 = vld [vmem:[#allocation2 + $0x68] sm:$0xff]
        %v2226 = vld [vmem:[#allocation2 + $0x70] sm:$0xff]
        %v2227 = vld [vmem:[#allocation2 + $0x78] sm:$0xff]
        %v2228 = vld [vmem:[#allocation2 + $0x80] sm:$0xff]
        %v2229 = vld [vmem:[#allocation2 + $0x88] sm:$0xff]
        %v2230 = vld [vmem:[#allocation2 + $0x90] sm:$0xff]
        %v2231 = vld [vmem:[#allocation2 + $0x98] sm:$0xff]
        %v2232 = vld [vmem:[#allocation2 + $0xa0] sm:$0xff]
        %v2233 = vld [vmem:[#allocation2 + $0xa8] sm:$0xff]
        %v2234 = vld [vmem:[#allocation2 + $0xb0] sm:$0xff]
        %v2235 = vld [vmem:[#allocation2 + $0xb8] sm:$0xff]
        %v2236 = vld [vmem:[#allocation2 + $0xc0] sm:$0xff]
        %v2237 = vld [vmem:[#allocation2 + $0xc8] sm:$0xff]
        %v2238 = vld [vmem:[#allocation2 + $0xd0] sm:$0xff]
        %v2239 = vld [vmem:[#allocation2 + $0xd8] sm:$0xff]
        %2268 = vrot.lane.b32.xlu0 %v2212, 127
        %v2269 = vpop.permute.xlu0 %2268
        %2270 = vrot.lane.b32.xlu0 %v2213, 127
        %v2271 = vpop.permute.xlu0 %2270
        %2272 = vrot.lane.b32.xlu0 %v2214, 127
        %v2273 = vpop.permute.xlu0 %2272
        %2274 = vrot.lane.b32.xlu0 %v2215, 127
        %v2275 = vpop.permute.xlu0 %2274
        %2276 = vrot.lane.b32.xlu0 %v2216, 127
        %v2277 = vpop.permute.xlu0 %2276
        %2278 = vrot.lane.b32.xlu0 %v2217, 127
        %v2279 = vpop.permute.xlu0 %2278
        %2280 = vrot.lane.b32.xlu0 %v2218, 127
        %v2281 = vpop.permute.xlu0 %2280
        %2282 = vrot.lane.b32.xlu0 %v2219, 127
        %v2283 = vpop.permute.xlu0 %2282
        %2284 = vrot.lane.b32.xlu0 %v2220, 127
        %v2285 = vpop.permute.xlu0 %2284
        %2286 = vrot.lane.b32.xlu0 %v2221, 127
        %v2287 = vpop.permute.xlu0 %2286
        %2288 = vrot.lane.b32.xlu0 %v2222, 127
        %v2289 = vpop.permute.xlu0 %2288
        %2290 = vrot.lane.b32.xlu0 %v2223, 127
        %v2291 = vpop.permute.xlu0 %2290
        %2292 = vrot.lane.b32.xlu0 %v2224, 127
        %v2293 = vpop.permute.xlu0 %2292
        %2294 = vrot.lane.b32.xlu0 %v2225, 127
        %v2295 = vpop.permute.xlu0 %2294
        %2296 = vrot.lane.b32.xlu0 %v2226, 127
        %v2297 = vpop.permute.xlu0 %2296
        %2298 = vrot.lane.b32.xlu0 %v2227, 127
        %v2299 = vpop.permute.xlu0 %2298
        %2300 = vrot.lane.b32.xlu0 %v2228, 127
        %v2301 = vpop.permute.xlu0 %2300
        %2302 = vrot.lane.b32.xlu0 %v2229, 127
        %v2303 = vpop.permute.xlu0 %2302
        %2304 = vrot.lane.b32.xlu0 %v2230, 127
        %v2305 = vpop.permute.xlu0 %2304
        %2306 = vrot.lane.b32.xlu0 %v2231, 127
        %v2307 = vpop.permute.xlu0 %2306
        %2308 = vrot.lane.b32.xlu0 %v2232, 127
        %v2309 = vpop.permute.xlu0 %2308
        %2310 = vrot.lane.b32.xlu0 %v2233, 127
        %v2311 = vpop.permute.xlu0 %2310
        %2312 = vrot.lane.b32.xlu0 %v2234, 127
        %v2313 = vpop.permute.xlu0 %2312
        %2314 = vrot.lane.b32.xlu0 %v2235, 127
        %v2315 = vpop.permute.xlu0 %2314
        %2316 = vrot.lane.b32.xlu0 %v2236, 127
        %v2317 = vpop.permute.xlu0 %2316
        %2318 = vrot.lane.b32.xlu0 %v2237, 127
        %v2319 = vpop.permute.xlu0 %2318
        %2320 = vrot.lane.b32.xlu0 %v2238, 127
        %v2321 = vpop.permute.xlu0 %2320
        %2322 = vrot.lane.b32.xlu0 %v2239, 127
        %v2323 = vpop.permute.xlu0 %2322
        %v2324 = vsel %vm418, %v2269, %v2271
        %v2325 = vsel %vm418, %v2271, %v2273
        %v2326 = vsel %vm418, %v2273, %v2275
        %v2327 = vsel %vm418, %v2275, %v2277
        %v2328 = vsel %vm418, %v2277, %v2279
        %v2329 = vsel %vm418, %v2279, %v2281
        %v2330 = vsel %vm418, %v2283, %v2285
        %v2331 = vsel %vm418, %v2285, %v2287
        %v2332 = vsel %vm418, %v2287, %v2289
        %v2333 = vsel %vm418, %v2289, %v2291
        %v2334 = vsel %vm418, %v2291, %v2293
        %v2335 = vsel %vm418, %v2293, %v2295
        %v2336 = vsel %vm418, %v2297, %v2299
        %v2337 = vsel %vm418, %v2299, %v2301
        %v2338 = vsel %vm418, %v2301, %v2303
        %v2339 = vsel %vm418, %v2303, %v2305
        %v2340 = vsel %vm418, %v2305, %v2307
        %v2341 = vsel %vm418, %v2307, %v2309
        %v2342 = vsel %vm418, %v2311, %v2313
        %v2343 = vsel %vm418, %v2313, %v2315
        %v2344 = vsel %vm418, %v2315, %v2317
        %v2345 = vsel %vm418, %v2317, %v2319
        %v2346 = vsel %vm418, %v2319, %v2321
        %v2347 = vsel %vm418, %v2321, %v2323
        %v2376 = vmax.f32 %v2212, %v2324
        %v2377 = vmax.f32 %v2213, %v2325
        %v2378 = vmax.f32 %v2214, %v2326
        %v2379 = vmax.f32 %v2215, %v2327
        %v2380 = vmax.f32 %v2216, %v2328
        %v2381 = vmax.f32 %v2217, %v2329
        %v2382 = vmax.f32 %v2218, %v2281
        %v2383 = vmax.f32 %v2219, %v2330
        %v2384 = vmax.f32 %v2220, %v2331
        %v2385 = vmax.f32 %v2221, %v2332
        %v2386 = vmax.f32 %v2222, %v2333
        %v2387 = vmax.f32 %v2223, %v2334
        %v2388 = vmax.f32 %v2224, %v2335
        %v2389 = vmax.f32 %v2225, %v2295
        %v2390 = vmax.f32 %v2226, %v2336
        %v2391 = vmax.f32 %v2227, %v2337
        %v2392 = vmax.f32 %v2228, %v2338
        %v2393 = vmax.f32 %v2229, %v2339
        %v2394 = vmax.f32 %v2230, %v2340
        %v2395 = vmax.f32 %v2231, %v2341
        %v2396 = vmax.f32 %v2232, %v2309
        %v2397 = vmax.f32 %v2233, %v2342
        %v2398 = vmax.f32 %v2234, %v2343
        %v2399 = vmax.f32 %v2235, %v2344
        %v2400 = vmax.f32 %v2236, %v2345
        %v2401 = vmax.f32 %v2237, %v2346
        %v2402 = vmax.f32 %v2238, %v2347
        %v2403 = vmax.f32 %v2239, %v2323
        %2432 = vrot.lane.b32.xlu0 %v2376, 98
        %v2433 = vpop.permute.xlu0 %2432
        %2434 = vrot.lane.b32.xlu0 %v2377, 98
        %v2435 = vpop.permute.xlu0 %2434
        %2436 = vrot.lane.b32.xlu0 %v2378, 98
        %v2437 = vpop.permute.xlu0 %2436
        %2438 = vrot.lane.b32.xlu0 %v2379, 98
        %v2439 = vpop.permute.xlu0 %2438
        %2440 = vrot.lane.b32.xlu0 %v2380, 98
        %v2441 = vpop.permute.xlu0 %2440
        %2442 = vrot.lane.b32.xlu0 %v2381, 98
        %v2443 = vpop.permute.xlu0 %2442
        %2444 = vrot.lane.b32.xlu0 %v2382, 98
        %v2445 = vpop.permute.xlu0 %2444
        %2446 = vrot.lane.b32.xlu0 %v2383, 98
        %v2447 = vpop.permute.xlu0 %2446
        %2448 = vrot.lane.b32.xlu0 %v2384, 98
        %v2449 = vpop.permute.xlu0 %2448
        %2450 = vrot.lane.b32.xlu0 %v2385, 98
        %v2451 = vpop.permute.xlu0 %2450
        %2452 = vrot.lane.b32.xlu0 %v2386, 98
        %v2453 = vpop.permute.xlu0 %2452
        %2454 = vrot.lane.b32.xlu0 %v2387, 98
        %v2455 = vpop.permute.xlu0 %2454
        %2456 = vrot.lane.b32.xlu0 %v2388, 98
        %v2457 = vpop.permute.xlu0 %2456
        %2458 = vrot.lane.b32.xlu0 %v2389, 98
        %v2459 = vpop.permute.xlu0 %2458
        %2460 = vrot.lane.b32.xlu0 %v2390, 98
        %v2461 = vpop.permute.xlu0 %2460
        %2462 = vrot.lane.b32.xlu0 %v2391, 98
        %v2463 = vpop.permute.xlu0 %2462
        %2464 = vrot.lane.b32.xlu0 %v2392, 98
        %v2465 = vpop.permute.xlu0 %2464
        %2466 = vrot.lane.b32.xlu0 %v2393, 98
        %v2467 = vpop.permute.xlu0 %2466
        %2468 = vrot.lane.b32.xlu0 %v2394, 98
        %v2469 = vpop.permute.xlu0 %2468
        %2470 = vrot.lane.b32.xlu0 %v2395, 98
        %v2471 = vpop.permute.xlu0 %2470
        %2472 = vrot.lane.b32.xlu0 %v2396, 98
        %v2473 = vpop.permute.xlu0 %2472
        %2474 = vrot.lane.b32.xlu0 %v2397, 98
        %v2475 = vpop.permute.xlu0 %2474
        %2476 = vrot.lane.b32.xlu0 %v2398, 98
        %v2477 = vpop.permute.xlu0 %2476
        %2478 = vrot.lane.b32.xlu0 %v2399, 98
        %v2479 = vpop.permute.xlu0 %2478
        %2480 = vrot.lane.b32.xlu0 %v2400, 98
        %v2481 = vpop.permute.xlu0 %2480
        %2482 = vrot.lane.b32.xlu0 %v2401, 98
        %v2483 = vpop.permute.xlu0 %2482
        %2484 = vrot.lane.b32.xlu0 %v2402, 98
        %v2485 = vpop.permute.xlu0 %2484
        %2486 = vrot.lane.b32.xlu0 %v2403, 98
        %v2487 = vpop.permute.xlu0 %2486
        %v2488 = vsel %vm854, %v2433, %v2435
        %v2489 = vsel %vm854, %v2435, %v2437
        %v2490 = vsel %vm854, %v2437, %v2439
        %v2491 = vsel %vm854, %v2439, %v2441
        %v2492 = vsel %vm854, %v2441, %v2443
        %v2493 = vsel %vm854, %v2443, %v2445
        %v2494 = vsel %vm854, %v2447, %v2449
        %v2495 = vsel %vm854, %v2449, %v2451
        %v2496 = vsel %vm854, %v2451, %v2453
        %v2497 = vsel %vm854, %v2453, %v2455
        %v2498 = vsel %vm854, %v2455, %v2457
        %v2499 = vsel %vm854, %v2457, %v2459
        %v2500 = vsel %vm854, %v2461, %v2463
        %v2501 = vsel %vm854, %v2463, %v2465
        %v2502 = vsel %vm854, %v2465, %v2467
        %v2503 = vsel %vm854, %v2467, %v2469
        %v2504 = vsel %vm854, %v2469, %v2471
        %v2505 = vsel %vm854, %v2471, %v2473
        %v2506 = vsel %vm854, %v2475, %v2477
        %v2507 = vsel %vm854, %v2477, %v2479
        %v2508 = vsel %vm854, %v2479, %v2481
        %v2509 = vsel %vm854, %v2481, %v2483
        %v2510 = vsel %vm854, %v2483, %v2485
        %v2511 = vsel %vm854, %v2485, %v2487
        %v2540 = vmax.f32 %v2376, %v2488
        %v2541 = vmax.f32 %v2377, %v2489
        %v2542 = vmax.f32 %v2378, %v2490
        %v2543 = vmax.f32 %v2379, %v2491
        %v2544 = vmax.f32 %v2380, %v2492
        %v2545 = vmax.f32 %v2381, %v2493
        %v2546 = vmax.f32 %v2382, %v2445
        %v2547 = vmax.f32 %v2383, %v2494
        %v2548 = vmax.f32 %v2384, %v2495
        %v2549 = vmax.f32 %v2385, %v2496
        %v2550 = vmax.f32 %v2386, %v2497
        %v2551 = vmax.f32 %v2387, %v2498
        %v2552 = vmax.f32 %v2388, %v2499
        %v2553 = vmax.f32 %v2389, %v2459
        %v2554 = vmax.f32 %v2390, %v2500
        %v2555 = vmax.f32 %v2391, %v2501
        %v2556 = vmax.f32 %v2392, %v2502
        %v2557 = vmax.f32 %v2393, %v2503
        %v2558 = vmax.f32 %v2394, %v2504
        %v2559 = vmax.f32 %v2395, %v2505
        %v2560 = vmax.f32 %v2396, %v2473
        %v2561 = vmax.f32 %v2397, %v2506
        %v2562 = vmax.f32 %v2398, %v2507
        %v2563 = vmax.f32 %v2399, %v2508
        %v2564 = vmax.f32 %v2400, %v2509
        %v2565 = vmax.f32 %v2401, %v2510
        %v2566 = vmax.f32 %v2402, %v2511
        %v2567 = vmax.f32 %v2403, %v2487
        %v2568 = vpack.c.bf16 %v2547, %v2540
        %v2569 = vpack.c.bf16 %v2548, %v2541
        %v2570 = vpack.c.bf16 %v2549, %v2542
        %v2571 = vpack.c.bf16 %v2550, %v2543
        %v2572 = vpack.c.bf16 %v2551, %v2544
        %v2573 = vpack.c.bf16 %v2552, %v2545
        %v2574 = vpack.c.bf16 %v2553, %v2546
        %v2575 = vpack.c.bf16 %v2561, %v2554
        %v2576 = vpack.c.bf16 %v2562, %v2555
        %v2577 = vpack.c.bf16 %v2563, %v2556
        %v2578 = vpack.c.bf16 %v2564, %v2557
        %v2579 = vpack.c.bf16 %v2565, %v2558
        %v2580 = vpack.c.bf16 %v2566, %v2559
        %v2581 = vpack.c.bf16 %v2567, %v2560
        %v2582 = vld [vmem:[#allocation3] sm:$0xff]
        %v2583 = vld [vmem:[#allocation3 + $0x8] sm:$0xff]
        %v2584 = vld [vmem:[#allocation3 + $0x10] sm:$0xff]
        %v2585 = vld [vmem:[#allocation3 + $0x18] sm:$0xff]
        %v2586 = vld [vmem:[#allocation3 + $0x20] sm:$0xff]
        %v2587 = vld [vmem:[#allocation3 + $0x28] sm:$0xff]
        %v2588 = vld [vmem:[#allocation3 + $0x30] sm:$0xff]
        %v2589 = vld [vmem:[#allocation3 + $0x38] sm:$0xff]
        %v2590 = vld [vmem:[#allocation3 + $0x40] sm:$0xff]
        %v2591 = vld [vmem:[#allocation3 + $0x48] sm:$0xff]
        %v2592 = vld [vmem:[#allocation3 + $0x50] sm:$0xff]
        %v2593 = vld [vmem:[#allocation3 + $0x58] sm:$0xff]
        %v2594 = vld [vmem:[#allocation3 + $0x60] sm:$0xff]
        %v2595 = vld [vmem:[#allocation3 + $0x68] sm:$0xff]
        %v2596 = vld [vmem:[#allocation3 + $0x70] sm:$0xff]
        %v2597 = vld [vmem:[#allocation3 + $0x78] sm:$0xff]
        %v2598 = vld [vmem:[#allocation3 + $0x80] sm:$0xff]
        %v2599 = vld [vmem:[#allocation3 + $0x88] sm:$0xff]
        %v2600 = vld [vmem:[#allocation3 + $0x90] sm:$0xff]
        %v2601 = vld [vmem:[#allocation3 + $0x98] sm:$0xff]
        %v2602 = vld [vmem:[#allocation3 + $0xa0] sm:$0xff]
        %v2603 = vld [vmem:[#allocation3 + $0xa8] sm:$0xff]
        %v2604 = vld [vmem:[#allocation3 + $0xb0] sm:$0xff]
        %v2605 = vld [vmem:[#allocation3 + $0xb8] sm:$0xff]
        %v2606 = vld [vmem:[#allocation3 + $0xc0] sm:$0xff]
        %v2607 = vld [vmem:[#allocation3 + $0xc8] sm:$0xff]
        %v2608 = vld [vmem:[#allocation3 + $0xd0] sm:$0xff]
        %v2609 = vld [vmem:[#allocation3 + $0xd8] sm:$0xff]
        %v2610 = vld [vmem:[#allocation3 + $0xe0] sm:$0xff]
        %v2611 = vld [vmem:[#allocation3 + $0xe8] sm:$0xff]
        %v2612 = vld [vmem:[#allocation3 + $0xf0] sm:$0xff]
        %v2613 = vld [vmem:[#allocation3 + $0xf8] sm:$0xff]
        %v2614 = vld [vmem:[#allocation3 + $0x100] sm:$0xff]
        %v2615 = vld [vmem:[#allocation3 + $0x108] sm:$0xff]
        %v2616 = vld [vmem:[#allocation3 + $0x110] sm:$0xff]
        %v2617 = vld [vmem:[#allocation3 + $0x118] sm:$0xff]
        %v2618 = vld [vmem:[#allocation3 + $0x120] sm:$0xff]
        %v2619 = vld [vmem:[#allocation3 + $0x128] sm:$0xff]
        %v2620 = vld [vmem:[#allocation3 + $0x130] sm:$0xff]
        %v2621 = vld [vmem:[#allocation3 + $0x138] sm:$0xff]
        %v2622 = vld [vmem:[#allocation3 + $0x140] sm:$0xff]
        %v2623 = vld [vmem:[#allocation3 + $0x148] sm:$0xff]
        %v2624 = vld [vmem:[#allocation3 + $0x150] sm:$0xff]
        %v2625 = vld [vmem:[#allocation3 + $0x158] sm:$0xff]
        %v2626 = vld [vmem:[#allocation3 + $0x160] sm:$0xff]
        %v2627 = vld [vmem:[#allocation3 + $0x168] sm:$0xff]
        %v2628 = vld [vmem:[#allocation3 + $0x170] sm:$0xff]
        %v2629 = vld [vmem:[#allocation3 + $0x178] sm:$0xff]
        %v2630 = vld [vmem:[#allocation3 + $0x180] sm:$0xff]
        %v2631 = vld [vmem:[#allocation3 + $0x188] sm:$0xff]
        %v2632 = vld [vmem:[#allocation3 + $0x190] sm:$0xff]
        %v2633 = vld [vmem:[#allocation3 + $0x198] sm:$0xff]
        %v2634 = vld [vmem:[#allocation3 + $0x1a0] sm:$0xff]
        %v2635 = vld [vmem:[#allocation3 + $0x1a8] sm:$0xff]
        %v2636 = vld [vmem:[#allocation3 + $0x1b0] sm:$0xff]
        %v2637 = vld [vmem:[#allocation3 + $0x1b8] sm:$0xff]
        %v2638 = vld [vmem:[#allocation3 + $0x1c0] sm:$0xff]
        %v2639 = vld [vmem:[#allocation3 + $0x1c8] sm:$0xff]
        %v2640 = vld [vmem:[#allocation3 + $0x1d0] sm:$0xff]
        %v2641 = vld [vmem:[#allocation3 + $0x1d8] sm:$0xff]
        %v2642 = vld [vmem:[#allocation3 + $0x1e0] sm:$0xff]
        %v2643 = vld [vmem:[#allocation3 + $0x1e8] sm:$0xff]
        %v2644 = vld [vmem:[#allocation3 + $0x1f0] sm:$0xff]
        %v2645 = vld [vmem:[#allocation3 + $0x1f8] sm:$0xff]
        %v2646 = vld [vmem:[#allocation3 + $0x200] sm:$0xff]
        %v2647 = vld [vmem:[#allocation3 + $0x208] sm:$0xff]
        %v2648 = vld [vmem:[#allocation3 + $0x210] sm:$0xff]
        %v2649 = vld [vmem:[#allocation3 + $0x218] sm:$0xff]
        %v2650 = vld [vmem:[#allocation3 + $0x220] sm:$0xff]
        %v2651 = vld [vmem:[#allocation3 + $0x228] sm:$0xff]
        %v2652 = vld [vmem:[#allocation3 + $0x230] sm:$0xff]
        %v2653 = vld [vmem:[#allocation3 + $0x238] sm:$0xff]
        %v2654 = vld [vmem:[#allocation3 + $0x240] sm:$0xff]
        %v2655 = vld [vmem:[#allocation3 + $0x248] sm:$0xff]
        %v2656 = vld [vmem:[#allocation3 + $0x250] sm:$0xff]
        %v2657 = vld [vmem:[#allocation3 + $0x258] sm:$0xff]
        %v2658 = vld [vmem:[#allocation3 + $0x260] sm:$0xff]
        %v2659 = vld [vmem:[#allocation3 + $0x268] sm:$0xff]
        %v2660 = vld [vmem:[#allocation3 + $0x270] sm:$0xff]
        %v2661 = vld [vmem:[#allocation3 + $0x278] sm:$0xff]
        %v2662 = vld [vmem:[#allocation3 + $0x280] sm:$0xff]
        %v2663 = vld [vmem:[#allocation3 + $0x288] sm:$0xff]
        %v2664 = vld [vmem:[#allocation3 + $0x290] sm:$0xff]
        %v2665 = vld [vmem:[#allocation3 + $0x298] sm:$0xff]
        %v2666 = vld [vmem:[#allocation3 + $0x2a0] sm:$0xff]
        %v2667 = vld [vmem:[#allocation3 + $0x2a8] sm:$0xff]
        %v2668 = vld [vmem:[#allocation3 + $0x2b0] sm:$0xff]
        %v2669 = vld [vmem:[#allocation3 + $0x2b8] sm:$0xff]
        %v2670 = vld [vmem:[#allocation3 + $0x2c0] sm:$0xff]
        %v2671 = vld [vmem:[#allocation3 + $0x2c8] sm:$0xff]
        %v2672 = vld [vmem:[#allocation3 + $0x2d0] sm:$0xff]
        %v2673 = vld [vmem:[#allocation3 + $0x2d8] sm:$0xff]
        %v2674 = vld [vmem:[#allocation3 + $0x2e0] sm:$0xff]
        %v2675 = vld [vmem:[#allocation3 + $0x2e8] sm:$0xff]
        %v2676 = vld [vmem:[#allocation3 + $0x2f0] sm:$0xff]
        %v2677 = vld [vmem:[#allocation3 + $0x2f8] sm:$0xff]
        %v2678 = vld [vmem:[#allocation3 + $0x300] sm:$0xff]
        %v2679 = vld [vmem:[#allocation3 + $0x308] sm:$0xff]
        %v2680 = vld [vmem:[#allocation3 + $0x310] sm:$0xff]
        %v2681 = vld [vmem:[#allocation3 + $0x318] sm:$0xff]
        %v2682 = vld [vmem:[#allocation3 + $0x320] sm:$0xff]
        %v2784 = vunpack.c.l.b16 %v2582
        %v2785 = vunpack.c.h.b16 %v2582
        %v2786 = vunpack.c.l.b16 %v2583
        %v2787 = vunpack.c.h.b16 %v2583
        %v2788 = vunpack.c.l.b16 %v2584
        %v2789 = vunpack.c.h.b16 %v2584
        %v2790 = vunpack.c.l.b16 %v2585
        %v2791 = vunpack.c.h.b16 %v2585
        %v2792 = vunpack.c.l.b16 %v2586
        %v2793 = vunpack.c.h.b16 %v2586
        %v2794 = vunpack.c.l.b16 %v2587
        %v2795 = vunpack.c.h.b16 %v2587
        %v2796 = vunpack.c.l.b16 %v2588
        %v2797 = vunpack.c.h.b16 %v2588
        %v2798 = vunpack.c.l.b16 %v2589
        %v2799 = vunpack.c.h.b16 %v2589
        %v2800 = vunpack.c.l.b16 %v2590
        %v2801 = vunpack.c.h.b16 %v2590
        %v2802 = vunpack.c.l.b16 %v2591
        %v2803 = vunpack.c.h.b16 %v2591
        %v2804 = vunpack.c.l.b16 %v2592
        %v2805 = vunpack.c.h.b16 %v2592
        %v2806 = vunpack.c.l.b16 %v2593
        %v2807 = vunpack.c.h.b16 %v2593
        %v2808 = vunpack.c.l.b16 %v2594
        %v2809 = vunpack.c.h.b16 %v2594
        %v2810 = vunpack.c.l.b16 %v2595
        %v2811 = vunpack.c.h.b16 %v2595
        %v2812 = vunpack.c.l.b16 %v2596
        %v2813 = vunpack.c.h.b16 %v2596
        %v2814 = vunpack.c.l.b16 %v2597
        %v2815 = vunpack.c.h.b16 %v2597
        %v2816 = vunpack.c.l.b16 %v2598
        %v2817 = vunpack.c.h.b16 %v2598
        %v2818 = vunpack.c.l.b16 %v2599
        %v2819 = vunpack.c.h.b16 %v2599
        %v2820 = vunpack.c.l.b16 %v2600
        %v2821 = vunpack.c.h.b16 %v2600
        %v2822 = vunpack.c.l.b16 %v2601
        %v2823 = vunpack.c.h.b16 %v2601
        %v2824 = vunpack.c.l.b16 %v2602
        %v2825 = vunpack.c.h.b16 %v2602
        %v2826 = vunpack.c.l.b16 %v2603
        %v2827 = vunpack.c.h.b16 %v2603
        %v2828 = vunpack.c.l.b16 %v2604
        %v2829 = vunpack.c.h.b16 %v2604
        %v2830 = vunpack.c.l.b16 %v2605
        %v2831 = vunpack.c.h.b16 %v2605
        %v2832 = vunpack.c.l.b16 %v2606
        %v2833 = vunpack.c.h.b16 %v2606
        %v2834 = vunpack.c.l.b16 %v2607
        %v2835 = vunpack.c.h.b16 %v2607
        %v2836 = vunpack.c.l.b16 %v2608
        %v2837 = vunpack.c.h.b16 %v2608
        %v2838 = vunpack.c.l.b16 %v2609
        %v2839 = vunpack.c.h.b16 %v2609
        %v2840 = vunpack.c.l.b16 %v2610
        %v2841 = vunpack.c.h.b16 %v2610
        %v2842 = vunpack.c.l.b16 %v2611
        %v2843 = vunpack.c.h.b16 %v2611
        %v2844 = vunpack.c.l.b16 %v2612
        %v2845 = vunpack.c.h.b16 %v2612
        %v2846 = vunpack.c.l.b16 %v2613
        %v2847 = vunpack.c.h.b16 %v2613
        %v2848 = vunpack.c.l.b16 %v2614
        %v2849 = vunpack.c.h.b16 %v2614
        %v2850 = vunpack.c.l.b16 %v2615
        %v2851 = vunpack.c.h.b16 %v2615
        %v2852 = vunpack.c.l.b16 %v2616
        %v2853 = vunpack.c.h.b16 %v2616
        %v2854 = vunpack.c.l.b16 %v2617
        %v2855 = vunpack.c.h.b16 %v2617
        %v2856 = vunpack.c.l.b16 %v2618
        %v2857 = vunpack.c.h.b16 %v2618
        %v2858 = vunpack.c.l.b16 %v2619
        %v2859 = vunpack.c.h.b16 %v2619
        %v2860 = vunpack.c.l.b16 %v2620
        %v2861 = vunpack.c.h.b16 %v2620
        %v2862 = vunpack.c.l.b16 %v2621
        %v2863 = vunpack.c.h.b16 %v2621
        %v2864 = vunpack.c.l.b16 %v2622
        %v2865 = vunpack.c.h.b16 %v2622
        %v2866 = vunpack.c.l.b16 %v2623
        %v2867 = vunpack.c.h.b16 %v2623
        %v2868 = vunpack.c.l.b16 %v2624
        %v2869 = vunpack.c.h.b16 %v2624
        %v2870 = vunpack.c.l.b16 %v2625
        %v2871 = vunpack.c.h.b16 %v2625
        %v2872 = vunpack.c.l.b16 %v2626
        %v2873 = vunpack.c.h.b16 %v2626
        %v2874 = vunpack.c.l.b16 %v2627
        %v2875 = vunpack.c.h.b16 %v2627
        %v2876 = vunpack.c.l.b16 %v2628
        %v2877 = vunpack.c.h.b16 %v2628
        %v2878 = vunpack.c.l.b16 %v2629
        %v2879 = vunpack.c.h.b16 %v2629
        %v2880 = vunpack.c.l.b16 %v2630
        %v2881 = vunpack.c.h.b16 %v2630
        %v2882 = vunpack.c.l.b16 %v2631
        %v2883 = vunpack.c.h.b16 %v2631
        %v2884 = vunpack.c.l.b16 %v2632
        %v2885 = vunpack.c.h.b16 %v2632
        %v2886 = vunpack.c.l.b16 %v2633
        %v2887 = vunpack.c.h.b16 %v2633
        %v2888 = vunpack.c.l.b16 %v2634
        %v2889 = vunpack.c.h.b16 %v2634
        %v2890 = vunpack.c.l.b16 %v2635
        %v2891 = vunpack.c.h.b16 %v2635
        %v2892 = vunpack.c.l.b16 %v2636
        %v2893 = vunpack.c.h.b16 %v2636
        %v2894 = vunpack.c.l.b16 %v2637
        %v2895 = vunpack.c.h.b16 %v2637
        %v2896 = vunpack.c.l.b16 %v2638
        %v2897 = vunpack.c.h.b16 %v2638
        %v2898 = vunpack.c.l.b16 %v2639
        %v2899 = vunpack.c.h.b16 %v2639
        %v2900 = vunpack.c.l.b16 %v2640
        %v2901 = vunpack.c.h.b16 %v2640
        %v2902 = vunpack.c.l.b16 %v2641
        %v2903 = vunpack.c.h.b16 %v2641
        %v2904 = vunpack.c.l.b16 %v2642
        %v2905 = vunpack.c.h.b16 %v2642
        %v2906 = vunpack.c.l.b16 %v2643
        %v2907 = vunpack.c.h.b16 %v2643
        %v2908 = vunpack.c.l.b16 %v2644
        %v2909 = vunpack.c.h.b16 %v2644
        %v2910 = vunpack.c.l.b16 %v2645
        %v2911 = vunpack.c.h.b16 %v2645
        %v2912 = vunpack.c.l.b16 %v2646
        %v2913 = vunpack.c.h.b16 %v2646
        %v2914 = vunpack.c.l.b16 %v2647
        %v2915 = vunpack.c.h.b16 %v2647
        %v2916 = vunpack.c.l.b16 %v2648
        %v2917 = vunpack.c.h.b16 %v2648
        %v2918 = vunpack.c.l.b16 %v2649
        %v2919 = vunpack.c.h.b16 %v2649
        %v2920 = vunpack.c.l.b16 %v2650
        %v2921 = vunpack.c.h.b16 %v2650
        %v2922 = vunpack.c.l.b16 %v2651
        %v2923 = vunpack.c.h.b16 %v2651
        %v2924 = vunpack.c.l.b16 %v2652
        %v2925 = vunpack.c.h.b16 %v2652
        %v2926 = vunpack.c.l.b16 %v2653
        %v2927 = vunpack.c.h.b16 %v2653
        %v2928 = vunpack.c.l.b16 %v2654
        %v2929 = vunpack.c.h.b16 %v2654
        %v2930 = vunpack.c.l.b16 %v2655
        %v2931 = vunpack.c.h.b16 %v2655
        %v2932 = vunpack.c.l.b16 %v2656
        %v2933 = vunpack.c.h.b16 %v2656
        %v2934 = vunpack.c.l.b16 %v2657
        %v2935 = vunpack.c.h.b16 %v2657
        %v2936 = vunpack.c.l.b16 %v2658
        %v2937 = vunpack.c.h.b16 %v2658
        %v2938 = vunpack.c.l.b16 %v2659
        %v2939 = vunpack.c.h.b16 %v2659
        %v2940 = vunpack.c.l.b16 %v2660
        %v2941 = vunpack.c.h.b16 %v2660
        %v2942 = vunpack.c.l.b16 %v2661
        %v2943 = vunpack.c.h.b16 %v2661
        %v2944 = vunpack.c.l.b16 %v2662
        %v2945 = vunpack.c.h.b16 %v2662
        %v2946 = vunpack.c.l.b16 %v2663
        %v2947 = vunpack.c.h.b16 %v2663
        %v2948 = vunpack.c.l.b16 %v2664
        %v2949 = vunpack.c.h.b16 %v2664
        %v2950 = vunpack.c.l.b16 %v2665
        %v2951 = vunpack.c.h.b16 %v2665
        %v2952 = vunpack.c.l.b16 %v2666
        %v2953 = vunpack.c.h.b16 %v2666
        %v2954 = vunpack.c.l.b16 %v2667
        %v2955 = vunpack.c.h.b16 %v2667
        %v2956 = vunpack.c.l.b16 %v2668
        %v2957 = vunpack.c.h.b16 %v2668
        %v2958 = vunpack.c.l.b16 %v2669
        %v2959 = vunpack.c.h.b16 %v2669
        %v2960 = vunpack.c.l.b16 %v2670
        %v2961 = vunpack.c.h.b16 %v2670
        %v2962 = vunpack.c.l.b16 %v2671
        %v2963 = vunpack.c.h.b16 %v2671
        %v2964 = vunpack.c.l.b16 %v2672
        %v2965 = vunpack.c.h.b16 %v2672
        %v2966 = vunpack.c.l.b16 %v2673
        %v2967 = vunpack.c.h.b16 %v2673
        %v2968 = vunpack.c.l.b16 %v2674
        %v2969 = vunpack.c.h.b16 %v2674
        %v2970 = vunpack.c.l.b16 %v2675
        %v2971 = vunpack.c.h.b16 %v2675
        %v2972 = vunpack.c.l.b16 %v2676
        %v2973 = vunpack.c.h.b16 %v2676
        %v2974 = vunpack.c.l.b16 %v2677
        %v2975 = vunpack.c.h.b16 %v2677
        %v2976 = vunpack.c.l.b16 %v2678
        %v2977 = vunpack.c.h.b16 %v2678
        %v2978 = vunpack.c.l.b16 %v2679
        %v2979 = vunpack.c.h.b16 %v2679
        %v2980 = vunpack.c.l.b16 %v2680
        %v2981 = vunpack.c.h.b16 %v2680
        %v2982 = vunpack.c.l.b16 %v2681
        %v2983 = vunpack.c.h.b16 %v2681
        %v2984 = vunpack.c.l.b16 %v2682
        %v2985 = vunpack.c.h.b16 %v2682
        %v2986 = vpack.c.b16 %v2786, %v2784
        %v2987 = vpack.c.b16 %v2787, %v2785
        %v2988 = vpack.c.b16 %v2790, %v2788
        %v2989 = vpack.c.b16 %v2791, %v2789
        %v2990 = vpack.c.b16 %v2794, %v2792
        %v2991 = vpack.c.b16 %v2795, %v2793
        %v2992 = vpack.c.b16 %v2798, %v2796
        %v2993 = vpack.c.b16 %v2799, %v2797
        %v2994 = vpack.c.b16 %v2802, %v2800
        %v2995 = vpack.c.b16 %v2803, %v2801
        %v2996 = vpack.c.b16 %v2806, %v2804
        %v2997 = vpack.c.b16 %v2807, %v2805
        %v2998 = vpack.c.b16 %v2810, %v2808
        %v2999 = vpack.c.b16 %v2811, %v2809
        %v3000 = vpack.c.b16 %v2814, %v2812
        %v3001 = vpack.c.b16 %v2815, %v2813
        %v3002 = vpack.c.b16 %v2818, %v2816
        %v3003 = vpack.c.b16 %v2819, %v2817
        %v3004 = vpack.c.b16 %v2822, %v2820
        %v3005 = vpack.c.b16 %v2823, %v2821
        %v3006 = vpack.c.b16 %v2826, %v2824
        %v3007 = vpack.c.b16 %v2827, %v2825
        %v3008 = vpack.c.b16 %v2830, %v2828
        %v3009 = vpack.c.b16 %v2831, %v2829
        %v3010 = vpack.c.b16 %v2834, %v2832
        %v3011 = vpack.c.b16 %v2835, %v2833
        %v3012 = vpack.c.b16 %v2838, %v2836
        %v3013 = vpack.c.b16 %v2839, %v2837
        %v3014 = vpack.c.b16 %v2842, %v2840
        %v3015 = vpack.c.b16 %v2843, %v2841
        %v3016 = vpack.c.b16 %v2846, %v2844
        %v3017 = vpack.c.b16 %v2847, %v2845
        %v3018 = vpack.c.b16 %v2850, %v2848
        %v3019 = vpack.c.b16 %v2851, %v2849
        %v3020 = vpack.c.b16 %v2854, %v2852
        %v3021 = vpack.c.b16 %v2855, %v2853
        %v3022 = vpack.c.b16 %v2858, %v2856
        %v3023 = vpack.c.b16 %v2859, %v2857
        %v3024 = vpack.c.b16 %v2862, %v2860
        %v3025 = vpack.c.b16 %v2863, %v2861
        %v3026 = vpack.c.b16 %v2866, %v2864
        %v3027 = vpack.c.b16 %v2867, %v2865
        %v3028 = vpack.c.b16 %v2870, %v2868
        %v3029 = vpack.c.b16 %v2871, %v2869
        %v3030 = vpack.c.b16 %v2874, %v2872
        %v3031 = vpack.c.b16 %v2875, %v2873
        %v3032 = vpack.c.b16 %v2878, %v2876
        %v3033 = vpack.c.b16 %v2879, %v2877
        %v3034 = vpack.c.b16 %v2882, %v2880
        %v3035 = vpack.c.b16 %v2883, %v2881
        %v3036 = vpack.c.b16 %v2886, %v2884
        %v3037 = vpack.c.b16 %v2887, %v2885
        %v3038 = vpack.c.b16 %v2890, %v2888
        %v3039 = vpack.c.b16 %v2891, %v2889
        %v3040 = vpack.c.b16 %v2894, %v2892
        %v3041 = vpack.c.b16 %v2895, %v2893
        %v3042 = vpack.c.b16 %v2898, %v2896
        %v3043 = vpack.c.b16 %v2899, %v2897
        %v3044 = vpack.c.b16 %v2902, %v2900
        %v3045 = vpack.c.b16 %v2903, %v2901
        %v3046 = vpack.c.b16 %v2906, %v2904
        %v3047 = vpack.c.b16 %v2907, %v2905
        %v3048 = vpack.c.b16 %v2910, %v2908
        %v3049 = vpack.c.b16 %v2911, %v2909
        %v3050 = vpack.c.b16 %v2914, %v2912
        %v3051 = vpack.c.b16 %v2915, %v2913
        %v3052 = vpack.c.b16 %v2918, %v2916
        %v3053 = vpack.c.b16 %v2919, %v2917
        %v3054 = vpack.c.b16 %v2922, %v2920
        %v3055 = vpack.c.b16 %v2923, %v2921
        %v3056 = vpack.c.b16 %v2926, %v2924
        %v3057 = vpack.c.b16 %v2927, %v2925
        %v3058 = vpack.c.b16 %v2930, %v2928
        %v3059 = vpack.c.b16 %v2931, %v2929
        %v3060 = vpack.c.b16 %v2934, %v2932
        %v3061 = vpack.c.b16 %v2935, %v2933
        %v3062 = vpack.c.b16 %v2938, %v2936
        %v3063 = vpack.c.b16 %v2939, %v2937
        %v3064 = vpack.c.b16 %v2942, %v2940
        %v3065 = vpack.c.b16 %v2943, %v2941
        %v3066 = vpack.c.b16 %v2946, %v2944
        %v3067 = vpack.c.b16 %v2947, %v2945
        %v3068 = vpack.c.b16 %v2950, %v2948
        %v3069 = vpack.c.b16 %v2951, %v2949
        %v3070 = vpack.c.b16 %v2954, %v2952
        %v3071 = vpack.c.b16 %v2955, %v2953
        %v3072 = vpack.c.b16 %v2958, %v2956
        %v3073 = vpack.c.b16 %v2959, %v2957
        %v3074 = vpack.c.b16 %v2962, %v2960
        %v3075 = vpack.c.b16 %v2963, %v2961
        %v3076 = vpack.c.b16 %v2966, %v2964
        %v3077 = vpack.c.b16 %v2967, %v2965
        %v3078 = vpack.c.b16 %v2970, %v2968
        %v3079 = vpack.c.b16 %v2971, %v2969
        %v3080 = vpack.c.b16 %v2974, %v2972
        %v3081 = vpack.c.b16 %v2975, %v2973
        %v3082 = vpack.c.b16 %v2978, %v2976
        %v3083 = vpack.c.b16 %v2979, %v2977
        %v3084 = vpack.c.b16 %v2982, %v2980
        %v3085 = vpack.c.b16 %v2983, %v2981
        %v3086 = vpack.c.b16 %v2984, %v2984
        %v3087 = vpack.c.b16 %v2985, %v2985
        %vm3188 = vcmask 318464
        %v3190 = vsel %vm3188, %v2574, 0
        %v3193 = vsel %vm3188, %v2581, 0
        %vm3195 = vcmask 1042432
        %vm3196 = vcmask 1043456
        %v3197 = vsel %vm3195, 4294967295, 65535
        %v3198 = vsel %vm3196, %v3197, 0
        %v3200 = vand.u32 %v3086, %v3198
        %v3203 = vand.u32 %v3087, %v3198
        %3205 = vmatpush.bf16.msra.mxu0 %v3000
        %3206 = vmatpush.bf16.msra.mxu0 %v2998
        %3207 = vmatpush.bf16.msra.mxu0 %v2996
        %3208 = vmatpush.bf16.msra.mxu0 %v2994
        %3209 = vmatpush.bf16.msra.mxu0 %v2992
        %3210 = vmatpush.bf16.msra.mxu0 %v2990
        %3211 = vmatpush.bf16.msra.mxu0 %v2988
        %3212 = vmatpush.bf16.msra.mxu0 %v2986
        %3213 = vmatmul.bf16.gmra.mxu0 %v2568
        %v3214 = vpop.f32.mrf.mxu0
        %v3215 = vadd.f32 0.0, %v3214
        %v3216 = vpop.f32.mrf.mxu0
        %v3217 = vadd.f32 0.0, %v3216
        %3218 = vmatmul.bf16.gmra.mxu0 %v2575
        %v3219 = vpop.f32.mrf.mxu0
        %v3220 = vadd.f32 0.0, %v3219
        %v3221 = vpop.f32.mrf.mxu0
        %v3222 = vadd.f32 0.0, %v3221
        %3223 = vdwg.mxu0
        %3224 = vmatpush.bf16.msra.mxu0 %v3016
        %3225 = vmatpush.bf16.msra.mxu0 %v3014
        %3226 = vmatpush.bf16.msra.mxu0 %v3012
        %3227 = vmatpush.bf16.msra.mxu0 %v3010
        %3228 = vmatpush.bf16.msra.mxu0 %v3008
        %3229 = vmatpush.bf16.msra.mxu0 %v3006
        %3230 = vmatpush.bf16.msra.mxu0 %v3004
        %3231 = vmatpush.bf16.msra.mxu0 %v3002
        %3232 = vmatmul.bf16.gmra.mxu0 %v2569
        %v3233 = vpop.f32.mrf.mxu0
        %v3234 = vadd.f32 %v3215, %v3233
        %v3235 = vpop.f32.mrf.mxu0
        %v3236 = vadd.f32 %v3217, %v3235
        %3237 = vmatmul.bf16.gmra.mxu0 %v2576
        %v3238 = vpop.f32.mrf.mxu0
        %v3239 = vadd.f32 %v3220, %v3238
        %v3240 = vpop.f32.mrf.mxu0
        %v3241 = vadd.f32 %v3222, %v3240
        %3242 = vdwg.mxu0
        %3243 = vmatpush.bf16.msra.mxu0 %v3032
        %3244 = vmatpush.bf16.msra.mxu0 %v3030
        %3245 = vmatpush.bf16.msra.mxu0 %v3028
        %3246 = vmatpush.bf16.msra.mxu0 %v3026
        %3247 = vmatpush.bf16.msra.mxu0 %v3024
        %3248 = vmatpush.bf16.msra.mxu0 %v3022
        %3249 = vmatpush.bf16.msra.mxu0 %v3020
        %3250 = vmatpush.bf16.msra.mxu0 %v3018
        %3251 = vmatmul.bf16.gmra.mxu0 %v2570
        %v3252 = vpop.f32.mrf.mxu0
        %v3253 = vadd.f32 %v3234, %v3252
        %v3254 = vpop.f32.mrf.mxu0
        %v3255 = vadd.f32 %v3236, %v3254
        %3256 = vmatmul.bf16.gmra.mxu0 %v2577
        %v3257 = vpop.f32.mrf.mxu0
        %v3258 = vadd.f32 %v3239, %v3257
        %v3259 = vpop.f32.mrf.mxu0
        %v3260 = vadd.f32 %v3241, %v3259
        %3261 = vdwg.mxu0
        %3262 = vmatpush.bf16.msra.mxu0 %v3048
        %3263 = vmatpush.bf16.msra.mxu0 %v3046
        %3264 = vmatpush.bf16.msra.mxu0 %v3044
        %3265 = vmatpush.bf16.msra.mxu0 %v3042
        %3266 = vmatpush.bf16.msra.mxu0 %v3040
        %3267 = vmatpush.bf16.msra.mxu0 %v3038
        %3268 = vmatpush.bf16.msra.mxu0 %v3036
        %3269 = vmatpush.bf16.msra.mxu0 %v3034
        %3270 = vmatmul.bf16.gmra.mxu0 %v2571
        %v3271 = vpop.f32.mrf.mxu0
        %v3272 = vadd.f32 %v3253, %v3271
        %v3273 = vpop.f32.mrf.mxu0
        %v3274 = vadd.f32 %v3255, %v3273
        %3275 = vmatmul.bf16.gmra.mxu0 %v2578
        %v3276 = vpop.f32.mrf.mxu0
        %v3277 = vadd.f32 %v3258, %v3276
        %v3278 = vpop.f32.mrf.mxu0
        %v3279 = vadd.f32 %v3260, %v3278
        %3280 = vdwg.mxu0
        %3281 = vmatpush.bf16.msra.mxu0 %v3064
        %3282 = vmatpush.bf16.msra.mxu0 %v3062
        %3283 = vmatpush.bf16.msra.mxu0 %v3060
        %3284 = vmatpush.bf16.msra.mxu0 %v3058
        %3285 = vmatpush.bf16.msra.mxu0 %v3056
        %3286 = vmatpush.bf16.msra.mxu0 %v3054
        %3287 = vmatpush.bf16.msra.mxu0 %v3052
        %3288 = vmatpush.bf16.msra.mxu0 %v3050
        %3289 = vmatmul.bf16.gmra.mxu0 %v2572
        %v3290 = vpop.f32.mrf.mxu0
        %v3291 = vadd.f32 %v3272, %v3290
        %v3292 = vpop.f32.mrf.mxu0
        %v3293 = vadd.f32 %v3274, %v3292
        %3294 = vmatmul.bf16.gmra.mxu0 %v2579
        %v3295 = vpop.f32.mrf.mxu0
        %v3296 = vadd.f32 %v3277, %v3295
        %v3297 = vpop.f32.mrf.mxu0
        %v3298 = vadd.f32 %v3279, %v3297
        %3299 = vdwg.mxu0
        %3300 = vmatpush.bf16.msra.mxu0 %v3080
        %3301 = vmatpush.bf16.msra.mxu0 %v3078
        %3302 = vmatpush.bf16.msra.mxu0 %v3076
        %3303 = vmatpush.bf16.msra.mxu0 %v3074
        %3304 = vmatpush.bf16.msra.mxu0 %v3072
        %3305 = vmatpush.bf16.msra.mxu0 %v3070
        %3306 = vmatpush.bf16.msra.mxu0 %v3068
        %3307 = vmatpush.bf16.msra.mxu0 %v3066
        %3308 = vmatmul.bf16.gmra.mxu0 %v2573
        %v3309 = vpop.f32.mrf.mxu0
        %v3310 = vadd.f32 %v3291, %v3309
        %v3311 = vpop.f32.mrf.mxu0
        %v3312 = vadd.f32 %v3293, %v3311
        %3313 = vmatmul.bf16.gmra.mxu0 %v2580
        %v3314 = vpop.f32.mrf.mxu0
        %v3315 = vadd.f32 %v3296, %v3314
        %v3316 = vpop.f32.mrf.mxu0
        %v3317 = vadd.f32 %v3298, %v3316
        %3318 = vdwg.mxu0
        %3319 = vmatpush.bf16.msra.mxu0 0
        %3320 = vmatpush.bf16.msra.mxu0 0
        %3321 = vmatpush.bf16.msra.mxu0 0
        %3322 = vmatpush.bf16.msra.mxu0 0
        %3323 = vmatpush.bf16.msra.mxu0 0
        %3324 = vmatpush.bf16.msra.mxu0 %v3200
        %3325 = vmatpush.bf16.msra.mxu0 %v3084
        %3326 = vmatpush.bf16.msra.mxu0 %v3082
        %3327 = vmatmul.bf16.gmra.mxu0 %v3190
        %v3328 = vpop.f32.mrf.mxu0
        %v3329 = vadd.f32 %v3310, %v3328
        %v3330 = vpop.f32.mrf.mxu0
        %v3331 = vadd.f32 %v3312, %v3330
        %3332 = vmatmul.bf16.gmra.mxu0 %v3193
        %v3333 = vpop.f32.mrf.mxu0
        %v3334 = vadd.f32 %v3315, %v3333
        %v3335 = vpop.f32.mrf.mxu0
        %v3336 = vadd.f32 %v3317, %v3335
        %3337 = vdwg.mxu0
        %3338 = vmatpush.bf16.msra.mxu0 %v3001
        %3339 = vmatpush.bf16.msra.mxu0 %v2999
        %3340 = vmatpush.bf16.msra.mxu0 %v2997
        %3341 = vmatpush.bf16.msra.mxu0 %v2995
        %3342 = vmatpush.bf16.msra.mxu0 %v2993
        %3343 = vmatpush.bf16.msra.mxu0 %v2991
        %3344 = vmatpush.bf16.msra.mxu0 %v2989
        %3345 = vmatpush.bf16.msra.mxu0 %v2987
        %3346 = vmatmul.bf16.gmra.mxu0 %v2568
        %v3347 = vpop.f32.mrf.mxu0
        %v3348 = vadd.f32 0.0, %v3347
        %v3349 = vpop.f32.mrf.mxu0
        %v3350 = vadd.f32 0.0, %v3349
        %3351 = vmatmul.bf16.gmra.mxu0 %v2575
        %v3352 = vpop.f32.mrf.mxu0
        %v3353 = vadd.f32 0.0, %v3352
        %v3354 = vpop.f32.mrf.mxu0
        %v3355 = vadd.f32 0.0, %v3354
        %3356 = vdwg.mxu0
        %3357 = vmatpush.bf16.msra.mxu0 %v3017
        %3358 = vmatpush.bf16.msra.mxu0 %v3015
        %3359 = vmatpush.bf16.msra.mxu0 %v3013
        %3360 = vmatpush.bf16.msra.mxu0 %v3011
        %3361 = vmatpush.bf16.msra.mxu0 %v3009
        %3362 = vmatpush.bf16.msra.mxu0 %v3007
        %3363 = vmatpush.bf16.msra.mxu0 %v3005
        %3364 = vmatpush.bf16.msra.mxu0 %v3003
        %3365 = vmatmul.bf16.gmra.mxu0 %v2569
        %v3366 = vpop.f32.mrf.mxu0
        %v3367 = vadd.f32 %v3348, %v3366
        %v3368 = vpop.f32.mrf.mxu0
        %v3369 = vadd.f32 %v3350, %v3368
        %3370 = vmatmul.bf16.gmra.mxu0 %v2576
        %v3371 = vpop.f32.mrf.mxu0
        %v3372 = vadd.f32 %v3353, %v3371
        %v3373 = vpop.f32.mrf.mxu0
        %v3374 = vadd.f32 %v3355, %v3373
        %3375 = vdwg.mxu0
        %3376 = vmatpush.bf16.msra.mxu0 %v3033
        %3377 = vmatpush.bf16.msra.mxu0 %v3031
        %3378 = vmatpush.bf16.msra.mxu0 %v3029
        %3379 = vmatpush.bf16.msra.mxu0 %v3027
        %3380 = vmatpush.bf16.msra.mxu0 %v3025
        %3381 = vmatpush.bf16.msra.mxu0 %v3023
        %3382 = vmatpush.bf16.msra.mxu0 %v3021
        %3383 = vmatpush.bf16.msra.mxu0 %v3019
        %3384 = vmatmul.bf16.gmra.mxu0 %v2570
        %v3385 = vpop.f32.mrf.mxu0
        %v3386 = vadd.f32 %v3367, %v3385
        %v3387 = vpop.f32.mrf.mxu0
        %v3388 = vadd.f32 %v3369, %v3387
        %3389 = vmatmul.bf16.gmra.mxu0 %v2577
        %v3390 = vpop.f32.mrf.mxu0
        %v3391 = vadd.f32 %v3372, %v3390
        %v3392 = vpop.f32.mrf.mxu0
        %v3393 = vadd.f32 %v3374, %v3392
        %3394 = vdwg.mxu0
        %3395 = vmatpush.bf16.msra.mxu0 %v3049
        %3396 = vmatpush.bf16.msra.mxu0 %v3047
        %3397 = vmatpush.bf16.msra.mxu0 %v3045
        %3398 = vmatpush.bf16.msra.mxu0 %v3043
        %3399 = vmatpush.bf16.msra.mxu0 %v3041
        %3400 = vmatpush.bf16.msra.mxu0 %v3039
        %3401 = vmatpush.bf16.msra.mxu0 %v3037
        %3402 = vmatpush.bf16.msra.mxu0 %v3035
        %3403 = vmatmul.bf16.gmra.mxu0 %v2571
        %v3404 = vpop.f32.mrf.mxu0
        %v3405 = vadd.f32 %v3386, %v3404
        %v3406 = vpop.f32.mrf.mxu0
        %v3407 = vadd.f32 %v3388, %v3406
        %3408 = vmatmul.bf16.gmra.mxu0 %v2578
        %v3409 = vpop.f32.mrf.mxu0
        %v3410 = vadd.f32 %v3391, %v3409
        %v3411 = vpop.f32.mrf.mxu0
        %v3412 = vadd.f32 %v3393, %v3411
        %3413 = vdwg.mxu0
        %3414 = vmatpush.bf16.msra.mxu0 %v3065
        %3415 = vmatpush.bf16.msra.mxu0 %v3063
        %3416 = vmatpush.bf16.msra.mxu0 %v3061
        %3417 = vmatpush.bf16.msra.mxu0 %v3059
        %3418 = vmatpush.bf16.msra.mxu0 %v3057
        %3419 = vmatpush.bf16.msra.mxu0 %v3055
        %3420 = vmatpush.bf16.msra.mxu0 %v3053
        %3421 = vmatpush.bf16.msra.mxu0 %v3051
        %3422 = vmatmul.bf16.gmra.mxu0 %v2572
        %v3423 = vpop.f32.mrf.mxu0
        %v3424 = vadd.f32 %v3405, %v3423
        %v3425 = vpop.f32.mrf.mxu0
        %v3426 = vadd.f32 %v3407, %v3425
        %3427 = vmatmul.bf16.gmra.mxu0 %v2579
        %v3428 = vpop.f32.mrf.mxu0
        %v3429 = vadd.f32 %v3410, %v3428
        %v3430 = vpop.f32.mrf.mxu0
        %v3431 = vadd.f32 %v3412, %v3430
        %3432 = vdwg.mxu0
        %3433 = vmatpush.bf16.msra.mxu0 %v3081
        %3434 = vmatpush.bf16.msra.mxu0 %v3079
        %3435 = vmatpush.bf16.msra.mxu0 %v3077
        %3436 = vmatpush.bf16.msra.mxu0 %v3075
        %3437 = vmatpush.bf16.msra.mxu0 %v3073
        %3438 = vmatpush.bf16.msra.mxu0 %v3071
        %3439 = vmatpush.bf16.msra.mxu0 %v3069
        %3440 = vmatpush.bf16.msra.mxu0 %v3067
        %3441 = vmatmul.bf16.gmra.mxu0 %v2573
        %v3442 = vpop.f32.mrf.mxu0
        %v3443 = vadd.f32 %v3424, %v3442
        %v3444 = vpop.f32.mrf.mxu0
        %v3445 = vadd.f32 %v3426, %v3444
        %3446 = vmatmul.bf16.gmra.mxu0 %v2580
        %v3447 = vpop.f32.mrf.mxu0
        %v3448 = vadd.f32 %v3429, %v3447
        %v3449 = vpop.f32.mrf.mxu0
        %v3450 = vadd.f32 %v3431, %v3449
        %3451 = vdwg.mxu0
        %3452 = vmatpush.bf16.msra.mxu0 0
        %3453 = vmatpush.bf16.msra.mxu0 0
        %3454 = vmatpush.bf16.msra.mxu0 0
        %3455 = vmatpush.bf16.msra.mxu0 0
        %3456 = vmatpush.bf16.msra.mxu0 0
        %3457 = vmatpush.bf16.msra.mxu0 %v3203
        %3458 = vmatpush.bf16.msra.mxu0 %v3085
        %3459 = vmatpush.bf16.msra.mxu0 %v3083
        %3460 = vmatmul.bf16.gmra.mxu0 %v3190
        %v3461 = vpop.f32.mrf.mxu0
        %v3462 = vadd.f32 %v3443, %v3461
        %v3463 = vpop.f32.mrf.mxu0
        %v3464 = vadd.f32 %v3445, %v3463
        %3465 = vmatmul.bf16.gmra.mxu0 %v3193
        %v3466 = vpop.f32.mrf.mxu0
        %v3467 = vadd.f32 %v3448, %v3466
        %v3468 = vpop.f32.mrf.mxu0
        %v3469 = vadd.f32 %v3450, %v3468
        %3470 = vdwg.mxu0
        %3471 = vst [vmem:[%s211] sm:$0xff] %v3329
        %3472 = vst [vmem:[%s211 + $0x8] sm:$0xff] %v3462
        %3473 = vst [vmem:[%s211 + $0x10] sm:$0xff] %v3331
        %3474 = vst [vmem:[%s211 + $0x18] sm:$0xff] %v3464
        %3475 = vst [vmem:[%s211 + $0x20] sm:$0xff] %v3334
        %3476 = vst [vmem:[%s211 + $0x28] sm:$0xff] %v3467
        %3477 = vst [vmem:[%s211 + $0x30] sm:$0xff] %v3336
        %3478 = vst [vmem:[%s211 + $0x38] sm:$0xff] %v3469
        %p3479 = scmp.lt.s32.totalorder %s16, 1
        %s3480 = scalar_select %p3479, %s16, 1
        %s3481 = smul.addr %s3480, 8
        %s3482 = smul.addr %s3481, 8
        %s3483 = scalar_lea.vmem %s4, %s3482
        // Predicated region
        $region41: #{net_forward.3} parent=35 // pred_check
          %p3484 = pneg %p123
        $region42: #{net_forward.3} parent=35 // pred_check_branch
          %3486 = sbr.rel (%p3484) target = $region44
        $region43: #{net_forward.3} parent=35 // pred_region
          _
        $region44: #{net_forward.3} parent=35 // pred_fallthru
          _
      $region36: #{net_forward.3} parent=5 // pred_fallthru
        _
      %p3487 = scmp.le.s32.totalorder 2, %s11
      // Predicated region
      $region45: #{net_forward.3} parent=5 // pred_check
        %p3488 = pneg %p3487
      $region46: #{net_forward.3} parent=5 // pred_check_branch
        %3490 = sbr.rel (%p3488) target = $region48
      $region47: #{net_forward.3} parent=5 // pred_region
        %s3491 = ssub.s32 %s11, 2
        // Predicated region
        $region49: #{net_forward.3} parent=47 // pred_check
          %p3492 = pneg %p129
        $region50: #{net_forward.3} parent=47 // pred_check_branch
          %3494 = sbr.rel (%p3492) target = $region52
        $region51: #{net_forward.3} parent=47 // pred_region
          %p3495 = scmp.lt.s32.totalorder %s17, 1
          %s3496 = scalar_select %p3495, %s17, 1
          %s3497 = smul.addr %s3496, 8
          %s3498 = smul.addr %s3497, 8
          %s3499 = scalar_lea.vmem %s4, %s3498
        $region52: #{net_forward.3} parent=47 // pred_fallthru
          _
      $region48: #{net_forward.3} parent=5 // pred_fallthru
        _
    $region6: #{net_forward.3} parent=1 // loop_footer
      %s15 = sadd.s32 1, %s11
    $region7: #{net_forward.3} parent=1 // loop_footer_branch
      %10 = sbr.rel target = $region3
    $region8: #{net_forward.3} parent=1 // loop_exit
      _
    %3500 = vsyncpa [#allocation4], 1
    %s3501 = scalar_lea.sflag [#allocation4], 1
    %3502 = vsyncpa %s3501, 1

// kernel: net_forward.5
$region0: #{net_forward.5}
  #allocation0 [shape = 'u32[]', space=smem, size = 0x4, offset = 0x4, fixed_abs, tag = 'smem constant byte address 0x4 - core index']
  #allocation1 [shape = 'u32[72,128]{1,0:T(1,128)}', space=vmem, size = 0x9000, scoped, tag = 'internal scratch']
  %s0 = inlined_call_operand.vmem [shape: f32[2,3136], index: 0, kind: input, shape index: {}]
  %s1 = inlined_call_operand.hbm [shape: bf16[3136,128], index: 1, kind: input, shape index: {}]
  %s2 = inlined_call_operand.vmem [shape: f32[1,128], index: 2, kind: input, shape index: {}]
  %s3 = inlined_call_operand.vmem [shape: bf16[128,10], index: 3, kind: input, shape index: {}]
  %s4 = inlined_call_operand.vmem [shape: f32[1,10], index: 4, kind: input, shape index: {}]
  %s5 = inlined_call_operand.hbm [shape: f32[2,10], index: 5, kind: output, shape index: {}]
  %s6 = sld [smem:[#allocation0]]
  $region34: #{net_forward.5} parent=0
    _
  %s8 = ssub.s32 1, %s6
  %s9 = scalar_select 0, %s8, %s6
  $region1: #{net_forward.5} parent=0
    #allocation2 [shape = 'u8[802816]{0}', space=vmem, size = 0xc4000, scoped, tag = 'input window, operand 1, single buffered']
    #allocation3 [shape = 's32[1]{0}', space=sflag, size = 0x4, scoped, tag = 'scoped memory for net_forward.5']
    #allocation4 [shape = 's32[1]{0}', space=sflag, size = 0x4, scoped, tag = 'scoped memory for net_forward.5']
    #allocation5 [shape = 'u8[1024]{0}', space=vmem, size = 0x400, scoped, tag = 'output window, operand 0, single buffered']
    %10 = vsyncpa [#allocation3], 0
    %11 = vsyncpa [#allocation4], 0
    // Predicated region
    $region2: #{net_forward.5} parent=1 // pred_check
      _
    $region3: #{net_forward.5} parent=1 // pred_check_branch
      %13 = sbr.rel (0) target = $region5
    $region4: #{net_forward.5} parent=1 // pred_region
      _
    $region5: #{net_forward.5} parent=1 // pred_fallthru
      _
    // Predicated region
    $region6: #{net_forward.5} parent=1 // pred_check
      _
    $region7: #{net_forward.5} parent=1 // pred_check_branch
      %15 = sbr.rel (0) target = $region9
    $region8: #{net_forward.5} parent=1 // pred_region
      %17 = vsyncadd [#allocation3], 0
      %s18 = sshll.u32 %s1, 4
      %s19 = int_to_ptr.hbm [resolvable:$true] %s18
      %s20 = sshll.u32 [#allocation2], 4
      %s21 = int_to_ptr.vmem [resolvable:$true] %s20
      %26 = dma.hbm_to_vmem [thread:$0]  %s19, 25088, %s21, [#allocation3], 64, 64, 4
    $region9: #{net_forward.5} parent=1 // pred_fallthru
      _
    // Predicated region
    $region10: #{net_forward.5} parent=1 // pred_check
      _
    $region11: #{net_forward.5} parent=1 // pred_check_branch
      %28 = sbr.rel (0) target = $region13
    $region12: #{net_forward.5} parent=1 // pred_region
      _
    $region13: #{net_forward.5} parent=1 // pred_fallthru
      _
    // Predicated region
    $region14: #{net_forward.5} parent=1 // pred_check
      _
    $region15: #{net_forward.5} parent=1 // pred_check_branch
      %30 = sbr.rel (0) target = $region17
    $region16: #{net_forward.5} parent=1 // pred_region
      _
    $region17: #{net_forward.5} parent=1 // pred_fallthru
      _
    // Predicated region
    $region18: #{net_forward.5} parent=1 // pred_check
      _
    $region19: #{net_forward.5} parent=1 // pred_check_branch
      %32 = sbr.rel (0) target = $region21
    $region20: #{net_forward.5} parent=1 // pred_region
      _
    $region21: #{net_forward.5} parent=1 // pred_fallthru
      _
    // Predicated region
    $region22: #{net_forward.5} parent=1 // pred_check
      _
    $region23: #{net_forward.5} parent=1 // pred_check_branch
      %34 = sbr.rel (0) target = $region25
    $region24: #{net_forward.5} parent=1 // pred_region
      %36 = dma.done [#allocation3], 25088
    $region25: #{net_forward.5} parent=1 // pred_fallthru
      _
    %v38 = vld [vmem:[%s0] sm:$0xff]
    %v39 = vld [vmem:[%s0 + $0x8] sm:$0xff]
    %v40 = vld [vmem:[%s0 + $0x10] sm:$0xff]
    %v41 = vld [vmem:[%s0 + $0x18] sm:$0xff]
    %v42 = vld [vmem:[%s0 + $0x20] sm:$0xff]
    %v43 = vld [vmem:[%s0 + $0x28] sm:$0xff]
    %v44 = vld [vmem:[%s0 + $0x30] sm:$0x3]
    %52 = vst [vmem:[#allocation1] ss:$4 sm:$0xff] %v38
    %s53 = scalar_lea.vmem [#allocation1], 32
    %54 = vst [vmem:[%s53] ss:$4 sm:$0xff] %v39
    %v55 = vld.sshfl [vmem:[#allocation1] sm:$0xff pattern:$0x73625140]
    %v56 = vld.sshfl [vmem:[#allocation1 + $0x8] sm:$0xff pattern:$0x73625140]
    %v57 = vld.sshfl [vmem:[#allocation1 + $0x10] sm:$0xff pattern:$0x73625140]
    %v58 = vld.sshfl [vmem:[#allocation1 + $0x18] sm:$0xff pattern:$0x73625140]
    %v59 = vld.sshfl [vmem:[#allocation1 + $0x20] sm:$0xff pattern:$0x73625140]
    %v60 = vld.sshfl [vmem:[#allocation1 + $0x28] sm:$0xff pattern:$0x73625140]
    %v61 = vld.sshfl [vmem:[#allocation1 + $0x30] sm:$0xff pattern:$0x73625140]
    %v62 = vld.sshfl [vmem:[#allocation1 + $0x38] sm:$0xff pattern:$0x73625140]
    %63 = vst [vmem:[#allocation1] ss:$4 sm:$0xff] %v40
    %64 = vst [vmem:[%s53] ss:$4 sm:$0xff] %v41
    %v65 = vld.sshfl [vmem:[#allocation1] sm:$0xff pattern:$0x73625140]
    %v66 = vld.sshfl [vmem:[#allocation1 + $0x8] sm:$0xff pattern:$0x73625140]
    %v67 = vld.sshfl [vmem:[#allocation1 + $0x10] sm:$0xff pattern:$0x73625140]
    %v68 = vld.sshfl [vmem:[#allocation1 + $0x18] sm:$0xff pattern:$0x73625140]
    %v69 = vld.sshfl [vmem:[#allocation1 + $0x20] sm:$0xff pattern:$0x73625140]
    %v70 = vld.sshfl [vmem:[#allocation1 + $0x28] sm:$0xff pattern:$0x73625140]
    %v71 = vld.sshfl [vmem:[#allocation1 + $0x30] sm:$0xff pattern:$0x73625140]
    %v72 = vld.sshfl [vmem:[#allocation1 + $0x38] sm:$0xff pattern:$0x73625140]
    %73 = vst [vmem:[#allocation1] ss:$4 sm:$0xff] %v42
    %74 = vst [vmem:[%s53] ss:$4 sm:$0xff] %v43
    %v75 = vld.sshfl [vmem:[#allocation1] sm:$0xff pattern:$0x73625140]
    %v76 = vld.sshfl [vmem:[#allocation1 + $0x8] sm:$0xff pattern:$0x73625140]
    %v77 = vld.sshfl [vmem:[#allocation1 + $0x10] sm:$0xff pattern:$0x73625140]
    %v78 = vld.sshfl [vmem:[#allocation1 + $0x18] sm:$0xff pattern:$0x73625140]
    %v79 = vld.sshfl [vmem:[#allocation1 + $0x20] sm:$0xff pattern:$0x73625140]
    %v80 = vld.sshfl [vmem:[#allocation1 + $0x28] sm:$0xff pattern:$0x73625140]
    %v81 = vld.sshfl [vmem:[#allocation1 + $0x30] sm:$0xff pattern:$0x73625140]
    %v82 = vld.sshfl [vmem:[#allocation1 + $0x38] sm:$0xff pattern:$0x73625140]
    %83 = vst [vmem:[#allocation1] ss:$4 sm:$0xff] %v44
    %v84 = vld.sshfl [vmem:[#allocation1] sm:$0xff pattern:$0x73625140]
    %v110 = vpack.c.bf16 %v55, %v55
    %v111 = vpack.c.bf16 %v56, %v56
    %v112 = vpack.c.bf16 %v57, %v57
    %v113 = vpack.c.bf16 %v58, %v58
    %v114 = vpack.c.bf16 %v59, %v59
    %v115 = vpack.c.bf16 %v60, %v60
    %v116 = vpack.c.bf16 %v61, %v61
    %v117 = vpack.c.bf16 %v62, %v62
    %v118 = vpack.c.bf16 %v65, %v65
    %v119 = vpack.c.bf16 %v66, %v66
    %v120 = vpack.c.bf16 %v67, %v67
    %v121 = vpack.c.bf16 %v68, %v68
    %v122 = vpack.c.bf16 %v69, %v69
    %v123 = vpack.c.bf16 %v70, %v70
    %v124 = vpack.c.bf16 %v71, %v71
    %v125 = vpack.c.bf16 %v72, %v72
    %v126 = vpack.c.bf16 %v75, %v75
    %v127 = vpack.c.bf16 %v76, %v76
    %v128 = vpack.c.bf16 %v77, %v77
    %v129 = vpack.c.bf16 %v78, %v78
    %v130 = vpack.c.bf16 %v79, %v79
    %v131 = vpack.c.bf16 %v80, %v80
    %v132 = vpack.c.bf16 %v81, %v81
    %v133 = vpack.c.bf16 %v82, %v82
    %v134 = vpack.c.bf16 %v84, %v84
    %v135 = vld [vmem:[#allocation2] sm:$0xf]
    %v136 = vld [vmem:[#allocation2 + $0x4] sm:$0xf]
    %v137 = vld [vmem:[#allocation2 + $0x8] sm:$0xf]
    %v138 = vld [vmem:[#allocation2 + $0xc] sm:$0xf]
    %v139 = vld [vmem:[#allocation2 + $0x10] sm:$0xf]
    %v140 = vld [vmem:[#allocation2 + $0x14] sm:$0xf]
    %v141 = vld [vmem:[#allocation2 + $0x18] sm:$0xf]
    %v142 = vld [vmem:[#allocation2 + $0x1c] sm:$0xf]
    %v143 = vld [vmem:[#allocation2 + $0x20] sm:$0xf]
    %v144 = vld [vmem:[#allocation2 + $0x24] sm:$0xf]
    %v145 = vld [vmem:[#allocation2 + $0x28] sm:$0xf]
    %v146 = vld [vmem:[#allocation2 + $0x2c] sm:$0xf]
    %v147 = vld [vmem:[#allocation2 + $0x30] sm:$0xf]
    %v148 = vld [vmem:[#allocation2 + $0x34] sm:$0xf]
    %v149 = vld [vmem:[#allocation2 + $0x38] sm:$0xf]
    %v150 = vld [vmem:[#allocation2 + $0x3c] sm:$0xf]
    %v151 = vld [vmem:[#allocation2 + $0x40] sm:$0xf]
    %v152 = vld [vmem:[#allocation2 + $0x44] sm:$0xf]
    %v153 = vld [vmem:[#allocation2 + $0x48] sm:$0xf]
    %v154 = vld [vmem:[#allocation2 + $0x4c] sm:$0xf]
    %v155 = vld [vmem:[#allocation2 + $0x50] sm:$0xf]
    %v156 = vld [vmem:[#allocation2 + $0x54] sm:$0xf]
    %v157 = vld [vmem:[#allocation2 + $0x58] sm:$0xf]
    %v158 = vld [vmem:[#allocation2 + $0x5c] sm:$0xf]
    %v159 = vld [vmem:[#allocation2 + $0x60] sm:$0xf]
    %v160 = vld [vmem:[#allocation2 + $0x64] sm:$0xf]
    %v161 = vld [vmem:[#allocation2 + $0x68] sm:$0xf]
    %v162 = vld [vmem:[#allocation2 + $0x6c] sm:$0xf]
    %v163 = vld [vmem:[#allocation2 + $0x70] sm:$0xf]
    %v164 = vld [vmem:[#allocation2 + $0x74] sm:$0xf]
    %v165 = vld [vmem:[#allocation2 + $0x78] sm:$0xf]
    %v166 = vld [vmem:[#allocation2 + $0x7c] sm:$0xf]
    %v167 = vld [vmem:[#allocation2 + $0x80] sm:$0xf]
    %v168 = vld [vmem:[#allocation2 + $0x84] sm:$0xf]
    %v169 = vld [vmem:[#allocation2 + $0x88] sm:$0xf]
    %v170 = vld [vmem:[#allocation2 + $0x8c] sm:$0xf]
    %v171 = vld [vmem:[#allocation2 + $0x90] sm:$0xf]
    %v172 = vld [vmem:[#allocation2 + $0x94] sm:$0xf]
    %v173 = vld [vmem:[#allocation2 + $0x98] sm:$0xf]
    %v174 = vld [vmem:[#allocation2 + $0x9c] sm:$0xf]
    %v175 = vld [vmem:[#allocation2 + $0xa0] sm:$0xf]
    %v176 = vld [vmem:[#allocation2 + $0xa4] sm:$0xf]
    %v177 = vld [vmem:[#allocation2 + $0xa8] sm:$0xf]
    %v178 = vld [vmem:[#allocation2 + $0xac] sm:$0xf]
    %v179 = vld [vmem:[#allocation2 + $0xb0] sm:$0xf]
    %v180 = vld [vmem:[#allocation2 + $0xb4] sm:$0xf]
    %v181 = vld [vmem:[#allocation2 + $0xb8] sm:$0xf]
    %v182 = vld [vmem:[#allocation2 + $0xbc] sm:$0xf]
    %v183 = vld [vmem:[#allocation2 + $0xc0] sm:$0xf]
    %v184 = vld [vmem:[#allocation2 + $0xc4] sm:$0xf]
    %v185 = vld [vmem:[#allocation2 + $0xc8] sm:$0xf]
    %v186 = vld [vmem:[#allocation2 + $0xcc] sm:$0xf]
    %v187 = vld [vmem:[#allocation2 + $0xd0] sm:$0xf]
    %v188 = vld [vmem:[#allocation2 + $0xd4] sm:$0xf]
    %v189 = vld [vmem:[#allocation2 + $0xd8] sm:$0xf]
    %v190 = vld [vmem:[#allocation2 + $0xdc] sm:$0xf]
    %v191 = vld [vmem:[#allocation2 + $0xe0] sm:$0xf]
    %v192 = vld [vmem:[#allocation2 + $0xe4] sm:$0xf]
    %v193 = vld [vmem:[#allocation2 + $0xe8] sm:$0xf]
    %v194 = vld [vmem:[#allocation2 + $0xec] sm:$0xf]
    %v195 = vld [vmem:[#allocation2 + $0xf0] sm:$0xf]
    %v196 = vld [vmem:[#allocation2 + $0xf4] sm:$0xf]
    %v197 = vld [vmem:[#allocation2 + $0xf8] sm:$0xf]
    %v198 = vld [vmem:[#allocation2 + $0xfc] sm:$0xf]
    %v199 = vld [vmem:[#allocation2 + $0x100] sm:$0xf]
    %v200 = vld [vmem:[#allocation2 + $0x104] sm:$0xf]
    %v201 = vld [vmem:[#allocation2 + $0x108] sm:$0xf]
    %v202 = vld [vmem:[#allocation2 + $0x10c] sm:$0xf]
    %v203 = vld [vmem:[#allocation2 + $0x110] sm:$0xf]
    %v204 = vld [vmem:[#allocation2 + $0x114] sm:$0xf]
    %v205 = vld [vmem:[#allocation2 + $0x118] sm:$0xf]
    %v206 = vld [vmem:[#allocation2 + $0x11c] sm:$0xf]
    %v207 = vld [vmem:[#allocation2 + $0x120] sm:$0xf]
    %v208 = vld [vmem:[#allocation2 + $0x124] sm:$0xf]
    %v209 = vld [vmem:[#allocation2 + $0x128] sm:$0xf]
    %v210 = vld [vmem:[#allocation2 + $0x12c] sm:$0xf]
    %v211 = vld [vmem:[#allocation2 + $0x130] sm:$0xf]
    %v212 = vld [vmem:[#allocation2 + $0x134] sm:$0xf]
    %v213 = vld [vmem:[#allocation2 + $0x138] sm:$0xf]
    %v214 = vld [vmem:[#allocation2 + $0x13c] sm:$0xf]
    %v215 = vld [vmem:[#allocation2 + $0x140] sm:$0xf]
    %v216 = vld [vmem:[#allocation2 + $0x144] sm:$0xf]
    %v217 = vld [vmem:[#allocation2 + $0x148] sm:$0xf]
    %v218 = vld [vmem:[#allocation2 + $0x14c] sm:$0xf]
    %v219 = vld [vmem:[#allocation2 + $0x150] sm:$0xf]
    %v220 = vld [vmem:[#allocation2 + $0x154] sm:$0xf]
    %v221 = vld [vmem:[#allocation2 + $0x158] sm:$0xf]
    %v222 = vld [vmem:[#allocation2 + $0x15c] sm:$0xf]
    %v223 = vld [vmem:[#allocation2 + $0x160] sm:$0xf]
    %v224 = vld [vmem:[#allocation2 + $0x164] sm:$0xf]
    %v225 = vld [vmem:[#allocation2 + $0x168] sm:$0xf]
    %v226 = vld [vmem:[#allocation2 + $0x16c] sm:$0xf]
    %v227 = vld [vmem:[#allocation2 + $0x170] sm:$0xf]
    %v228 = vld [vmem:[#allocation2 + $0x174] sm:$0xf]
    %v229 = vld [vmem:[#allocation2 + $0x178] sm:$0xf]
    %v230 = vld [vmem:[#allocation2 + $0x17c] sm:$0xf]
    %v231 = vld [vmem:[#allocation2 + $0x180] sm:$0xf]
    %v232 = vld [vmem:[#allocation2 + $0x184] sm:$0xf]
    %v233 = vld [vmem:[#allocation2 + $0x188] sm:$0xf]
    %v234 = vld [vmem:[#allocation2 + $0x18c] sm:$0xf]
    %v235 = vld [vmem:[#allocation2 + $0x190] sm:$0xf]
    %v236 = vld [vmem:[#allocation2 + $0x194] sm:$0xf]
    %v237 = vld [vmem:[#allocation2 + $0x198] sm:$0xf]
    %v238 = vld [vmem:[#allocation2 + $0x19c] sm:$0xf]
    %v239 = vld [vmem:[#allocation2 + $0x1a0] sm:$0xf]
    %v240 = vld [vmem:[#allocation2 + $0x1a4] sm:$0xf]
    %v241 = vld [vmem:[#allocation2 + $0x1a8] sm:$0xf]
    %v242 = vld [vmem:[#allocation2 + $0x1ac] sm:$0xf]
    %v243 = vld [vmem:[#allocation2 + $0x1b0] sm:$0xf]
    %v244 = vld [vmem:[#allocation2 + $0x1b4] sm:$0xf]
    %v245 = vld [vmem:[#allocation2 + $0x1b8] sm:$0xf]
    %v246 = vld [vmem:[#allocation2 + $0x1bc] sm:$0xf]
    %v247 = vld [vmem:[#allocation2 + $0x1c0] sm:$0xf]
    %v248 = vld [vmem:[#allocation2 + $0x1c4] sm:$0xf]
    %v249 = vld [vmem:[#allocation2 + $0x1c8] sm:$0xf]
    %v250 = vld [vmem:[#allocation2 + $0x1cc] sm:$0xf]
    %v251 = vld [vmem:[#allocation2 + $0x1d0] sm:$0xf]
    %v252 = vld [vmem:[#allocation2 + $0x1d4] sm:$0xf]
    %v253 = vld [vmem:[#allocation2 + $0x1d8] sm:$0xf]
    %v254 = vld [vmem:[#allocation2 + $0x1dc] sm:$0xf]
    %v255 = vld [vmem:[#allocation2 + $0x1e0] sm:$0xf]
    %v256 = vld [vmem:[#allocation2 + $0x1e4] sm:$0xf]
    %v257 = vld [vmem:[#allocation2 + $0x1e8] sm:$0xf]
    %v258 = vld [vmem:[#allocation2 + $0x1ec] sm:$0xf]
    %v259 = vld [vmem:[#allocation2 + $0x1f0] sm:$0xf]
    %v260 = vld [vmem:[#allocation2 + $0x1f4] sm:$0xf]
    %v261 = vld [vmem:[#allocation2 + $0x1f8] sm:$0xf]
    %v262 = vld [vmem:[#allocation2 + $0x1fc] sm:$0xf]
    %v263 = vld [vmem:[#allocation2 + $0x200] sm:$0xf]
    %v264 = vld [vmem:[#allocation2 + $0x204] sm:$0xf]
    %v265 = vld [vmem:[#allocation2 + $0x208] sm:$0xf]
    %v266 = vld [vmem:[#allocation2 + $0x20c] sm:$0xf]
    %v267 = vld [vmem:[#allocation2 + $0x210] sm:$0xf]
    %v268 = vld [vmem:[#allocation2 + $0x214] sm:$0xf]
    %v269 = vld [vmem:[#allocation2 + $0x218] sm:$0xf]
    %v270 = vld [vmem:[#allocation2 + $0x21c] sm:$0xf]
    %v271 = vld [vmem:[#allocation2 + $0x220] sm:$0xf]
    %v272 = vld [vmem:[#allocation2 + $0x224] sm:$0xf]
    %v273 = vld [vmem:[#allocation2 + $0x228] sm:$0xf]
    %v274 = vld [vmem:[#allocation2 + $0x22c] sm:$0xf]
    %v275 = vld [vmem:[#allocation2 + $0x230] sm:$0xf]
    %v276 = vld [vmem:[#allocation2 + $0x234] sm:$0xf]
    %v277 = vld [vmem:[#allocation2 + $0x238] sm:$0xf]
    %v278 = vld [vmem:[#allocation2 + $0x23c] sm:$0xf]
    %v279 = vld [vmem:[#allocation2 + $0x240] sm:$0xf]
    %v280 = vld [vmem:[#allocation2 + $0x244] sm:$0xf]
    %v281 = vld [vmem:[#allocation2 + $0x248] sm:$0xf]
    %v282 = vld [vmem:[#allocation2 + $0x24c] sm:$0xf]
    %v283 = vld [vmem:[#allocation2 + $0x250] sm:$0xf]
    %v284 = vld [vmem:[#allocation2 + $0x254] sm:$0xf]
    %v285 = vld [vmem:[#allocation2 + $0x258] sm:$0xf]
    %v286 = vld [vmem:[#allocation2 + $0x25c] sm:$0xf]
    %v287 = vld [vmem:[#allocation2 + $0x260] sm:$0xf]
    %v288 = vld [vmem:[#allocation2 + $0x264] sm:$0xf]
    %v289 = vld [vmem:[#allocation2 + $0x268] sm:$0xf]
    %v290 = vld [vmem:[#allocation2 + $0x26c] sm:$0xf]
    %v291 = vld [vmem:[#allocation2 + $0x270] sm:$0xf]
    %v292 = vld [vmem:[#allocation2 + $0x274] sm:$0xf]
    %v293 = vld [vmem:[#allocation2 + $0x278] sm:$0xf]
    %v294 = vld [vmem:[#allocation2 + $0x27c] sm:$0xf]
    %v295 = vld [vmem:[#allocation2 + $0x280] sm:$0xf]
    %v296 = vld [vmem:[#allocation2 + $0x284] sm:$0xf]
    %v297 = vld [vmem:[#allocation2 + $0x288] sm:$0xf]
    %v298 = vld [vmem:[#allocation2 + $0x28c] sm:$0xf]
    %v299 = vld [vmem:[#allocation2 + $0x290] sm:$0xf]
    %v300 = vld [vmem:[#allocation2 + $0x294] sm:$0xf]
    %v301 = vld [vmem:[#allocation2 + $0x298] sm:$0xf]
    %v302 = vld [vmem:[#allocation2 + $0x29c] sm:$0xf]
    %v303 = vld [vmem:[#allocation2 + $0x2a0] sm:$0xf]
    %v304 = vld [vmem:[#allocation2 + $0x2a4] sm:$0xf]
    %v305 = vld [vmem:[#allocation2 + $0x2a8] sm:$0xf]
    %v306 = vld [vmem:[#allocation2 + $0x2ac] sm:$0xf]
    %v307 = vld [vmem:[#allocation2 + $0x2b0] sm:$0xf]
    %v308 = vld [vmem:[#allocation2 + $0x2b4] sm:$0xf]
    %v309 = vld [vmem:[#allocation2 + $0x2b8] sm:$0xf]
    %v310 = vld [vmem:[#allocation2 + $0x2bc] sm:$0xf]
    %v311 = vld [vmem:[#allocation2 + $0x2c0] sm:$0xf]
    %v312 = vld [vmem:[#allocation2 + $0x2c4] sm:$0xf]
    %v313 = vld [vmem:[#allocation2 + $0x2c8] sm:$0xf]
    %v314 = vld [vmem:[#allocation2 + $0x2cc] sm:$0xf]
    %v315 = vld [vmem:[#allocation2 + $0x2d0] sm:$0xf]
    %v316 = vld [vmem:[#allocation2 + $0x2d4] sm:$0xf]
    %v317 = vld [vmem:[#allocation2 + $0x2d8] sm:$0xf]
    %v318 = vld [vmem:[#allocation2 + $0x2dc] sm:$0xf]
    %v319 = vld [vmem:[#allocation2 + $0x2e0] sm:$0xf]
    %v320 = vld [vmem:[#allocation2 + $0x2e4] sm:$0xf]
    %v321 = vld [vmem:[#allocation2 + $0x2e8] sm:$0xf]
    %v322 = vld [vmem:[#allocation2 + $0x2ec] sm:$0xf]
    %v323 = vld [vmem:[#allocation2 + $0x2f0] sm:$0xf]
    %v324 = vld [vmem:[#allocation2 + $0x2f4] sm:$0xf]
    %v325 = vld [vmem:[#allocation2 + $0x2f8] sm:$0xf]
    %v326 = vld [vmem:[#allocation2 + $0x2fc] sm:$0xf]
    %v327 = vld [vmem:[#allocation2 + $0x300] sm:$0xf]
    %v328 = vld [vmem:[#allocation2 + $0x304] sm:$0xf]
    %v329 = vld [vmem:[#allocation2 + $0x308] sm:$0xf]
    %v330 = vld [vmem:[#allocation2 + $0x30c] sm:$0xf]
    %v331 = vld [vmem:[#allocation2 + $0x310] sm:$0xf]
    %v332 = vld [vmem:[#allocation2 + $0x314] sm:$0xf]
    %v333 = vld [vmem:[#allocation2 + $0x318] sm:$0xf]
    %v334 = vld [vmem:[#allocation2 + $0x31c] sm:$0xf]
    %v335 = vld [vmem:[#allocation2 + $0x320] sm:$0xf]
    %v336 = vld [vmem:[#allocation2 + $0x324] sm:$0xf]
    %v337 = vld [vmem:[#allocation2 + $0x328] sm:$0xf]
    %v338 = vld [vmem:[#allocation2 + $0x32c] sm:$0xf]
    %v339 = vld [vmem:[#allocation2 + $0x330] sm:$0xf]
    %v340 = vld [vmem:[#allocation2 + $0x334] sm:$0xf]
    %v341 = vld [vmem:[#allocation2 + $0x338] sm:$0xf]
    %v342 = vld [vmem:[#allocation2 + $0x33c] sm:$0xf]
    %v343 = vld [vmem:[#allocation2 + $0x340] sm:$0xf]
    %v344 = vld [vmem:[#allocation2 + $0x344] sm:$0xf]
    %v345 = vld [vmem:[#allocation2 + $0x348] sm:$0xf]
    %v346 = vld [vmem:[#allocation2 + $0x34c] sm:$0xf]
    %v347 = vld [vmem:[#allocation2 + $0x350] sm:$0xf]
    %v348 = vld [vmem:[#allocation2 + $0x354] sm:$0xf]
    %v349 = vld [vmem:[#allocation2 + $0x358] sm:$0xf]
    %v350 = vld [vmem:[#allocation2 + $0x35c] sm:$0xf]
    %v351 = vld [vmem:[#allocation2 + $0x360] sm:$0xf]
    %v352 = vld [vmem:[#allocation2 + $0x364] sm:$0xf]
    %v353 = vld [vmem:[#allocation2 + $0x368] sm:$0xf]
    %v354 = vld [vmem:[#allocation2 + $0x36c] sm:$0xf]
    %v355 = vld [vmem:[#allocation2 + $0x370] sm:$0xf]
    %v356 = vld [vmem:[#allocation2 + $0x374] sm:$0xf]
    %v357 = vld [vmem:[#allocation2 + $0x378] sm:$0xf]
    %v358 = vld [vmem:[#allocation2 + $0x37c] sm:$0xf]
    %v359 = vld [vmem:[#allocation2 + $0x380] sm:$0xf]
    %v360 = vld [vmem:[#allocation2 + $0x384] sm:$0xf]
    %v361 = vld [vmem:[#allocation2 + $0x388] sm:$0xf]
    %v362 = vld [vmem:[#allocation2 + $0x38c] sm:$0xf]
    %v363 = vld [vmem:[#allocation2 + $0x390] sm:$0xf]
    %v364 = vld [vmem:[#allocation2 + $0x394] sm:$0xf]
    %v365 = vld [vmem:[#allocation2 + $0x398] sm:$0xf]
    %v366 = vld [vmem:[#allocation2 + $0x39c] sm:$0xf]
    %v367 = vld [vmem:[#allocation2 + $0x3a0] sm:$0xf]
    %v368 = vld [vmem:[#allocation2 + $0x3a4] sm:$0xf]
    %v369 = vld [vmem:[#allocation2 + $0x3a8] sm:$0xf]
    %v370 = vld [vmem:[#allocation2 + $0x3ac] sm:$0xf]
    %v371 = vld [vmem:[#allocation2 + $0x3b0] sm:$0xf]
    %v372 = vld [vmem:[#allocation2 + $0x3b4] sm:$0xf]
    %v373 = vld [vmem:[#allocation2 + $0x3b8] sm:$0xf]
    %v374 = vld [vmem:[#allocation2 + $0x3bc] sm:$0xf]
    %v375 = vld [vmem:[#allocation2 + $0x3c0] sm:$0xf]
    %v376 = vld [vmem:[#allocation2 + $0x3c4] sm:$0xf]
    %v377 = vld [vmem:[#allocation2 + $0x3c8] sm:$0xf]
    %v378 = vld [vmem:[#allocation2 + $0x3cc] sm:$0xf]
    %v379 = vld [vmem:[#allocation2 + $0x3d0] sm:$0xf]
    %v380 = vld [vmem:[#allocation2 + $0x3d4] sm:$0xf]
    %v381 = vld [vmem:[#allocation2 + $0x3d8] sm:$0xf]
    %v382 = vld [vmem:[#allocation2 + $0x3dc] sm:$0xf]
    %v383 = vld [vmem:[#allocation2 + $0x3e0] sm:$0xf]
    %v384 = vld [vmem:[#allocation2 + $0x3e4] sm:$0xf]
    %v385 = vld [vmem:[#allocation2 + $0x3e8] sm:$0xf]
    %v386 = vld [vmem:[#allocation2 + $0x3ec] sm:$0xf]
    %v387 = vld [vmem:[#allocation2 + $0x3f0] sm:$0xf]
    %v388 = vld [vmem:[#allocation2 + $0x3f4] sm:$0xf]
    %v389 = vld [vmem:[#allocation2 + $0x3f8] sm:$0xf]
    %v390 = vld [vmem:[#allocation2 + $0x3fc] sm:$0xf]
    %v391 = vld [vmem:[#allocation2 + $0x400] sm:$0xf]
    %v392 = vld [vmem:[#allocation2 + $0x404] sm:$0xf]
    %v393 = vld [vmem:[#allocation2 + $0x408] sm:$0xf]
    %v394 = vld [vmem:[#allocation2 + $0x40c] sm:$0xf]
    %v395 = vld [vmem:[#allocation2 + $0x410] sm:$0xf]
    %v396 = vld [vmem:[#allocation2 + $0x414] sm:$0xf]
    %v397 = vld [vmem:[#allocation2 + $0x418] sm:$0xf]
    %v398 = vld [vmem:[#allocation2 + $0x41c] sm:$0xf]
    %v399 = vld [vmem:[#allocation2 + $0x420] sm:$0xf]
    %v400 = vld [vmem:[#allocation2 + $0x424] sm:$0xf]
    %v401 = vld [vmem:[#allocation2 + $0x428] sm:$0xf]
    %v402 = vld [vmem:[#allocation2 + $0x42c] sm:$0xf]
    %v403 = vld [vmem:[#allocation2 + $0x430] sm:$0xf]
    %v404 = vld [vmem:[#allocation2 + $0x434] sm:$0xf]
    %v405 = vld [vmem:[#allocation2 + $0x438] sm:$0xf]
    %v406 = vld [vmem:[#allocation2 + $0x43c] sm:$0xf]
    %v407 = vld [vmem:[#allocation2 + $0x440] sm:$0xf]
    %v408 = vld [vmem:[#allocation2 + $0x444] sm:$0xf]
    %v409 = vld [vmem:[#allocation2 + $0x448] sm:$0xf]
    %v410 = vld [vmem:[#allocation2 + $0x44c] sm:$0xf]
    %v411 = vld [vmem:[#allocation2 + $0x450] sm:$0xf]
    %v412 = vld [vmem:[#allocation2 + $0x454] sm:$0xf]
    %v413 = vld [vmem:[#allocation2 + $0x458] sm:$0xf]
    %v414 = vld [vmem:[#allocation2 + $0x45c] sm:$0xf]
    %v415 = vld [vmem:[#allocation2 + $0x460] sm:$0xf]
    %v416 = vld [vmem:[#allocation2 + $0x464] sm:$0xf]
    %v417 = vld [vmem:[#allocation2 + $0x468] sm:$0xf]
    %v418 = vld [vmem:[#allocation2 + $0x46c] sm:$0xf]
    %v419 = vld [vmem:[#allocation2 + $0x470] sm:$0xf]
    %v420 = vld [vmem:[#allocation2 + $0x474] sm:$0xf]
    %v421 = vld [vmem:[#allocation2 + $0x478] sm:$0xf]
    %v422 = vld [vmem:[#allocation2 + $0x47c] sm:$0xf]
    %v423 = vld [vmem:[#allocation2 + $0x480] sm:$0xf]
    %v424 = vld [vmem:[#allocation2 + $0x484] sm:$0xf]
    %v425 = vld [vmem:[#allocation2 + $0x488] sm:$0xf]
    %v426 = vld [vmem:[#allocation2 + $0x48c] sm:$0xf]
    %v427 = vld [vmem:[#allocation2 + $0x490] sm:$0xf]
    %v428 = vld [vmem:[#allocation2 + $0x494] sm:$0xf]
    %v429 = vld [vmem:[#allocation2 + $0x498] sm:$0xf]
    %v430 = vld [vmem:[#allocation2 + $0x49c] sm:$0xf]
    %v431 = vld [vmem:[#allocation2 + $0x4a0] sm:$0xf]
    %v432 = vld [vmem:[#allocation2 + $0x4a4] sm:$0xf]
    %v433 = vld [vmem:[#allocation2 + $0x4a8] sm:$0xf]
    %v434 = vld [vmem:[#allocation2 + $0x4ac] sm:$0xf]
    %v435 = vld [vmem:[#allocation2 + $0x4b0] sm:$0xf]
    %v436 = vld [vmem:[#allocation2 + $0x4b4] sm:$0xf]
    %v437 = vld [vmem:[#allocation2 + $0x4b8] sm:$0xf]
    %v438 = vld [vmem:[#allocation2 + $0x4bc] sm:$0xf]
    %v439 = vld [vmem:[#allocation2 + $0x4c0] sm:$0xf]
    %v440 = vld [vmem:[#allocation2 + $0x4c4] sm:$0xf]
    %v441 = vld [vmem:[#allocation2 + $0x4c8] sm:$0xf]
    %v442 = vld [vmem:[#allocation2 + $0x4cc] sm:$0xf]
    %v443 = vld [vmem:[#allocation2 + $0x4d0] sm:$0xf]
    %v444 = vld [vmem:[#allocation2 + $0x4d4] sm:$0xf]
    %v445 = vld [vmem:[#allocation2 + $0x4d8] sm:$0xf]
    %v446 = vld [vmem:[#allocation2 + $0x4dc] sm:$0xf]
    %v447 = vld [vmem:[#allocation2 + $0x4e0] sm:$0xf]
    %v448 = vld [vmem:[#allocation2 + $0x4e4] sm:$0xf]
    %v449 = vld [vmem:[#allocation2 + $0x4e8] sm:$0xf]
    %v450 = vld [vmem:[#allocation2 + $0x4ec] sm:$0xf]
    %v451 = vld [vmem:[#allocation2 + $0x4f0] sm:$0xf]
    %v452 = vld [vmem:[#allocation2 + $0x4f4] sm:$0xf]
    %v453 = vld [vmem:[#allocation2 + $0x4f8] sm:$0xf]
    %v454 = vld [vmem:[#allocation2 + $0x4fc] sm:$0xf]
    %v455 = vld [vmem:[#allocation2 + $0x500] sm:$0xf]
    %v456 = vld [vmem:[#allocation2 + $0x504] sm:$0xf]
    %v457 = vld [vmem:[#allocation2 + $0x508] sm:$0xf]
    %v458 = vld [vmem:[#allocation2 + $0x50c] sm:$0xf]
    %v459 = vld [vmem:[#allocation2 + $0x510] sm:$0xf]
    %v460 = vld [vmem:[#allocation2 + $0x514] sm:$0xf]
    %v461 = vld [vmem:[#allocation2 + $0x518] sm:$0xf]
    %v462 = vld [vmem:[#allocation2 + $0x51c] sm:$0xf]
    %v463 = vld [vmem:[#allocation2 + $0x520] sm:$0xf]
    %v464 = vld [vmem:[#allocation2 + $0x524] sm:$0xf]
    %v465 = vld [vmem:[#allocation2 + $0x528] sm:$0xf]
    %v466 = vld [vmem:[#allocation2 + $0x52c] sm:$0xf]
    %v467 = vld [vmem:[#allocation2 + $0x530] sm:$0xf]
    %v468 = vld [vmem:[#allocation2 + $0x534] sm:$0xf]
    %v469 = vld [vmem:[#allocation2 + $0x538] sm:$0xf]
    %v470 = vld [vmem:[#allocation2 + $0x53c] sm:$0xf]
    %v471 = vld [vmem:[#allocation2 + $0x540] sm:$0xf]
    %v472 = vld [vmem:[#allocation2 + $0x544] sm:$0xf]
    %v473 = vld [vmem:[#allocation2 + $0x548] sm:$0xf]
    %v474 = vld [vmem:[#allocation2 + $0x54c] sm:$0xf]
    %v475 = vld [vmem:[#allocation2 + $0x550] sm:$0xf]
    %v476 = vld [vmem:[#allocation2 + $0x554] sm:$0xf]
    %v477 = vld [vmem:[#allocation2 + $0x558] sm:$0xf]
    %v478 = vld [vmem:[#allocation2 + $0x55c] sm:$0xf]
    %v479 = vld [vmem:[#allocation2 + $0x560] sm:$0xf]
    %v480 = vld [vmem:[#allocation2 + $0x564] sm:$0xf]
    %v481 = vld [vmem:[#allocation2 + $0x568] sm:$0xf]
    %v482 = vld [vmem:[#allocation2 + $0x56c] sm:$0xf]
    %v483 = vld [vmem:[#allocation2 + $0x570] sm:$0xf]
    %v484 = vld [vmem:[#allocation2 + $0x574] sm:$0xf]
    %v485 = vld [vmem:[#allocation2 + $0x578] sm:$0xf]
    %v486 = vld [vmem:[#allocation2 + $0x57c] sm:$0xf]
    %v487 = vld [vmem:[#allocation2 + $0x580] sm:$0xf]
    %v488 = vld [vmem:[#allocation2 + $0x584] sm:$0xf]
    %v489 = vld [vmem:[#allocation2 + $0x588] sm:$0xf]
    %v490 = vld [vmem:[#allocation2 + $0x58c] sm:$0xf]
    %v491 = vld [vmem:[#allocation2 + $0x590] sm:$0xf]
    %v492 = vld [vmem:[#allocation2 + $0x594] sm:$0xf]
    %v493 = vld [vmem:[#allocation2 + $0x598] sm:$0xf]
    %v494 = vld [vmem:[#allocation2 + $0x59c] sm:$0xf]
    %v495 = vld [vmem:[#allocation2 + $0x5a0] sm:$0xf]
    %v496 = vld [vmem:[#allocation2 + $0x5a4] sm:$0xf]
    %v497 = vld [vmem:[#allocation2 + $0x5a8] sm:$0xf]
    %v498 = vld [vmem:[#allocation2 + $0x5ac] sm:$0xf]
    %v499 = vld [vmem:[#allocation2 + $0x5b0] sm:$0xf]
    %v500 = vld [vmem:[#allocation2 + $0x5b4] sm:$0xf]
    %v501 = vld [vmem:[#allocation2 + $0x5b8] sm:$0xf]
    %v502 = vld [vmem:[#allocation2 + $0x5bc] sm:$0xf]
    %v503 = vld [vmem:[#allocation2 + $0x5c0] sm:$0xf]
    %v504 = vld [vmem:[#allocation2 + $0x5c4] sm:$0xf]
    %v505 = vld [vmem:[#allocation2 + $0x5c8] sm:$0xf]
    %v506 = vld [vmem:[#allocation2 + $0x5cc] sm:$0xf]
    %v507 = vld [vmem:[#allocation2 + $0x5d0] sm:$0xf]
    %v508 = vld [vmem:[#allocation2 + $0x5d4] sm:$0xf]
    %v509 = vld [vmem:[#allocation2 + $0x5d8] sm:$0xf]
    %v510 = vld [vmem:[#allocation2 + $0x5dc] sm:$0xf]
    %v511 = vld [vmem:[#allocation2 + $0x5e0] sm:$0xf]
    %v512 = vld [vmem:[#allocation2 + $0x5e4] sm:$0xf]
    %v513 = vld [vmem:[#allocation2 + $0x5e8] sm:$0xf]
    %v514 = vld [vmem:[#allocation2 + $0x5ec] sm:$0xf]
    %v515 = vld [vmem:[#allocation2 + $0x5f0] sm:$0xf]
    %v516 = vld [vmem:[#allocation2 + $0x5f4] sm:$0xf]
    %v517 = vld [vmem:[#allocation2 + $0x5f8] sm:$0xf]
    %v518 = vld [vmem:[#allocation2 + $0x5fc] sm:$0xf]
    %v519 = vld [vmem:[#allocation2 + $0x600] sm:$0xf]
    %v520 = vld [vmem:[#allocation2 + $0x604] sm:$0xf]
    %v521 = vld [vmem:[#allocation2 + $0x608] sm:$0xf]
    %v522 = vld [vmem:[#allocation2 + $0x60c] sm:$0xf]
    %v523 = vld [vmem:[#allocation2 + $0x610] sm:$0xf]
    %v524 = vld [vmem:[#allocation2 + $0x614] sm:$0xf]
    %v525 = vld [vmem:[#allocation2 + $0x618] sm:$0xf]
    %v526 = vld [vmem:[#allocation2 + $0x61c] sm:$0xf]
    %v527 = vld [vmem:[%s2] sm:$0x1]
    %v529 = vperm.slane %v527, 0
    %v923 = vunpack.c.l.b16 %v135
    %v924 = vunpack.c.l.b16 %v136
    %v925 = vunpack.c.l.b16 %v137
    %v926 = vunpack.c.l.b16 %v138
    %v927 = vunpack.c.l.b16 %v139
    %v928 = vunpack.c.l.b16 %v140
    %v929 = vunpack.c.l.b16 %v141
    %v930 = vunpack.c.l.b16 %v142
    %v931 = vunpack.c.l.b16 %v143
    %v932 = vunpack.c.l.b16 %v144
    %v933 = vunpack.c.l.b16 %v145
    %v934 = vunpack.c.l.b16 %v146
    %v935 = vunpack.c.l.b16 %v147
    %v936 = vunpack.c.l.b16 %v148
    %v937 = vunpack.c.l.b16 %v149
    %v938 = vunpack.c.l.b16 %v150
    %v939 = vunpack.c.l.b16 %v151
    %v940 = vunpack.c.l.b16 %v152
    %v941 = vunpack.c.l.b16 %v153
    %v942 = vunpack.c.l.b16 %v154
    %v943 = vunpack.c.l.b16 %v155
    %v944 = vunpack.c.l.b16 %v156
    %v945 = vunpack.c.l.b16 %v157
    %v946 = vunpack.c.l.b16 %v158
    %v947 = vunpack.c.l.b16 %v159
    %v948 = vunpack.c.l.b16 %v160
    %v949 = vunpack.c.l.b16 %v161
    %v950 = vunpack.c.l.b16 %v162
    %v951 = vunpack.c.l.b16 %v163
    %v952 = vunpack.c.l.b16 %v164
    %v953 = vunpack.c.l.b16 %v165
    %v954 = vunpack.c.l.b16 %v166
    %v955 = vunpack.c.l.b16 %v167
    %v956 = vunpack.c.l.b16 %v168
    %v957 = vunpack.c.l.b16 %v169
    %v958 = vunpack.c.l.b16 %v170
    %v959 = vunpack.c.l.b16 %v171
    %v960 = vunpack.c.l.b16 %v172
    %v961 = vunpack.c.l.b16 %v173
    %v962 = vunpack.c.l.b16 %v174
    %v963 = vunpack.c.l.b16 %v175
    %v964 = vunpack.c.l.b16 %v176
    %v965 = vunpack.c.l.b16 %v177
    %v966 = vunpack.c.l.b16 %v178
    %v967 = vunpack.c.l.b16 %v179
    %v968 = vunpack.c.l.b16 %v180
    %v969 = vunpack.c.l.b16 %v181
    %v970 = vunpack.c.l.b16 %v182
    %v971 = vunpack.c.l.b16 %v183
    %v972 = vunpack.c.l.b16 %v184
    %v973 = vunpack.c.l.b16 %v185
    %v974 = vunpack.c.l.b16 %v186
    %v975 = vunpack.c.l.b16 %v187
    %v976 = vunpack.c.l.b16 %v188
    %v977 = vunpack.c.l.b16 %v189
    %v978 = vunpack.c.l.b16 %v190
    %v979 = vunpack.c.l.b16 %v191
    %v980 = vunpack.c.l.b16 %v192
    %v981 = vunpack.c.l.b16 %v193
    %v982 = vunpack.c.l.b16 %v194
    %v983 = vunpack.c.l.b16 %v195
    %v984 = vunpack.c.l.b16 %v196
    %v985 = vunpack.c.l.b16 %v197
    %v986 = vunpack.c.l.b16 %v198
    %v987 = vunpack.c.l.b16 %v199
    %v988 = vunpack.c.l.b16 %v200
    %v989 = vunpack.c.l.b16 %v201
    %v990 = vunpack.c.l.b16 %v202
    %v991 = vunpack.c.l.b16 %v203
    %v992 = vunpack.c.l.b16 %v204
    %v993 = vunpack.c.l.b16 %v205
    %v994 = vunpack.c.l.b16 %v206
    %v995 = vunpack.c.l.b16 %v207
    %v996 = vunpack.c.l.b16 %v208
    %v997 = vunpack.c.l.b16 %v209
    %v998 = vunpack.c.l.b16 %v210
    %v999 = vunpack.c.l.b16 %v211
    %v1000 = vunpack.c.l.b16 %v212
    %v1001 = vunpack.c.l.b16 %v213
    %v1002 = vunpack.c.l.b16 %v214
    %v1003 = vunpack.c.l.b16 %v215
    %v1004 = vunpack.c.l.b16 %v216
    %v1005 = vunpack.c.l.b16 %v217
    %v1006 = vunpack.c.l.b16 %v218
    %v1007 = vunpack.c.l.b16 %v219
    %v1008 = vunpack.c.l.b16 %v220
    %v1009 = vunpack.c.l.b16 %v221
    %v1010 = vunpack.c.l.b16 %v222
    %v1011 = vunpack.c.l.b16 %v223
    %v1012 = vunpack.c.l.b16 %v224
    %v1013 = vunpack.c.l.b16 %v225
    %v1014 = vunpack.c.l.b16 %v226
    %v1015 = vunpack.c.l.b16 %v227
    %v1016 = vunpack.c.l.b16 %v228
    %v1017 = vunpack.c.l.b16 %v229
    %v1018 = vunpack.c.l.b16 %v230
    %v1019 = vunpack.c.l.b16 %v231
    %v1020 = vunpack.c.l.b16 %v232
    %v1021 = vunpack.c.l.b16 %v233
    %v1022 = vunpack.c.l.b16 %v234
    %v1023 = vunpack.c.l.b16 %v235
    %v1024 = vunpack.c.l.b16 %v236
    %v1025 = vunpack.c.l.b16 %v237
    %v1026 = vunpack.c.l.b16 %v238
    %v1027 = vunpack.c.l.b16 %v239
    %v1028 = vunpack.c.l.b16 %v240
    %v1029 = vunpack.c.l.b16 %v241
    %v1030 = vunpack.c.l.b16 %v242
    %v1031 = vunpack.c.l.b16 %v243
    %v1032 = vunpack.c.l.b16 %v244
    %v1033 = vunpack.c.l.b16 %v245
    %v1034 = vunpack.c.l.b16 %v246
    %v1035 = vunpack.c.l.b16 %v247
    %v1036 = vunpack.c.l.b16 %v248
    %v1037 = vunpack.c.l.b16 %v249
    %v1038 = vunpack.c.l.b16 %v250
    %v1039 = vunpack.c.l.b16 %v251
    %v1040 = vunpack.c.l.b16 %v252
    %v1041 = vunpack.c.l.b16 %v253
    %v1042 = vunpack.c.l.b16 %v254
    %v1043 = vunpack.c.l.b16 %v255
    %v1044 = vunpack.c.l.b16 %v256
    %v1045 = vunpack.c.l.b16 %v257
    %v1046 = vunpack.c.l.b16 %v258
    %v1047 = vunpack.c.l.b16 %v259
    %v1048 = vunpack.c.l.b16 %v260
    %v1049 = vunpack.c.l.b16 %v261
    %v1050 = vunpack.c.l.b16 %v262
    %v1051 = vunpack.c.l.b16 %v263
    %v1052 = vunpack.c.l.b16 %v264
    %v1053 = vunpack.c.l.b16 %v265
    %v1054 = vunpack.c.l.b16 %v266
    %v1055 = vunpack.c.l.b16 %v267
    %v1056 = vunpack.c.l.b16 %v268
    %v1057 = vunpack.c.l.b16 %v269
    %v1058 = vunpack.c.l.b16 %v270
    %v1059 = vunpack.c.l.b16 %v271
    %v1060 = vunpack.c.l.b16 %v272
    %v1061 = vunpack.c.l.b16 %v273
    %v1062 = vunpack.c.l.b16 %v274
    %v1063 = vunpack.c.l.b16 %v275
    %v1064 = vunpack.c.l.b16 %v276
    %v1065 = vunpack.c.l.b16 %v277
    %v1066 = vunpack.c.l.b16 %v278
    %v1067 = vunpack.c.l.b16 %v279
    %v1068 = vunpack.c.l.b16 %v280
    %v1069 = vunpack.c.l.b16 %v281
    %v1070 = vunpack.c.l.b16 %v282
    %v1071 = vunpack.c.l.b16 %v283
    %v1072 = vunpack.c.l.b16 %v284
    %v1073 = vunpack.c.l.b16 %v285
    %v1074 = vunpack.c.l.b16 %v286
    %v1075 = vunpack.c.l.b16 %v287
    %v1076 = vunpack.c.l.b16 %v288
    %v1077 = vunpack.c.l.b16 %v289
    %v1078 = vunpack.c.l.b16 %v290
    %v1079 = vunpack.c.l.b16 %v291
    %v1080 = vunpack.c.l.b16 %v292
    %v1081 = vunpack.c.l.b16 %v293
    %v1082 = vunpack.c.l.b16 %v294
    %v1083 = vunpack.c.l.b16 %v295
    %v1084 = vunpack.c.l.b16 %v296
    %v1085 = vunpack.c.l.b16 %v297
    %v1086 = vunpack.c.l.b16 %v298
    %v1087 = vunpack.c.l.b16 %v299
    %v1088 = vunpack.c.l.b16 %v300
    %v1089 = vunpack.c.l.b16 %v301
    %v1090 = vunpack.c.l.b16 %v302
    %v1091 = vunpack.c.l.b16 %v303
    %v1092 = vunpack.c.l.b16 %v304
    %v1093 = vunpack.c.l.b16 %v305
    %v1094 = vunpack.c.l.b16 %v306
    %v1095 = vunpack.c.l.b16 %v307
    %v1096 = vunpack.c.l.b16 %v308
    %v1097 = vunpack.c.l.b16 %v309
    %v1098 = vunpack.c.l.b16 %v310
    %v1099 = vunpack.c.l.b16 %v311
    %v1100 = vunpack.c.l.b16 %v312
    %v1101 = vunpack.c.l.b16 %v313
    %v1102 = vunpack.c.l.b16 %v314
    %v1103 = vunpack.c.l.b16 %v315
    %v1104 = vunpack.c.l.b16 %v316
    %v1105 = vunpack.c.l.b16 %v317
    %v1106 = vunpack.c.l.b16 %v318
    %v1107 = vunpack.c.l.b16 %v319
    %v1108 = vunpack.c.l.b16 %v320
    %v1109 = vunpack.c.l.b16 %v321
    %v1110 = vunpack.c.l.b16 %v322
    %v1111 = vunpack.c.l.b16 %v323
    %v1112 = vunpack.c.l.b16 %v324
    %v1113 = vunpack.c.l.b16 %v325
    %v1114 = vunpack.c.l.b16 %v326
    %v1115 = vunpack.c.l.b16 %v327
    %v1116 = vunpack.c.l.b16 %v328
    %v1117 = vunpack.c.l.b16 %v329
    %v1118 = vunpack.c.l.b16 %v330
    %v1119 = vunpack.c.l.b16 %v331
    %v1120 = vunpack.c.l.b16 %v332
    %v1121 = vunpack.c.l.b16 %v333
    %v1122 = vunpack.c.l.b16 %v334
    %v1123 = vunpack.c.l.b16 %v335
    %v1124 = vunpack.c.l.b16 %v336
    %v1125 = vunpack.c.l.b16 %v337
    %v1126 = vunpack.c.l.b16 %v338
    %v1127 = vunpack.c.l.b16 %v339
    %v1128 = vunpack.c.l.b16 %v340
    %v1129 = vunpack.c.l.b16 %v341
    %v1130 = vunpack.c.l.b16 %v342
    %v1131 = vunpack.c.l.b16 %v343
    %v1132 = vunpack.c.l.b16 %v344
    %v1133 = vunpack.c.l.b16 %v345
    %v1134 = vunpack.c.l.b16 %v346
    %v1135 = vunpack.c.l.b16 %v347
    %v1136 = vunpack.c.l.b16 %v348
    %v1137 = vunpack.c.l.b16 %v349
    %v1138 = vunpack.c.l.b16 %v350
    %v1139 = vunpack.c.l.b16 %v351
    %v1140 = vunpack.c.l.b16 %v352
    %v1141 = vunpack.c.l.b16 %v353
    %v1142 = vunpack.c.l.b16 %v354
    %v1143 = vunpack.c.l.b16 %v355
    %v1144 = vunpack.c.l.b16 %v356
    %v1145 = vunpack.c.l.b16 %v357
    %v1146 = vunpack.c.l.b16 %v358
    %v1147 = vunpack.c.l.b16 %v359
    %v1148 = vunpack.c.l.b16 %v360
    %v1149 = vunpack.c.l.b16 %v361
    %v1150 = vunpack.c.l.b16 %v362
    %v1151 = vunpack.c.l.b16 %v363
    %v1152 = vunpack.c.l.b16 %v364
    %v1153 = vunpack.c.l.b16 %v365
    %v1154 = vunpack.c.l.b16 %v366
    %v1155 = vunpack.c.l.b16 %v367
    %v1156 = vunpack.c.l.b16 %v368
    %v1157 = vunpack.c.l.b16 %v369
    %v1158 = vunpack.c.l.b16 %v370
    %v1159 = vunpack.c.l.b16 %v371
    %v1160 = vunpack.c.l.b16 %v372
    %v1161 = vunpack.c.l.b16 %v373
    %v1162 = vunpack.c.l.b16 %v374
    %v1163 = vunpack.c.l.b16 %v375
    %v1164 = vunpack.c.l.b16 %v376
    %v1165 = vunpack.c.l.b16 %v377
    %v1166 = vunpack.c.l.b16 %v378
    %v1167 = vunpack.c.l.b16 %v379
    %v1168 = vunpack.c.l.b16 %v380
    %v1169 = vunpack.c.l.b16 %v381
    %v1170 = vunpack.c.l.b16 %v382
    %v1171 = vunpack.c.l.b16 %v383
    %v1172 = vunpack.c.l.b16 %v384
    %v1173 = vunpack.c.l.b16 %v385
    %v1174 = vunpack.c.l.b16 %v386
    %v1175 = vunpack.c.l.b16 %v387
    %v1176 = vunpack.c.l.b16 %v388
    %v1177 = vunpack.c.l.b16 %v389
    %v1178 = vunpack.c.l.b16 %v390
    %v1179 = vunpack.c.l.b16 %v391
    %v1180 = vunpack.c.l.b16 %v392
    %v1181 = vunpack.c.l.b16 %v393
    %v1182 = vunpack.c.l.b16 %v394
    %v1183 = vunpack.c.l.b16 %v395
    %v1184 = vunpack.c.l.b16 %v396
    %v1185 = vunpack.c.l.b16 %v397
    %v1186 = vunpack.c.l.b16 %v398
    %v1187 = vunpack.c.l.b16 %v399
    %v1188 = vunpack.c.l.b16 %v400
    %v1189 = vunpack.c.l.b16 %v401
    %v1190 = vunpack.c.l.b16 %v402
    %v1191 = vunpack.c.l.b16 %v403
    %v1192 = vunpack.c.l.b16 %v404
    %v1193 = vunpack.c.l.b16 %v405
    %v1194 = vunpack.c.l.b16 %v406
    %v1195 = vunpack.c.l.b16 %v407
    %v1196 = vunpack.c.l.b16 %v408
    %v1197 = vunpack.c.l.b16 %v409
    %v1198 = vunpack.c.l.b16 %v410
    %v1199 = vunpack.c.l.b16 %v411
    %v1200 = vunpack.c.l.b16 %v412
    %v1201 = vunpack.c.l.b16 %v413
    %v1202 = vunpack.c.l.b16 %v414
    %v1203 = vunpack.c.l.b16 %v415
    %v1204 = vunpack.c.l.b16 %v416
    %v1205 = vunpack.c.l.b16 %v417
    %v1206 = vunpack.c.l.b16 %v418
    %v1207 = vunpack.c.l.b16 %v419
    %v1208 = vunpack.c.l.b16 %v420
    %v1209 = vunpack.c.l.b16 %v421
    %v1210 = vunpack.c.l.b16 %v422
    %v1211 = vunpack.c.l.b16 %v423
    %v1212 = vunpack.c.l.b16 %v424
    %v1213 = vunpack.c.l.b16 %v425
    %v1214 = vunpack.c.l.b16 %v426
    %v1215 = vunpack.c.l.b16 %v427
    %v1216 = vunpack.c.l.b16 %v428
    %v1217 = vunpack.c.l.b16 %v429
    %v1218 = vunpack.c.l.b16 %v430
    %v1219 = vunpack.c.l.b16 %v431
    %v1220 = vunpack.c.l.b16 %v432
    %v1221 = vunpack.c.l.b16 %v433
    %v1222 = vunpack.c.l.b16 %v434
    %v1223 = vunpack.c.l.b16 %v435
    %v1224 = vunpack.c.l.b16 %v436
    %v1225 = vunpack.c.l.b16 %v437
    %v1226 = vunpack.c.l.b16 %v438
    %v1227 = vunpack.c.l.b16 %v439
    %v1228 = vunpack.c.l.b16 %v440
    %v1229 = vunpack.c.l.b16 %v441
    %v1230 = vunpack.c.l.b16 %v442
    %v1231 = vunpack.c.l.b16 %v443
    %v1232 = vunpack.c.l.b16 %v444
    %v1233 = vunpack.c.l.b16 %v445
    %v1234 = vunpack.c.l.b16 %v446
    %v1235 = vunpack.c.l.b16 %v447
    %v1236 = vunpack.c.l.b16 %v448
    %v1237 = vunpack.c.l.b16 %v449
    %v1238 = vunpack.c.l.b16 %v450
    %v1239 = vunpack.c.l.b16 %v451
    %v1240 = vunpack.c.l.b16 %v452
    %v1241 = vunpack.c.l.b16 %v453
    %v1242 = vunpack.c.l.b16 %v454
    %v1243 = vunpack.c.l.b16 %v455
    %v1244 = vunpack.c.l.b16 %v456
    %v1245 = vunpack.c.l.b16 %v457
    %v1246 = vunpack.c.l.b16 %v458
    %v1247 = vunpack.c.l.b16 %v459
    %v1248 = vunpack.c.l.b16 %v460
    %v1249 = vunpack.c.l.b16 %v461
    %v1250 = vunpack.c.l.b16 %v462
    %v1251 = vunpack.c.l.b16 %v463
    %v1252 = vunpack.c.l.b16 %v464
    %v1253 = vunpack.c.l.b16 %v465
    %v1254 = vunpack.c.l.b16 %v466
    %v1255 = vunpack.c.l.b16 %v467
    %v1256 = vunpack.c.l.b16 %v468
    %v1257 = vunpack.c.l.b16 %v469
    %v1258 = vunpack.c.l.b16 %v470
    %v1259 = vunpack.c.l.b16 %v471
    %v1260 = vunpack.c.l.b16 %v472
    %v1261 = vunpack.c.l.b16 %v473
    %v1262 = vunpack.c.l.b16 %v474
    %v1263 = vunpack.c.l.b16 %v475
    %v1264 = vunpack.c.l.b16 %v476
    %v1265 = vunpack.c.l.b16 %v477
    %v1266 = vunpack.c.l.b16 %v478
    %v1267 = vunpack.c.l.b16 %v479
    %v1268 = vunpack.c.l.b16 %v480
    %v1269 = vunpack.c.l.b16 %v481
    %v1270 = vunpack.c.l.b16 %v482
    %v1271 = vunpack.c.l.b16 %v483
    %v1272 = vunpack.c.l.b16 %v484
    %v1273 = vunpack.c.l.b16 %v485
    %v1274 = vunpack.c.l.b16 %v486
    %v1275 = vunpack.c.l.b16 %v487
    %v1276 = vunpack.c.l.b16 %v488
    %v1277 = vunpack.c.l.b16 %v489
    %v1278 = vunpack.c.l.b16 %v490
    %v1279 = vunpack.c.l.b16 %v491
    %v1280 = vunpack.c.l.b16 %v492
    %v1281 = vunpack.c.l.b16 %v493
    %v1282 = vunpack.c.l.b16 %v494
    %v1283 = vunpack.c.l.b16 %v495
    %v1284 = vunpack.c.l.b16 %v496
    %v1285 = vunpack.c.l.b16 %v497
    %v1286 = vunpack.c.l.b16 %v498
    %v1287 = vunpack.c.l.b16 %v499
    %v1288 = vunpack.c.l.b16 %v500
    %v1289 = vunpack.c.l.b16 %v501
    %v1290 = vunpack.c.l.b16 %v502
    %v1291 = vunpack.c.l.b16 %v503
    %v1292 = vunpack.c.l.b16 %v504
    %v1293 = vunpack.c.l.b16 %v505
    %v1294 = vunpack.c.l.b16 %v506
    %v1295 = vunpack.c.l.b16 %v507
    %v1296 = vunpack.c.l.b16 %v508
    %v1297 = vunpack.c.l.b16 %v509
    %v1298 = vunpack.c.l.b16 %v510
    %v1299 = vunpack.c.l.b16 %v511
    %v1300 = vunpack.c.l.b16 %v512
    %v1301 = vunpack.c.l.b16 %v513
    %v1302 = vunpack.c.l.b16 %v514
    %v1303 = vunpack.c.l.b16 %v515
    %v1304 = vunpack.c.l.b16 %v516
    %v1305 = vunpack.c.l.b16 %v517
    %v1306 = vunpack.c.l.b16 %v518
    %v1307 = vunpack.c.l.b16 %v519
    %v1308 = vunpack.c.l.b16 %v520
    %v1309 = vunpack.c.l.b16 %v521
    %v1310 = vunpack.c.l.b16 %v522
    %v1311 = vunpack.c.l.b16 %v523
    %v1312 = vunpack.c.l.b16 %v524
    %v1313 = vunpack.c.l.b16 %v525
    %v1314 = vunpack.c.l.b16 %v526
    %v1315 = vpack.c.b16 %v924, %v923
    %v1316 = vpack.c.b16 %v926, %v925
    %v1317 = vpack.c.b16 %v928, %v927
    %v1318 = vpack.c.b16 %v930, %v929
    %v1319 = vpack.c.b16 %v932, %v931
    %v1320 = vpack.c.b16 %v934, %v933
    %v1321 = vpack.c.b16 %v936, %v935
    %v1322 = vpack.c.b16 %v938, %v937
    %v1323 = vpack.c.b16 %v940, %v939
    %v1324 = vpack.c.b16 %v942, %v941
    %v1325 = vpack.c.b16 %v944, %v943
    %v1326 = vpack.c.b16 %v946, %v945
    %v1327 = vpack.c.b16 %v948, %v947
    %v1328 = vpack.c.b16 %v950, %v949
    %v1329 = vpack.c.b16 %v952, %v951
    %v1330 = vpack.c.b16 %v954, %v953
    %v1331 = vpack.c.b16 %v956, %v955
    %v1332 = vpack.c.b16 %v958, %v957
    %v1333 = vpack.c.b16 %v960, %v959
    %v1334 = vpack.c.b16 %v962, %v961
    %v1335 = vpack.c.b16 %v964, %v963
    %v1336 = vpack.c.b16 %v966, %v965
    %v1337 = vpack.c.b16 %v968, %v967
    %v1338 = vpack.c.b16 %v970, %v969
    %v1339 = vpack.c.b16 %v972, %v971
    %v1340 = vpack.c.b16 %v974, %v973
    %v1341 = vpack.c.b16 %v976, %v975
    %v1342 = vpack.c.b16 %v978, %v977
    %v1343 = vpack.c.b16 %v980, %v979
    %v1344 = vpack.c.b16 %v982, %v981
    %v1345 = vpack.c.b16 %v984, %v983
    %v1346 = vpack.c.b16 %v986, %v985
    %v1347 = vpack.c.b16 %v988, %v987
    %v1348 = vpack.c.b16 %v990, %v989
    %v1349 = vpack.c.b16 %v992, %v991
    %v1350 = vpack.c.b16 %v994, %v993
    %v1351 = vpack.c.b16 %v996, %v995
    %v1352 = vpack.c.b16 %v998, %v997
    %v1353 = vpack.c.b16 %v1000, %v999
    %v1354 = vpack.c.b16 %v1002, %v1001
    %v1355 = vpack.c.b16 %v1004, %v1003
    %v1356 = vpack.c.b16 %v1006, %v1005
    %v1357 = vpack.c.b16 %v1008, %v1007
    %v1358 = vpack.c.b16 %v1010, %v1009
    %v1359 = vpack.c.b16 %v1012, %v1011
    %v1360 = vpack.c.b16 %v1014, %v1013
    %v1361 = vpack.c.b16 %v1016, %v1015
    %v1362 = vpack.c.b16 %v1018, %v1017
    %v1363 = vpack.c.b16 %v1020, %v1019
    %v1364 = vpack.c.b16 %v1022, %v1021
    %v1365 = vpack.c.b16 %v1024, %v1023
    %v1366 = vpack.c.b16 %v1026, %v1025
    %v1367 = vpack.c.b16 %v1028, %v1027
    %v1368 = vpack.c.b16 %v1030, %v1029
    %v1369 = vpack.c.b16 %v1032, %v1031
    %v1370 = vpack.c.b16 %v1034, %v1033
    %v1371 = vpack.c.b16 %v1036, %v1035
    %v1372 = vpack.c.b16 %v1038, %v1037
    %v1373 = vpack.c.b16 %v1040, %v1039
    %v1374 = vpack.c.b16 %v1042, %v1041
    %v1375 = vpack.c.b16 %v1044, %v1043
    %v1376 = vpack.c.b16 %v1046, %v1045
    %v1377 = vpack.c.b16 %v1048, %v1047
    %v1378 = vpack.c.b16 %v1050, %v1049
    %v1379 = vpack.c.b16 %v1052, %v1051
    %v1380 = vpack.c.b16 %v1054, %v1053
    %v1381 = vpack.c.b16 %v1056, %v1055
    %v1382 = vpack.c.b16 %v1058, %v1057
    %v1383 = vpack.c.b16 %v1060, %v1059
    %v1384 = vpack.c.b16 %v1062, %v1061
    %v1385 = vpack.c.b16 %v1064, %v1063
    %v1386 = vpack.c.b16 %v1066, %v1065
    %v1387 = vpack.c.b16 %v1068, %v1067
    %v1388 = vpack.c.b16 %v1070, %v1069
    %v1389 = vpack.c.b16 %v1072, %v1071
    %v1390 = vpack.c.b16 %v1074, %v1073
    %v1391 = vpack.c.b16 %v1076, %v1075
    %v1392 = vpack.c.b16 %v1078, %v1077
    %v1393 = vpack.c.b16 %v1080, %v1079
    %v1394 = vpack.c.b16 %v1082, %v1081
    %v1395 = vpack.c.b16 %v1084, %v1083
    %v1396 = vpack.c.b16 %v1086, %v1085
    %v1397 = vpack.c.b16 %v1088, %v1087
    %v1398 = vpack.c.b16 %v1090, %v1089
    %v1399 = vpack.c.b16 %v1092, %v1091
    %v1400 = vpack.c.b16 %v1094, %v1093
    %v1401 = vpack.c.b16 %v1096, %v1095
    %v1402 = vpack.c.b16 %v1098, %v1097
    %v1403 = vpack.c.b16 %v1100, %v1099
    %v1404 = vpack.c.b16 %v1102, %v1101
    %v1405 = vpack.c.b16 %v1104, %v1103
    %v1406 = vpack.c.b16 %v1106, %v1105
    %v1407 = vpack.c.b16 %v1108, %v1107
    %v1408 = vpack.c.b16 %v1110, %v1109
    %v1409 = vpack.c.b16 %v1112, %v1111
    %v1410 = vpack.c.b16 %v1114, %v1113
    %v1411 = vpack.c.b16 %v1116, %v1115
    %v1412 = vpack.c.b16 %v1118, %v1117
    %v1413 = vpack.c.b16 %v1120, %v1119
    %v1414 = vpack.c.b16 %v1122, %v1121
    %v1415 = vpack.c.b16 %v1124, %v1123
    %v1416 = vpack.c.b16 %v1126, %v1125
    %v1417 = vpack.c.b16 %v1128, %v1127
    %v1418 = vpack.c.b16 %v1130, %v1129
    %v1419 = vpack.c.b16 %v1132, %v1131
    %v1420 = vpack.c.b16 %v1134, %v1133
    %v1421 = vpack.c.b16 %v1136, %v1135
    %v1422 = vpack.c.b16 %v1138, %v1137
    %v1423 = vpack.c.b16 %v1140, %v1139
    %v1424 = vpack.c.b16 %v1142, %v1141
    %v1425 = vpack.c.b16 %v1144, %v1143
    %v1426 = vpack.c.b16 %v1146, %v1145
    %v1427 = vpack.c.b16 %v1148, %v1147
    %v1428 = vpack.c.b16 %v1150, %v1149
    %v1429 = vpack.c.b16 %v1152, %v1151
    %v1430 = vpack.c.b16 %v1154, %v1153
    %v1431 = vpack.c.b16 %v1156, %v1155
    %v1432 = vpack.c.b16 %v1158, %v1157
    %v1433 = vpack.c.b16 %v1160, %v1159
    %v1434 = vpack.c.b16 %v1162, %v1161
    %v1435 = vpack.c.b16 %v1164, %v1163
    %v1436 = vpack.c.b16 %v1166, %v1165
    %v1437 = vpack.c.b16 %v1168, %v1167
    %v1438 = vpack.c.b16 %v1170, %v1169
    %v1439 = vpack.c.b16 %v1172, %v1171
    %v1440 = vpack.c.b16 %v1174, %v1173
    %v1441 = vpack.c.b16 %v1176, %v1175
    %v1442 = vpack.c.b16 %v1178, %v1177
    %v1443 = vpack.c.b16 %v1180, %v1179
    %v1444 = vpack.c.b16 %v1182, %v1181
    %v1445 = vpack.c.b16 %v1184, %v1183
    %v1446 = vpack.c.b16 %v1186, %v1185
    %v1447 = vpack.c.b16 %v1188, %v1187
    %v1448 = vpack.c.b16 %v1190, %v1189
    %v1449 = vpack.c.b16 %v1192, %v1191
    %v1450 = vpack.c.b16 %v1194, %v1193
    %v1451 = vpack.c.b16 %v1196, %v1195
    %v1452 = vpack.c.b16 %v1198, %v1197
    %v1453 = vpack.c.b16 %v1200, %v1199
    %v1454 = vpack.c.b16 %v1202, %v1201
    %v1455 = vpack.c.b16 %v1204, %v1203
    %v1456 = vpack.c.b16 %v1206, %v1205
    %v1457 = vpack.c.b16 %v1208, %v1207
    %v1458 = vpack.c.b16 %v1210, %v1209
    %v1459 = vpack.c.b16 %v1212, %v1211
    %v1460 = vpack.c.b16 %v1214, %v1213
    %v1461 = vpack.c.b16 %v1216, %v1215
    %v1462 = vpack.c.b16 %v1218, %v1217
    %v1463 = vpack.c.b16 %v1220, %v1219
    %v1464 = vpack.c.b16 %v1222, %v1221
    %v1465 = vpack.c.b16 %v1224, %v1223
    %v1466 = vpack.c.b16 %v1226, %v1225
    %v1467 = vpack.c.b16 %v1228, %v1227
    %v1468 = vpack.c.b16 %v1230, %v1229
    %v1469 = vpack.c.b16 %v1232, %v1231
    %v1470 = vpack.c.b16 %v1234, %v1233
    %v1471 = vpack.c.b16 %v1236, %v1235
    %v1472 = vpack.c.b16 %v1238, %v1237
    %v1473 = vpack.c.b16 %v1240, %v1239
    %v1474 = vpack.c.b16 %v1242, %v1241
    %v1475 = vpack.c.b16 %v1244, %v1243
    %v1476 = vpack.c.b16 %v1246, %v1245
    %v1477 = vpack.c.b16 %v1248, %v1247
    %v1478 = vpack.c.b16 %v1250, %v1249
    %v1479 = vpack.c.b16 %v1252, %v1251
    %v1480 = vpack.c.b16 %v1254, %v1253
    %v1481 = vpack.c.b16 %v1256, %v1255
    %v1482 = vpack.c.b16 %v1258, %v1257
    %v1483 = vpack.c.b16 %v1260, %v1259
    %v1484 = vpack.c.b16 %v1262, %v1261
    %v1485 = vpack.c.b16 %v1264, %v1263
    %v1486 = vpack.c.b16 %v1266, %v1265
    %v1487 = vpack.c.b16 %v1268, %v1267
    %v1488 = vpack.c.b16 %v1270, %v1269
    %v1489 = vpack.c.b16 %v1272, %v1271
    %v1490 = vpack.c.b16 %v1274, %v1273
    %v1491 = vpack.c.b16 %v1276, %v1275
    %v1492 = vpack.c.b16 %v1278, %v1277
    %v1493 = vpack.c.b16 %v1280, %v1279
    %v1494 = vpack.c.b16 %v1282, %v1281
    %v1495 = vpack.c.b16 %v1284, %v1283
    %v1496 = vpack.c.b16 %v1286, %v1285
    %v1497 = vpack.c.b16 %v1288, %v1287
    %v1498 = vpack.c.b16 %v1290, %v1289
    %v1499 = vpack.c.b16 %v1292, %v1291
    %v1500 = vpack.c.b16 %v1294, %v1293
    %v1501 = vpack.c.b16 %v1296, %v1295
    %v1502 = vpack.c.b16 %v1298, %v1297
    %v1503 = vpack.c.b16 %v1300, %v1299
    %v1504 = vpack.c.b16 %v1302, %v1301
    %v1505 = vpack.c.b16 %v1304, %v1303
    %v1506 = vpack.c.b16 %v1306, %v1305
    %v1507 = vpack.c.b16 %v1308, %v1307
    %v1508 = vpack.c.b16 %v1310, %v1309
    %v1509 = vpack.c.b16 %v1312, %v1311
    %v1510 = vpack.c.b16 %v1314, %v1313
    %vm1707 = vcmask 523264
    %v1709 = vsel %vm1707, %v134, 0
    %1711 = vmatpush.bf16.msra.mxu0 %v1322
    %1712 = vmatpush.bf16.msra.mxu0 %v1321
    %1713 = vmatpush.bf16.msra.mxu0 %v1320
    %1714 = vmatpush.bf16.msra.mxu0 %v1319
    %1715 = vmatpush.bf16.msra.mxu0 %v1318
    %1716 = vmatpush.bf16.msra.mxu0 %v1317
    %1717 = vmatpush.bf16.msra.mxu0 %v1316
    %1718 = vmatpush.bf16.msra.mxu0 %v1315
    %1719 = vmatmul.bf16.gmra.mxu0 %v110
    %v1720 = vpop.f32.mrf.mxu0
    %v1721 = vadd.f32 %v529, %v1720
    %v1722 = vpop.f32.mrf.mxu0
    %1723 = vdwg.mxu0
    %1724 = vmatpush.bf16.msra.mxu0 %v1330
    %1725 = vmatpush.bf16.msra.mxu0 %v1329
    %1726 = vmatpush.bf16.msra.mxu0 %v1328
    %1727 = vmatpush.bf16.msra.mxu0 %v1327
    %1728 = vmatpush.bf16.msra.mxu0 %v1326
    %1729 = vmatpush.bf16.msra.mxu0 %v1325
    %1730 = vmatpush.bf16.msra.mxu0 %v1324
    %1731 = vmatpush.bf16.msra.mxu0 %v1323
    %1732 = vmatmul.bf16.gmra.mxu0 %v111
    %v1733 = vpop.f32.mrf.mxu0
    %v1734 = vadd.f32 %v1721, %v1733
    %v1735 = vpop.f32.mrf.mxu0
    %1736 = vdwg.mxu0
    %1737 = vmatpush.bf16.msra.mxu0 %v1338
    %1738 = vmatpush.bf16.msra.mxu0 %v1337
    %1739 = vmatpush.bf16.msra.mxu0 %v1336
    %1740 = vmatpush.bf16.msra.mxu0 %v1335
    %1741 = vmatpush.bf16.msra.mxu0 %v1334
    %1742 = vmatpush.bf16.msra.mxu0 %v1333
    %1743 = vmatpush.bf16.msra.mxu0 %v1332
    %1744 = vmatpush.bf16.msra.mxu0 %v1331
    %1745 = vmatmul.bf16.gmra.mxu0 %v112
    %v1746 = vpop.f32.mrf.mxu0
    %v1747 = vadd.f32 %v1734, %v1746
    %v1748 = vpop.f32.mrf.mxu0
    %1749 = vdwg.mxu0
    %1750 = vmatpush.bf16.msra.mxu0 %v1346
    %1751 = vmatpush.bf16.msra.mxu0 %v1345
    %1752 = vmatpush.bf16.msra.mxu0 %v1344
    %1753 = vmatpush.bf16.msra.mxu0 %v1343
    %1754 = vmatpush.bf16.msra.mxu0 %v1342
    %1755 = vmatpush.bf16.msra.mxu0 %v1341
    %1756 = vmatpush.bf16.msra.mxu0 %v1340
    %1757 = vmatpush.bf16.msra.mxu0 %v1339
    %1758 = vmatmul.bf16.gmra.mxu0 %v113
    %v1759 = vpop.f32.mrf.mxu0
    %v1760 = vadd.f32 %v1747, %v1759
    %v1761 = vpop.f32.mrf.mxu0
    %1762 = vdwg.mxu0
    %1763 = vmatpush.bf16.msra.mxu0 %v1354
    %1764 = vmatpush.bf16.msra.mxu0 %v1353
    %1765 = vmatpush.bf16.msra.mxu0 %v1352
    %1766 = vmatpush.bf16.msra.mxu0 %v1351
    %1767 = vmatpush.bf16.msra.mxu0 %v1350
    %1768 = vmatpush.bf16.msra.mxu0 %v1349
    %1769 = vmatpush.bf16.msra.mxu0 %v1348
    %1770 = vmatpush.bf16.msra.mxu0 %v1347
    %1771 = vmatmul.bf16.gmra.mxu0 %v114
    %v1772 = vpop.f32.mrf.mxu0
    %v1773 = vadd.f32 %v1760, %v1772
    %v1774 = vpop.f32.mrf.mxu0
    %1775 = vdwg.mxu0
    %1776 = vmatpush.bf16.msra.mxu0 %v1362
    %1777 = vmatpush.bf16.msra.mxu0 %v1361
    %1778 = vmatpush.bf16.msra.mxu0 %v1360
    %1779 = vmatpush.bf16.msra.mxu0 %v1359
    %1780 = vmatpush.bf16.msra.mxu0 %v1358
    %1781 = vmatpush.bf16.msra.mxu0 %v1357
    %1782 = vmatpush.bf16.msra.mxu0 %v1356
    %1783 = vmatpush.bf16.msra.mxu0 %v1355
    %1784 = vmatmul.bf16.gmra.mxu0 %v115
    %v1785 = vpop.f32.mrf.mxu0
    %v1786 = vadd.f32 %v1773, %v1785
    %v1787 = vpop.f32.mrf.mxu0
    %1788 = vdwg.mxu0
    %1789 = vmatpush.bf16.msra.mxu0 %v1370
    %1790 = vmatpush.bf16.msra.mxu0 %v1369
    %1791 = vmatpush.bf16.msra.mxu0 %v1368
    %1792 = vmatpush.bf16.msra.mxu0 %v1367
    %1793 = vmatpush.bf16.msra.mxu0 %v1366
    %1794 = vmatpush.bf16.msra.mxu0 %v1365
    %1795 = vmatpush.bf16.msra.mxu0 %v1364
    %1796 = vmatpush.bf16.msra.mxu0 %v1363
    %1797 = vmatmul.bf16.gmra.mxu0 %v116
    %v1798 = vpop.f32.mrf.mxu0
    %v1799 = vadd.f32 %v1786, %v1798
    %v1800 = vpop.f32.mrf.mxu0
    %1801 = vdwg.mxu0
    %1802 = vmatpush.bf16.msra.mxu0 %v1378
    %1803 = vmatpush.bf16.msra.mxu0 %v1377
    %1804 = vmatpush.bf16.msra.mxu0 %v1376
    %1805 = vmatpush.bf16.msra.mxu0 %v1375
    %1806 = vmatpush.bf16.msra.mxu0 %v1374
    %1807 = vmatpush.bf16.msra.mxu0 %v1373
    %1808 = vmatpush.bf16.msra.mxu0 %v1372
    %1809 = vmatpush.bf16.msra.mxu0 %v1371
    %1810 = vmatmul.bf16.gmra.mxu0 %v117
    %v1811 = vpop.f32.mrf.mxu0
    %v1812 = vadd.f32 %v1799, %v1811
    %v1813 = vpop.f32.mrf.mxu0
    %1814 = vdwg.mxu0
    %1815 = vmatpush.bf16.msra.mxu0 %v1386
    %1816 = vmatpush.bf16.msra.mxu0 %v1385
    %1817 = vmatpush.bf16.msra.mxu0 %v1384
    %1818 = vmatpush.bf16.msra.mxu0 %v1383
    %1819 = vmatpush.bf16.msra.mxu0 %v1382
    %1820 = vmatpush.bf16.msra.mxu0 %v1381
    %1821 = vmatpush.bf16.msra.mxu0 %v1380
    %1822 = vmatpush.bf16.msra.mxu0 %v1379
    %1823 = vmatmul.bf16.gmra.mxu0 %v118
    %v1824 = vpop.f32.mrf.mxu0
    %v1825 = vadd.f32 %v1812, %v1824
    %v1826 = vpop.f32.mrf.mxu0
    %1827 = vdwg.mxu0
    %1828 = vmatpush.bf16.msra.mxu0 %v1394
    %1829 = vmatpush.bf16.msra.mxu0 %v1393
    %1830 = vmatpush.bf16.msra.mxu0 %v1392
    %1831 = vmatpush.bf16.msra.mxu0 %v1391
    %1832 = vmatpush.bf16.msra.mxu0 %v1390
    %1833 = vmatpush.bf16.msra.mxu0 %v1389
    %1834 = vmatpush.bf16.msra.mxu0 %v1388
    %1835 = vmatpush.bf16.msra.mxu0 %v1387
    %1836 = vmatmul.bf16.gmra.mxu0 %v119
    %v1837 = vpop.f32.mrf.mxu0
    %v1838 = vadd.f32 %v1825, %v1837
    %v1839 = vpop.f32.mrf.mxu0
    %1840 = vdwg.mxu0
    %1841 = vmatpush.bf16.msra.mxu0 %v1402
    %1842 = vmatpush.bf16.msra.mxu0 %v1401
    %1843 = vmatpush.bf16.msra.mxu0 %v1400
    %1844 = vmatpush.bf16.msra.mxu0 %v1399
    %1845 = vmatpush.bf16.msra.mxu0 %v1398
    %1846 = vmatpush.bf16.msra.mxu0 %v1397
    %1847 = vmatpush.bf16.msra.mxu0 %v1396
    %1848 = vmatpush.bf16.msra.mxu0 %v1395
    %1849 = vmatmul.bf16.gmra.mxu0 %v120
    %v1850 = vpop.f32.mrf.mxu0
    %v1851 = vadd.f32 %v1838, %v1850
    %v1852 = vpop.f32.mrf.mxu0
    %1853 = vdwg.mxu0
    %1854 = vmatpush.bf16.msra.mxu0 %v1410
    %1855 = vmatpush.bf16.msra.mxu0 %v1409
    %1856 = vmatpush.bf16.msra.mxu0 %v1408
    %1857 = vmatpush.bf16.msra.mxu0 %v1407
    %1858 = vmatpush.bf16.msra.mxu0 %v1406
    %1859 = vmatpush.bf16.msra.mxu0 %v1405
    %1860 = vmatpush.bf16.msra.mxu0 %v1404
    %1861 = vmatpush.bf16.msra.mxu0 %v1403
    %1862 = vmatmul.bf16.gmra.mxu0 %v121
    %v1863 = vpop.f32.mrf.mxu0
    %v1864 = vadd.f32 %v1851, %v1863
    %v1865 = vpop.f32.mrf.mxu0
    %1866 = vdwg.mxu0
    %1867 = vmatpush.bf16.msra.mxu0 %v1418
    %1868 = vmatpush.bf16.msra.mxu0 %v1417
    %1869 = vmatpush.bf16.msra.mxu0 %v1416
    %1870 = vmatpush.bf16.msra.mxu0 %v1415
    %1871 = vmatpush.bf16.msra.mxu0 %v1414
    %1872 = vmatpush.bf16.msra.mxu0 %v1413
    %1873 = vmatpush.bf16.msra.mxu0 %v1412
    %1874 = vmatpush.bf16.msra.mxu0 %v1411
    %1875 = vmatmul.bf16.gmra.mxu0 %v122
    %v1876 = vpop.f32.mrf.mxu0
    %v1877 = vadd.f32 %v1864, %v1876
    %v1878 = vpop.f32.mrf.mxu0
    %1879 = vdwg.mxu0
    %1880 = vmatpush.bf16.msra.mxu0 %v1426
    %1881 = vmatpush.bf16.msra.mxu0 %v1425
    %1882 = vmatpush.bf16.msra.mxu0 %v1424
    %1883 = vmatpush.bf16.msra.mxu0 %v1423
    %1884 = vmatpush.bf16.msra.mxu0 %v1422
    %1885 = vmatpush.bf16.msra.mxu0 %v1421
    %1886 = vmatpush.bf16.msra.mxu0 %v1420
    %1887 = vmatpush.bf16.msra.mxu0 %v1419
    %1888 = vmatmul.bf16.gmra.mxu0 %v123
    %v1889 = vpop.f32.mrf.mxu0
    %v1890 = vadd.f32 %v1877, %v1889
    %v1891 = vpop.f32.mrf.mxu0
    %1892 = vdwg.mxu0
    %1893 = vmatpush.bf16.msra.mxu0 %v1434
    %1894 = vmatpush.bf16.msra.mxu0 %v1433
    %1895 = vmatpush.bf16.msra.mxu0 %v1432
    %1896 = vmatpush.bf16.msra.mxu0 %v1431
    %1897 = vmatpush.bf16.msra.mxu0 %v1430
    %1898 = vmatpush.bf16.msra.mxu0 %v1429
    %1899 = vmatpush.bf16.msra.mxu0 %v1428
    %1900 = vmatpush.bf16.msra.mxu0 %v1427
    %1901 = vmatmul.bf16.gmra.mxu0 %v124
    %v1902 = vpop.f32.mrf.mxu0
    %v1903 = vadd.f32 %v1890, %v1902
    %v1904 = vpop.f32.mrf.mxu0
    %1905 = vdwg.mxu0
    %1906 = vmatpush.bf16.msra.mxu0 %v1442
    %1907 = vmatpush.bf16.msra.mxu0 %v1441
    %1908 = vmatpush.bf16.msra.mxu0 %v1440
    %1909 = vmatpush.bf16.msra.mxu0 %v1439
    %1910 = vmatpush.bf16.msra.mxu0 %v1438
    %1911 = vmatpush.bf16.msra.mxu0 %v1437
    %1912 = vmatpush.bf16.msra.mxu0 %v1436
    %1913 = vmatpush.bf16.msra.mxu0 %v1435
    %1914 = vmatmul.bf16.gmra.mxu0 %v125
    %v1915 = vpop.f32.mrf.mxu0
    %v1916 = vadd.f32 %v1903, %v1915
    %v1917 = vpop.f32.mrf.mxu0
    %1918 = vdwg.mxu0
    %1919 = vmatpush.bf16.msra.mxu0 %v1450
    %1920 = vmatpush.bf16.msra.mxu0 %v1449
    %1921 = vmatpush.bf16.msra.mxu0 %v1448
    %1922 = vmatpush.bf16.msra.mxu0 %v1447
    %1923 = vmatpush.bf16.msra.mxu0 %v1446
    %1924 = vmatpush.bf16.msra.mxu0 %v1445
    %1925 = vmatpush.bf16.msra.mxu0 %v1444
    %1926 = vmatpush.bf16.msra.mxu0 %v1443
    %1927 = vmatmul.bf16.gmra.mxu0 %v126
    %v1928 = vpop.f32.mrf.mxu0
    %v1929 = vadd.f32 %v1916, %v1928
    %v1930 = vpop.f32.mrf.mxu0
    %1931 = vdwg.mxu0
    %1932 = vmatpush.bf16.msra.mxu0 %v1458
    %1933 = vmatpush.bf16.msra.mxu0 %v1457
    %1934 = vmatpush.bf16.msra.mxu0 %v1456
    %1935 = vmatpush.bf16.msra.mxu0 %v1455
    %1936 = vmatpush.bf16.msra.mxu0 %v1454
    %1937 = vmatpush.bf16.msra.mxu0 %v1453
    %1938 = vmatpush.bf16.msra.mxu0 %v1452
    %1939 = vmatpush.bf16.msra.mxu0 %v1451
    %1940 = vmatmul.bf16.gmra.mxu0 %v127
    %v1941 = vpop.f32.mrf.mxu0
    %v1942 = vadd.f32 %v1929, %v1941
    %v1943 = vpop.f32.mrf.mxu0
    %1944 = vdwg.mxu0
    %1945 = vmatpush.bf16.msra.mxu0 %v1466
    %1946 = vmatpush.bf16.msra.mxu0 %v1465
    %1947 = vmatpush.bf16.msra.mxu0 %v1464
    %1948 = vmatpush.bf16.msra.mxu0 %v1463
    %1949 = vmatpush.bf16.msra.mxu0 %v1462
    %1950 = vmatpush.bf16.msra.mxu0 %v1461
    %1951 = vmatpush.bf16.msra.mxu0 %v1460
    %1952 = vmatpush.bf16.msra.mxu0 %v1459
    %1953 = vmatmul.bf16.gmra.mxu0 %v128
    %v1954 = vpop.f32.mrf.mxu0
    %v1955 = vadd.f32 %v1942, %v1954
    %v1956 = vpop.f32.mrf.mxu0
    %1957 = vdwg.mxu0
    %1958 = vmatpush.bf16.msra.mxu0 %v1474
    %1959 = vmatpush.bf16.msra.mxu0 %v1473
    %1960 = vmatpush.bf16.msra.mxu0 %v1472
    %1961 = vmatpush.bf16.msra.mxu0 %v1471
    %1962 = vmatpush.bf16.msra.mxu0 %v1470
    %1963 = vmatpush.bf16.msra.mxu0 %v1469
    %1964 = vmatpush.bf16.msra.mxu0 %v1468
    %1965 = vmatpush.bf16.msra.mxu0 %v1467
    %1966 = vmatmul.bf16.gmra.mxu0 %v129
    %v1967 = vpop.f32.mrf.mxu0
    %v1968 = vadd.f32 %v1955, %v1967
    %v1969 = vpop.f32.mrf.mxu0
    %1970 = vdwg.mxu0
    %1971 = vmatpush.bf16.msra.mxu0 %v1482
    %1972 = vmatpush.bf16.msra.mxu0 %v1481
    %1973 = vmatpush.bf16.msra.mxu0 %v1480
    %1974 = vmatpush.bf16.msra.mxu0 %v1479
    %1975 = vmatpush.bf16.msra.mxu0 %v1478
    %1976 = vmatpush.bf16.msra.mxu0 %v1477
    %1977 = vmatpush.bf16.msra.mxu0 %v1476
    %1978 = vmatpush.bf16.msra.mxu0 %v1475
    %1979 = vmatmul.bf16.gmra.mxu0 %v130
    %v1980 = vpop.f32.mrf.mxu0
    %v1981 = vadd.f32 %v1968, %v1980
    %v1982 = vpop.f32.mrf.mxu0
    %1983 = vdwg.mxu0
    %1984 = vmatpush.bf16.msra.mxu0 %v1490
    %1985 = vmatpush.bf16.msra.mxu0 %v1489
    %1986 = vmatpush.bf16.msra.mxu0 %v1488
    %1987 = vmatpush.bf16.msra.mxu0 %v1487
    %1988 = vmatpush.bf16.msra.mxu0 %v1486
    %1989 = vmatpush.bf16.msra.mxu0 %v1485
    %1990 = vmatpush.bf16.msra.mxu0 %v1484
    %1991 = vmatpush.bf16.msra.mxu0 %v1483
    %1992 = vmatmul.bf16.gmra.mxu0 %v131
    %v1993 = vpop.f32.mrf.mxu0
    %v1994 = vadd.f32 %v1981, %v1993
    %v1995 = vpop.f32.mrf.mxu0
    %1996 = vdwg.mxu0
    %1997 = vmatpush.bf16.msra.mxu0 %v1498
    %1998 = vmatpush.bf16.msra.mxu0 %v1497
    %1999 = vmatpush.bf16.msra.mxu0 %v1496
    %2000 = vmatpush.bf16.msra.mxu0 %v1495
    %2001 = vmatpush.bf16.msra.mxu0 %v1494
    %2002 = vmatpush.bf16.msra.mxu0 %v1493
    %2003 = vmatpush.bf16.msra.mxu0 %v1492
    %2004 = vmatpush.bf16.msra.mxu0 %v1491
    %2005 = vmatmul.bf16.gmra.mxu0 %v132
    %v2006 = vpop.f32.mrf.mxu0
    %v2007 = vadd.f32 %v1994, %v2006
    %v2008 = vpop.f32.mrf.mxu0
    %2009 = vdwg.mxu0
    %2010 = vmatpush.bf16.msra.mxu0 %v1506
    %2011 = vmatpush.bf16.msra.mxu0 %v1505
    %2012 = vmatpush.bf16.msra.mxu0 %v1504
    %2013 = vmatpush.bf16.msra.mxu0 %v1503
    %2014 = vmatpush.bf16.msra.mxu0 %v1502
    %2015 = vmatpush.bf16.msra.mxu0 %v1501
    %2016 = vmatpush.bf16.msra.mxu0 %v1500
    %2017 = vmatpush.bf16.msra.mxu0 %v1499
    %2018 = vmatmul.bf16.gmra.mxu0 %v133
    %v2019 = vpop.f32.mrf.mxu0
    %v2020 = vadd.f32 %v2007, %v2019
    %v2021 = vpop.f32.mrf.mxu0
    %2022 = vdwg.mxu0
    %2023 = vmatpush.bf16.msra.mxu0 0
    %2024 = vmatpush.bf16.msra.mxu0 0
    %2025 = vmatpush.bf16.msra.mxu0 0
    %2026 = vmatpush.bf16.msra.mxu0 0
    %2027 = vmatpush.bf16.msra.mxu0 %v1510
    %2028 = vmatpush.bf16.msra.mxu0 %v1509
    %2029 = vmatpush.bf16.msra.mxu0 %v1508
    %2030 = vmatpush.bf16.msra.mxu0 %v1507
    %2031 = vmatmul.bf16.gmra.mxu0 %v1709
    %v2032 = vpop.f32.mrf.mxu0
    %v2033 = vadd.f32 %v2020, %v2032
    %v2034 = vpop.f32.mrf.mxu0
    %2035 = vdwg.mxu0
    %v2036 = vmax.f32 %v2033, 0.0
    %v2037 = vpack.c.bf16 %v2036, %v2036
    %v2038 = vld [vmem:[%s3] sm:$0xf]
    %v2039 = vld [vmem:[%s3 + $0x4] sm:$0xf]
    %v2040 = vld [vmem:[%s3 + $0x8] sm:$0xf]
    %v2041 = vld [vmem:[%s3 + $0xc] sm:$0xf]
    %v2042 = vld [vmem:[%s3 + $0x10] sm:$0xf]
    %v2043 = vld [vmem:[%s3 + $0x14] sm:$0xf]
    %v2044 = vld [vmem:[%s3 + $0x18] sm:$0xf]
    %v2045 = vld [vmem:[%s3 + $0x1c] sm:$0xf]
    %v2046 = vld [vmem:[%s3 + $0x20] sm:$0xf]
    %v2047 = vld [vmem:[%s3 + $0x24] sm:$0xf]
    %v2048 = vld [vmem:[%s3 + $0x28] sm:$0xf]
    %v2049 = vld [vmem:[%s3 + $0x2c] sm:$0xf]
    %v2050 = vld [vmem:[%s3 + $0x30] sm:$0xf]
    %v2051 = vld [vmem:[%s3 + $0x34] sm:$0xf]
    %v2052 = vld [vmem:[%s3 + $0x38] sm:$0xf]
    %v2053 = vld [vmem:[%s3 + $0x3c] sm:$0xf]
    %v2054 = vld [vmem:[%s4] sm:$0x1]
    %v2056 = vperm.slane %v2054, 0
    %v2074 = vunpack.c.l.b16 %v2038
    %v2075 = vunpack.c.l.b16 %v2039
    %v2076 = vunpack.c.l.b16 %v2040
    %v2077 = vunpack.c.l.b16 %v2041
    %v2078 = vunpack.c.l.b16 %v2042
    %v2079 = vunpack.c.l.b16 %v2043
    %v2080 = vunpack.c.l.b16 %v2044
    %v2081 = vunpack.c.l.b16 %v2045
    %v2082 = vunpack.c.l.b16 %v2046
    %v2083 = vunpack.c.l.b16 %v2047
    %v2084 = vunpack.c.l.b16 %v2048
    %v2085 = vunpack.c.l.b16 %v2049
    %v2086 = vunpack.c.l.b16 %v2050
    %v2087 = vunpack.c.l.b16 %v2051
    %v2088 = vunpack.c.l.b16 %v2052
    %v2089 = vunpack.c.l.b16 %v2053
    %v2090 = vpack.c.b16 %v2075, %v2074
    %v2091 = vpack.c.b16 %v2077, %v2076
    %v2092 = vpack.c.b16 %v2079, %v2078
    %v2093 = vpack.c.b16 %v2081, %v2080
    %v2094 = vpack.c.b16 %v2083, %v2082
    %v2095 = vpack.c.b16 %v2085, %v2084
    %v2096 = vpack.c.b16 %v2087, %v2086
    %v2097 = vpack.c.b16 %v2089, %v2088
    %2106 = vmatpush.bf16.msra.mxu0 %v2097
    %2107 = vmatpush.bf16.msra.mxu0 %v2096
    %2108 = vmatpush.bf16.msra.mxu0 %v2095
    %2109 = vmatpush.bf16.msra.mxu0 %v2094
    %2110 = vmatpush.bf16.msra.mxu0 %v2093
    %2111 = vmatpush.bf16.msra.mxu0 %v2092
    %2112 = vmatpush.bf16.msra.mxu0 %v2091
    %2113 = vmatpush.bf16.msra.mxu0 %v2090
    %2114 = vmatmul.bf16.gmra.mxu0 %v2037
    %v2115 = vpop.f32.mrf.mxu0
    %v2116 = vadd.f32 %v2056, %v2115
    %v2117 = vpop.f32.mrf.mxu0
    %2118 = vdwg.mxu0
    %vm2119 = vcmask 74752
    %2120 = vst.msk [vmem:[#allocation5] sm:$0x3] %vm2119, %v2116
    // Predicated region
    $region26: #{net_forward.5} parent=1 // pred_check
      _
    $region27: #{net_forward.5} parent=1 // pred_check_branch
      %2122 = sbr.rel (0) target = $region29
    $region28: #{net_forward.5} parent=1 // pred_region
      %2124 = vsyncadd [#allocation4], 0
      %s2126 = sshll.u32 [#allocation5], 4
      %s2127 = int_to_ptr.vmem [resolvable:$true] %s2126
      %s2128 = sshll.u32 %s5, 4
      %s2129 = int_to_ptr.hbm [resolvable:$true] %s2128
      %2131 = dma.vmem_to_hbm [thread:$0]  %s2127, 32, %s2129, [#allocation4]
    $region29: #{net_forward.5} parent=1 // pred_fallthru
      _
    // Predicated region
    $region30: #{net_forward.5} parent=1 // pred_check
      _
    $region31: #{net_forward.5} parent=1 // pred_check_branch
      %2133 = sbr.rel (0) target = $region33
    $region32: #{net_forward.5} parent=1 // pred_region
      %2135 = dma.done [#allocation4], 32
    $region33: #{net_forward.5} parent=1 // pred_fallthru
      _
    %2136 = vsyncpa [#allocation3], 1
    %2137 = vsyncpa [#allocation4], 1

</llo_original>
